<compile_context>
chip_gen: v5e
topology: v5e:2x2
jax: 0.10.0
libtpu: 0.0.40
codegen_flags: <defaults>
</compile_context>

<pallas_src>
import jax
import jax.numpy as jnp
from jax import lax
from jax.experimental import pallas as pl
from jax.experimental.pallas import tpu as pltpu


# -----------------------------------------------------------------------------
# Config (small shapes consistent with the module; kernel_size=3 / stride=1 so
# the offset conv keeps the BEV resolution, as in the TSA use-case).
# -----------------------------------------------------------------------------
B = 2
EMBED_DIM = 32          # C
BEV = 8                 # H = W
N_HEADS = 4
N_GROUPS = 1
KERNEL_SIZE = 3
STRIDE = 1
OFFSET_RANGE_FACTOR = 0.5

C_PER_HEAD = EMBED_DIM // N_HEADS        # 8
C_PER_GROUP = EMBED_DIM // N_GROUPS      # 32
SCALE = C_PER_HEAD ** (-0.5)
PAD = KERNEL_SIZE // 2 if KERNEL_SIZE != STRIDE else 0

H = W = BEV
M = H * W                # query positions                 (64)
NS = H * W               # sampled key/value positions     (64)
BM = B * M               # 128   (lane-fused query axis for sampling)
BNS = B * NS             # 128   (lane-fused key axis)
TH = 2 * BEV - 1         # rpe table height                (15)
TW = 2 * BEV - 1         # rpe table width                 (15)

SAMP_SY = 0.5 * (H - 1.0)      # normalized coord -> pixel (align_corners=True)
SAMP_SX = 0.5 * (W - 1.0)
RPE_AY = 0.25 * (TH - 1.0)     # displacement 0.5*(q - r) -> rpe-table pixel scale
RPE_AX = 0.25 * (TW - 1.0)
RPE_CY = 0.5 * (TH - 1.0)
RPE_CX = 0.5 * (TW - 1.0)
BATCH_SEP = 100.0              # y-coordinate separation between batch blocks


# -----------------------------------------------------------------------------
# Plain-JAX glue: conv_offset (depthwise conv + LayerNormProxy + GELU + 1x1)
# -----------------------------------------------------------------------------
def conv_offset_fn(q_g, p):
    # q_g: (B*n_groups, c_per_group, H, W)
    y = jax.lax.conv_general_dilated(
        q_g, p["dw_w"],
        window_strides=(STRIDE, STRIDE),
        padding=[(PAD, PAD), (PAD, PAD)],
        dimension_numbers=("NCHW", "OIHW", "NCHW"),
        feature_group_count=C_PER_GROUP,
    )
    y = y + p["dw_b"][None, :, None, None]
    # LayerNormProxy: LayerNorm over channel dim.
    mu = jnp.mean(y, axis=1, keepdims=True)
    var = jnp.mean((y - mu) ** 2, axis=1, keepdims=True)
    y = (y - mu) / jnp.sqrt(var + 1e-5)
    y = y * p["ln_g"][None, :, None, None] + p["ln_b"][None, :, None, None]
    y = jax.nn.gelu(y, approximate=False)              # exact GELU (torch default)
    off = jnp.einsum("oc,bchw->bohw", p["off_w"], y)   # (BG, 2, Hk, Wk), no bias
    return off


def normalized_grid(h, w):
    ys = jnp.arange(h, dtype=jnp.float32)
    xs = jnp.arange(w, dtype=jnp.float32)
    yy, xx = jnp.meshgrid(ys, xs, indexing="ij")
    gy = yy / (h - 1.0) * 2.0 - 1.0
    gx = xx / (w - 1.0) * 2.0 - 1.0
    return jnp.stack([gy, gx], axis=-1)                # (h, w, 2), 0=y, 1=x


# -----------------------------------------------------------------------------
# Constant coordinate inputs (tiny, built once in the wrapper).
# -----------------------------------------------------------------------------
def _const_inputs():
    f32 = jnp.float32
    iy = jnp.repeat(jnp.arange(H, dtype=f32), W)           # row of hw
    ix = jnp.tile(jnp.arange(W, dtype=f32), H)             # col of hw
    # Source-pixel coordinates with batch-1 rows shifted by BATCH_SEP so the
    # fused (BM, BNS) bilinear weight matrix is block-diagonal over batch.
    siyb = jnp.concatenate([iy, iy + BATCH_SEP]).reshape(BM, 1)
    sixc = jnp.concatenate([ix, ix]).reshape(BM, 1)
    bsel = (jnp.arange(BNS) // NS).astype(f32).reshape(1, BNS)   # 0./1. per lane
    qy = jnp.arange(H, dtype=f32) / (H - 1.0) * 2.0 - 1.0
    qx = jnp.arange(W, dtype=f32) / (W - 1.0) * 2.0 - 1.0
    myc = (RPE_AY * qy + RPE_CY).reshape(H, 1)                   # (8, 1)
    mxr = jnp.repeat(RPE_AX * qx + RPE_CX, BNS).reshape(1, W * BNS)  # (1, 1024)
    jcol = jnp.arange(TW, dtype=f32).reshape(TW, 1)              # (15, 1)
    return siyb, sixc, bsel, myc, jcol, mxr


# -----------------------------------------------------------------------------
# The single fused Pallas kernel (no grid; everything stays in VMEM/vregs).
# -----------------------------------------------------------------------------
def _fused_kernel(x_ref, q_ref, ry_ref, rxw_ref,
                  siyb_ref, sixc_ref, bsel_ref, myc_ref, jcol_ref, mxr_ref,
                  wk_ref, bk_ref, wv_ref, bv_ref, rpe_ref, woe_ref, boe_ref,
                  o_ref):
    """All refs are whole-array VMEM blocks.

    x_ref    : (C, B*M)            x features, col = b*M + hw
    q_ref    : (n_heads, B*c_h, M) query, row = b*c_h + c
    ry_ref   : (1, B*NS)           normalized sample-grid y, col = b*NS + n
    rxw_ref  : (1, W*B*NS)         normalized sample-grid x tiled over mx
    siyb_ref : (B*M, 1)            source row index (+BATCH_SEP for batch 1)
    sixc_ref : (B*M, 1)            source col index
    bsel_ref : (1, B*NS)           batch id (0./1.) of each lane
    myc_ref  : (H, 1)              RPE_AY*q_y(my) + RPE_CY
    jcol_ref : (TW, 1)             j = 0..TW-1
    mxr_ref  : (1, W*B*NS)         RPE_AX*q_x(mx) + RPE_CX per 128-lane group
    wk/wv    : (C, C)   bk/bv : (C, 1)
    rpe_ref  : (TH*n_heads, TW)    raw rpe table, row = i*n_heads + h
    woe_ref  : (B*C, n_heads*B*c_h)  proj_out weight fused with batch selection
    boe_ref  : (B*C, 1)
    o_ref    : (B*C, M)            output, row = b*C + c_out
    """
    f32 = jnp.float32
    ry = ry_ref[...]                     # (1, BNS)
    rxw = rxw_ref[...]                   # (1, W*BNS)
    rx = rxw[:, :BNS]                    # (1, BNS), lane-offset-0 slice (free)
    bsel = bsel_ref[...]                 # (1, BNS)
    m0 = 1.0 - bsel
    m1 = bsel

    # ---- 1) bilinear grid_sample of x: one lane-dense (32,128)@(128,128) ----
    # Cross-batch hat weights vanish exactly because batch-1 coordinates are
    # shifted by BATCH_SEP on both sides (block-diagonal weight matrix).
    pyb = (ry + 1.0) * SAMP_SY + BATCH_SEP * bsel                  # (1, BNS)
    pxb = (rx + 1.0) * SAMP_SX                                     # (1, BNS)
    wy = jnp.maximum(0.0, 1.0 - jnp.abs(pyb - siyb_ref[...]))      # (BM, BNS)
    wx = jnp.maximum(0.0, 1.0 - jnp.abs(pxb - sixc_ref[...]))      # (BM, BNS)
    xs = jnp.dot(x_ref[...], wy * wx, preferred_element_type=f32)  # (C, BNS)

    # ---- 2) proj_k / proj_v: all heads, both batches, lane-dense -------------
    k_all = jnp.dot(wk_ref[...], xs, preferred_element_type=f32) + bk_ref[...]
    v_all = jnp.dot(wv_ref[...], xs, preferred_element_type=f32) + bv_ref[...]
    k_r = k_all.reshape(N_HEADS, C_PER_HEAD, BNS)      # free reshape (tile-aligned)
    v_r = v_all.reshape(N_HEADS, C_PER_HEAD, BNS)
    # Block-diagonal (over batch) expansions: row block b only sees batch-b lanes.
    kexp = jnp.concatenate([k_r * m0, k_r * m1], axis=1)   # (h, B*c_h, BNS)
    vexp = jnp.concatenate([v_r * m0, v_r * m1], axis=1)   # (h, B*c_h, BNS)

    # ---- 3) attention scores, minor axis = B*NS = 128 -------------------------
    s = lax.dot_general(q_ref[...], kexp,
                        (((1,), (1,)), ((0,), (0,))),
                        preferred_element_type=f32)          # (h, M, BNS)
    logits4 = (s * SCALE).reshape(N_HEADS, H, W, BNS)        # free reshape

    # ---- 4) RPE bias: x-taps on the MXU (raw table), y-taps on the VPU --------
    px = mxr_ref[...] - RPE_AX * rxw                              # (1, W*BNS)
    wxb = jnp.maximum(0.0, 1.0 - jnp.abs(px - jcol_ref[...]))     # (TW, W*BNS)
    p = jnp.dot(rpe_ref[...], wxb, preferred_element_type=f32)    # (TH*h, W*BNS)
    p_r = p.reshape(TH * N_HEADS, W, BNS)      # single one-time relayout (60 KiB)
    pyd = myc_ref[...] - RPE_AY * ry                              # (H, BNS)
    for i in range(TH):
        # y hat weight depends only on the query ROW: one (8,128) vreg per tap.
        wy_i = jnp.maximum(0.0, 1.0 - jnp.abs(pyd - float(i)))    # (H, BNS)
        p_i = p_r[i * N_HEADS:(i + 1) * N_HEADS]                  # (h, W, BNS) view
        logits4 = logits4 + wy_i[None, :, None, :] * p_i[:, None, :, :]

    # ---- 5) softmax over keys, per batch half of the lanes --------------------
    logits = logits4.reshape(N_HEADS, M, BNS)
    # Shared shift (softmax is shift-invariant per half; logits are O(1) here).
    mshift = jnp.max(logits, axis=-1, keepdims=True)
    e = jnp.exp(logits - mshift)
    d0 = jnp.sum(e * m0, axis=-1, keepdims=True)
    d1 = jnp.sum(e * m1, axis=-1, keepdims=True)
    # Exact reciprocal for parity with the reference (approx=True -> EUP slot).
    inv = pl.reciprocal(d0, approx=False) * m0 + pl.reciprocal(d1, approx=False) * m1
    attn = e * inv                                               # (h, M, BNS)

    # ---- 6) attn @ v (block-diag vexp zeroes cross-batch lanes) ---------------
    out = lax.dot_general(vexp, attn,
                          (((2,), (2,)), ((0,), (0,))),
                          preferred_element_type=f32)            # (h, B*c_h, M)

    # ---- 7) proj_out fused with the batch un-interleave -----------------------
    o_ref[...] = (jnp.dot(woe_ref[...],
                          out.reshape(N_HEADS * B * C_PER_HEAD, M),
                          preferred_element_type=f32)
                  + boe_ref[...]).astype(o_ref.dtype)


def fused_tsa_pallas(*args):
    vmem = pl.BlockSpec(memory_space=pltpu.MemorySpace.VMEM)
    return pl.pallas_call(
        _fused_kernel,
        out_shape=jax.ShapeDtypeStruct((B * EMBED_DIM, M), jnp.float32),
        in_specs=[vmem] * 17,
        out_specs=vmem,
    )(*args)


# -----------------------------------------------------------------------------
# Full forward pass
# -----------------------------------------------------------------------------
@jax.jit
def tsa_forward(x, query, params):
    Bq, C, Hh, Ww = x.shape
    assert N_GROUPS == 1  # fused kernel assumes one group (module config)

    # ---- offsets from the query (conv_offset) -------------------------------
    q_g = query.reshape(Bq * N_GROUPS, C_PER_GROUP, Hh, Ww)
    off = conv_offset_fn(q_g, params)                    # (B, 2, Hk, Wk)
    Hk, Wk = off.shape[-2:]
    assert (Hk, Wk) == (Hh, Ww)                          # stride=1 keeps resolution
    ns = Hk * Wk
    offset_range = jnp.array([1.0 / (Hk - 1.0), 1.0 / (Wk - 1.0)],
                             dtype=jnp.float32).reshape(1, 2, 1, 1)
    off = jnp.tanh(off) * offset_range * OFFSET_RANGE_FACTOR
    off = jnp.transpose(off, (0, 2, 3, 1))               # (B, Hk, Wk, 2)
    ref = normalized_grid(Hk, Wk)[None]                  # (1, Hk, Wk, 2)
    rwo = off + ref                                      # no clamp when scaled
    r_y = rwo[..., 0].reshape(Bq, ns)
    r_x = rwo[..., 1].reshape(Bq, ns)
    ry_row = r_y.reshape(1, Bq * ns)                     # (1, BNS), b-major
    rx_flat = r_x.reshape(1, Bq * ns)
    rxw_row = jnp.tile(rx_flat, (1, W))                  # (1, W*BNS), col = mx*BNS+col0

    # ---- lane-dense input layouts (pure layout plumbing) ---------------------
    xall = x.reshape(Bq, C, Hh * Ww).transpose(1, 0, 2).reshape(C, BM)
    qexp = (query.reshape(Bq, N_HEADS, C_PER_HEAD, Hh * Ww)
            .transpose(1, 0, 2, 3).reshape(N_HEADS, Bq * C_PER_HEAD, M))

    siyb, sixc, bsel, myc, jcol, mxr = _const_inputs()

    # raw rpe table as matmul LHS (row = i*n_heads + h) -- no block-diag blowup
    rpe_lhs = jnp.transpose(params["rpe"], (1, 0, 2)).reshape(TH * N_HEADS, TW)
    # proj_out weight fused with batch selection: (B*C, n_heads*B*c_h)
    w4 = params["o_w"].reshape(EMBED_DIM, N_HEADS, C_PER_HEAD)
    eye_b = jnp.eye(B, dtype=jnp.float32)
    woexp = (eye_b[:, None, None, :, None] * w4[None, :, :, None, :]).reshape(
        B * EMBED_DIM, N_HEADS * B * C_PER_HEAD)
    boexp = jnp.tile(params["o_b"], (B,)).reshape(B * EMBED_DIM, 1)

    o_all = fused_tsa_pallas(
        xall, qexp, ry_row, rxw_row,
        siyb, sixc, bsel, myc, jcol, mxr,
        params["k_w"], params["k_b"].reshape(C, 1),
        params["v_w"], params["v_b"].reshape(C, 1),
        rpe_lhs, woexp, boexp)                           # (B*C, M)

    return o_all.reshape(Bq, C, Hh, Ww)


# -----------------------------------------------------------------------------
# Deterministic parameter init (synthetic; no checkpoint loading)
# -----------------------------------------------------------------------------
def init_params(key):
    ks = jax.random.split(key, 8)
    return {
        "dw_w": 0.02 * jax.random.normal(ks[0], (C_PER_GROUP, 1, KERNEL_SIZE, KERNEL_SIZE), jnp.float32),
        "dw_b": jnp.zeros((C_PER_GROUP,), jnp.float32),
        "ln_g": jnp.ones((C_PER_GROUP,), jnp.float32),
        "ln_b": jnp.zeros((C_PER_GROUP,), jnp.float32),
        "off_w": 0.02 * jax.random.normal(ks[1], (2, C_PER_GROUP), jnp.float32),
        "k_w": 0.02 * jax.random.normal(ks[2], (EMBED_DIM, EMBED_DIM), jnp.float32),
        "k_b": jnp.zeros((EMBED_DIM,), jnp.float32),
        "v_w": 0.02 * jax.random.normal(ks[3], (EMBED_DIM, EMBED_DIM), jnp.float32),
        "v_b": jnp.zeros((EMBED_DIM,), jnp.float32),
        "o_w": 0.02 * jax.random.normal(ks[4], (EMBED_DIM, EMBED_DIM), jnp.float32),
        "o_b": jnp.zeros((EMBED_DIM,), jnp.float32),
        # trunc_normal_(std=0.01)
        "rpe": 0.01 * jax.random.truncated_normal(
            ks[5], -2.0, 2.0, (N_HEADS, 2 * BEV - 1, 2 * BEV - 1), jnp.float32),
    }


if __name__ == "__main__":
    key = jax.random.PRNGKey(0)
    k_p, k_x, k_q = jax.random.split(key, 3)
    params = init_params(k_p)
    x = jax.random.normal(k_x, (B, EMBED_DIM, BEV, BEV), jnp.float32)
    query = jax.random.normal(k_q, (B, EMBED_DIM, BEV, BEV), jnp.float32)

    out = tsa_forward(x, query, params)
    jax.block_until_ready(out)

    assert out.shape == (B, EMBED_DIM, BEV, BEV), out.shape
    assert bool(jnp.isfinite(out).all())
    print("KERNEL_OK")
</pallas_src>

<mosaic_0001>
module attributes {stable_mosaic.version = 11 : i64} {
  func.func @_fused_kernel(%arg0: memref<32x128xf32, #tpu.memory_space<vmem>>, %arg1: memref<4x16x64xf32, #tpu.memory_space<vmem>>, %arg2: memref<1x128xf32, #tpu.memory_space<vmem>>, %arg3: memref<1x1024xf32, #tpu.memory_space<vmem>>, %arg4: memref<128x1xf32, #tpu.memory_space<vmem>>, %arg5: memref<128x1xf32, #tpu.memory_space<vmem>>, %arg6: memref<1x128xf32, #tpu.memory_space<vmem>>, %arg7: memref<8x1xf32, #tpu.memory_space<vmem>>, %arg8: memref<15x1xf32, #tpu.memory_space<vmem>>, %arg9: memref<1x1024xf32, #tpu.memory_space<vmem>>, %arg10: memref<32x32xf32, #tpu.memory_space<vmem>>, %arg11: memref<32x1xf32, #tpu.memory_space<vmem>>, %arg12: memref<32x32xf32, #tpu.memory_space<vmem>>, %arg13: memref<32x1xf32, #tpu.memory_space<vmem>>, %arg14: memref<60x15xf32, #tpu.memory_space<vmem>>, %arg15: memref<64x64xf32, #tpu.memory_space<vmem>>, %arg16: memref<64x1xf32, #tpu.memory_space<vmem>>, %arg17: memref<64x64xf32, #tpu.memory_space<vmem>>) attributes {dimension_semantics = [], scalar_prefetch = 0 : i64, scratch_operands = 0 : i64, tpu.core_type = #tpu.core_type<tc>} {
    %c0 = arith.constant 0 : index
    %c0_0 = arith.constant 0 : index
    %0 = vector.load %arg2[%c0, %c0_0] : memref<1x128xf32, #tpu.memory_space<vmem>>, vector<1x128xf32>
    %c0_1 = arith.constant 0 : index
    %c0_2 = arith.constant 0 : index
    %1 = vector.load %arg3[%c0_1, %c0_2] : memref<1x1024xf32, #tpu.memory_space<vmem>>, vector<1x1024xf32>
    %2 = vector.extract_strided_slice %1 {offsets = [0, 0], sizes = [1, 128], strides = [1, 1]} : vector<1x1024xf32> to vector<1x128xf32>
    %c0_3 = arith.constant 0 : index
    %c0_4 = arith.constant 0 : index
    %3 = vector.load %arg6[%c0_3, %c0_4] : memref<1x128xf32, #tpu.memory_space<vmem>>, vector<1x128xf32>
    %cst = arith.constant 1.000000e+00 : f32
    %4 = vector.broadcast %cst : f32 to vector<1x128xf32>
    %5 = arith.subf %4, %3 : vector<1x128xf32>
    %cst_5 = arith.constant 1.000000e+00 : f32
    %6 = vector.broadcast %cst_5 : f32 to vector<1x128xf32>
    %7 = arith.addf %0, %6 : vector<1x128xf32>
    %cst_6 = arith.constant 3.500000e+00 : f32
    %8 = vector.broadcast %cst_6 : f32 to vector<1x128xf32>
    %9 = arith.mulf %7, %8 : vector<1x128xf32>
    %cst_7 = arith.constant 1.000000e+02 : f32
    %10 = vector.broadcast %cst_7 : f32 to vector<1x128xf32>
    %11 = arith.mulf %10, %3 : vector<1x128xf32>
    %12 = arith.addf %9, %11 : vector<1x128xf32>
    %cst_8 = arith.constant 1.000000e+00 : f32
    %13 = vector.broadcast %cst_8 : f32 to vector<1x128xf32>
    %14 = arith.addf %2, %13 : vector<1x128xf32>
    %cst_9 = arith.constant 3.500000e+00 : f32
    %15 = vector.broadcast %cst_9 : f32 to vector<1x128xf32>
    %16 = arith.mulf %14, %15 : vector<1x128xf32>
    %c0_10 = arith.constant 0 : index
    %c0_11 = arith.constant 0 : index
    %17 = vector.load %arg4[%c0_10, %c0_11] : memref<128x1xf32, #tpu.memory_space<vmem>>, vector<128x1xf32>
    %18 = vector.broadcast %12 : vector<1x128xf32> to vector<128x128xf32>
    %19 = vector.broadcast %17 : vector<128x1xf32> to vector<128x128xf32>
    %20 = arith.subf %18, %19 : vector<128x128xf32>
    %21 = math.absf %20 : vector<128x128xf32>
    %cst_12 = arith.constant 1.000000e+00 : f32
    %22 = vector.broadcast %cst_12 : f32 to vector<128x128xf32>
    %23 = arith.subf %22, %21 : vector<128x128xf32>
    %cst_13 = arith.constant 0.000000e+00 : f32
    %24 = vector.broadcast %cst_13 : f32 to vector<128x128xf32>
    %25 = arith.maximumf %24, %23 : vector<128x128xf32>
    %c0_14 = arith.constant 0 : index
    %c0_15 = arith.constant 0 : index
    %26 = vector.load %arg5[%c0_14, %c0_15] : memref<128x1xf32, #tpu.memory_space<vmem>>, vector<128x1xf32>
    %27 = vector.broadcast %16 : vector<1x128xf32> to vector<128x128xf32>
    %28 = vector.broadcast %26 : vector<128x1xf32> to vector<128x128xf32>
    %29 = arith.subf %27, %28 : vector<128x128xf32>
    %30 = math.absf %29 : vector<128x128xf32>
    %cst_16 = arith.constant 1.000000e+00 : f32
    %31 = vector.broadcast %cst_16 : f32 to vector<128x128xf32>
    %32 = arith.subf %31, %30 : vector<128x128xf32>
    %cst_17 = arith.constant 0.000000e+00 : f32
    %33 = vector.broadcast %cst_17 : f32 to vector<128x128xf32>
    %34 = arith.maximumf %33, %32 : vector<128x128xf32>
    %c0_18 = arith.constant 0 : index
    %c0_19 = arith.constant 0 : index
    %35 = vector.load %arg0[%c0_18, %c0_19] : memref<32x128xf32, #tpu.memory_space<vmem>>, vector<32x128xf32>
    %36 = arith.mulf %25, %34 : vector<128x128xf32>
    %cst_20 = arith.constant dense<0.000000e+00> : vector<32x128xf32>
    %37 = tpu.matmul %35, %36, %cst_20 {dimension_numbers = #tpu.dot_dimension_numbers<[1], [0], [0], [1], [0, 0, 1, 1], [], []>} : vector<32x128xf32>, vector<128x128xf32>, vector<32x128xf32> -> vector<32x128xf32>
    %c0_21 = arith.constant 0 : index
    %c0_22 = arith.constant 0 : index
    %38 = vector.load %arg10[%c0_21, %c0_22] : memref<32x32xf32, #tpu.memory_space<vmem>>, vector<32x32xf32>
    %cst_23 = arith.constant dense<0.000000e+00> : vector<32x128xf32>
    %39 = tpu.matmul %38, %37, %cst_23 {dimension_numbers = #tpu.dot_dimension_numbers<[1], [0], [0], [1], [0, 0, 1, 1], [], []>} : vector<32x32xf32>, vector<32x128xf32>, vector<32x128xf32> -> vector<32x128xf32>
    %c0_24 = arith.constant 0 : index
    %c0_25 = arith.constant 0 : index
    %40 = vector.load %arg11[%c0_24, %c0_25] : memref<32x1xf32, #tpu.memory_space<vmem>>, vector<32x1xf32>
    %41 = vector.broadcast %40 : vector<32x1xf32> to vector<32x128xf32>
    %42 = arith.addf %39, %41 : vector<32x128xf32>
    %c0_26 = arith.constant 0 : index
    %c0_27 = arith.constant 0 : index
    %43 = vector.load %arg12[%c0_26, %c0_27] : memref<32x32xf32, #tpu.memory_space<vmem>>, vector<32x32xf32>
    %cst_28 = arith.constant dense<0.000000e+00> : vector<32x128xf32>
    %44 = tpu.matmul %43, %37, %cst_28 {dimension_numbers = #tpu.dot_dimension_numbers<[1], [0], [0], [1], [0, 0, 1, 1], [], []>} : vector<32x32xf32>, vector<32x128xf32>, vector<32x128xf32> -> vector<32x128xf32>
    %c0_29 = arith.constant 0 : index
    %c0_30 = arith.constant 0 : index
    %45 = vector.load %arg13[%c0_29, %c0_30] : memref<32x1xf32, #tpu.memory_space<vmem>>, vector<32x1xf32>
    %46 = vector.broadcast %45 : vector<32x1xf32> to vector<32x128xf32>
    %47 = arith.addf %44, %46 : vector<32x128xf32>
    %48 = vector.shape_cast %42 : vector<32x128xf32> to vector<4x8x128xf32>
    %49 = vector.shape_cast %47 : vector<32x128xf32> to vector<4x8x128xf32>
    %50 = vector.shape_cast %5 : vector<1x128xf32> to vector<1x1x128xf32>
    %51 = vector.broadcast %50 : vector<1x1x128xf32> to vector<4x8x128xf32>
    %52 = arith.mulf %48, %51 : vector<4x8x128xf32>
    %53 = vector.shape_cast %3 : vector<1x128xf32> to vector<1x1x128xf32>
    %54 = vector.broadcast %53 : vector<1x1x128xf32> to vector<4x8x128xf32>
    %55 = arith.mulf %48, %54 : vector<4x8x128xf32>
    %56 = tpu.concatenate %52, %55 in 1 : vector<4x8x128xf32>, vector<4x8x128xf32> -> vector<4x16x128xf32>
    %57 = vector.shape_cast %5 : vector<1x128xf32> to vector<1x1x128xf32>
    %58 = vector.broadcast %57 : vector<1x1x128xf32> to vector<4x8x128xf32>
    %59 = arith.mulf %49, %58 : vector<4x8x128xf32>
    %60 = vector.shape_cast %3 : vector<1x128xf32> to vector<1x1x128xf32>
    %61 = vector.broadcast %60 : vector<1x1x128xf32> to vector<4x8x128xf32>
    %62 = arith.mulf %49, %61 : vector<4x8x128xf32>
    %63 = tpu.concatenate %59, %62 in 1 : vector<4x8x128xf32>, vector<4x8x128xf32> -> vector<4x16x128xf32>
    %c0_31 = arith.constant 0 : index
    %c0_32 = arith.constant 0 : index
    %c0_33 = arith.constant 0 : index
    %64 = vector.load %arg1[%c0_31, %c0_32, %c0_33] : memref<4x16x64xf32, #tpu.memory_space<vmem>>, vector<4x16x64xf32>
    %cst_34 = arith.constant dense<0.000000e+00> : vector<4x64x128xf32>
    %65 = tpu.matmul %64, %56, %cst_34 {dimension_numbers = #tpu.dot_dimension_numbers<[1], [1], [2], [2], [0, 0, 0, 2, 1, 2], [0], [0]>} : vector<4x16x64xf32>, vector<4x16x128xf32>, vector<4x64x128xf32> -> vector<4x64x128xf32>
    %cst_35 = arith.constant 0.353553385 : f32
    %66 = vector.broadcast %cst_35 : f32 to vector<4x64x128xf32>
    %67 = arith.mulf %65, %66 : vector<4x64x128xf32>
    %68 = vector.shape_cast %67 : vector<4x64x128xf32> to vector<4x8x8x128xf32>
    %c0_36 = arith.constant 0 : index
    %c0_37 = arith.constant 0 : index
    %69 = vector.load %arg9[%c0_36, %c0_37] : memref<1x1024xf32, #tpu.memory_space<vmem>>, vector<1x1024xf32>
    %cst_38 = arith.constant 3.500000e+00 : f32
    %70 = vector.broadcast %cst_38 : f32 to vector<1x1024xf32>
    %71 = arith.mulf %70, %1 : vector<1x1024xf32>
    %72 = arith.subf %69, %71 : vector<1x1024xf32>
    %c0_39 = arith.constant 0 : index
    %c0_40 = arith.constant 0 : index
    %73 = vector.load %arg8[%c0_39, %c0_40] : memref<15x1xf32, #tpu.memory_space<vmem>>, vector<15x1xf32>
    %74 = vector.broadcast %72 : vector<1x1024xf32> to vector<15x1024xf32>
    %75 = vector.broadcast %73 : vector<15x1xf32> to vector<15x1024xf32>
    %76 = arith.subf %74, %75 : vector<15x1024xf32>
    %77 = math.absf %76 : vector<15x1024xf32>
    %cst_41 = arith.constant 1.000000e+00 : f32
    %78 = vector.broadcast %cst_41 : f32 to vector<15x1024xf32>
    %79 = arith.subf %78, %77 : vector<15x1024xf32>
    %cst_42 = arith.constant 0.000000e+00 : f32
    %80 = vector.broadcast %cst_42 : f32 to vector<15x1024xf32>
    %81 = arith.maximumf %80, %79 : vector<15x1024xf32>
    %c0_43 = arith.constant 0 : index
    %c0_44 = arith.constant 0 : index
    %82 = vector.load %arg14[%c0_43, %c0_44] : memref<60x15xf32, #tpu.memory_space<vmem>>, vector<60x15xf32>
    %cst_45 = arith.constant dense<0.000000e+00> : vector<60x1024xf32>
    %83 = tpu.matmul %82, %81, %cst_45 {dimension_numbers = #tpu.dot_dimension_numbers<[1], [0], [0], [1], [0, 0, 1, 1], [], []>} : vector<60x15xf32>, vector<15x1024xf32>, vector<60x1024xf32> -> vector<60x1024xf32>
    %84 = vector.shape_cast %83 : vector<60x1024xf32> to vector<60x8x128xf32>
    %c0_46 = arith.constant 0 : index
    %c0_47 = arith.constant 0 : index
    %85 = vector.load %arg7[%c0_46, %c0_47] : memref<8x1xf32, #tpu.memory_space<vmem>>, vector<8x1xf32>
    %cst_48 = arith.constant 3.500000e+00 : f32
    %86 = vector.broadcast %cst_48 : f32 to vector<1x128xf32>
    %87 = arith.mulf %86, %0 : vector<1x128xf32>
    %88 = vector.broadcast %85 : vector<8x1xf32> to vector<8x128xf32>
    %89 = vector.broadcast %87 : vector<1x128xf32> to vector<8x128xf32>
    %90 = arith.subf %88, %89 : vector<8x128xf32>
    %cst_49 = arith.constant 0.000000e+00 : f32
    %91 = vector.broadcast %cst_49 : f32 to vector<8x128xf32>
    %92 = arith.subf %90, %91 : vector<8x128xf32>
    %93 = math.absf %92 : vector<8x128xf32>
    %cst_50 = arith.constant 1.000000e+00 : f32
    %94 = vector.broadcast %cst_50 : f32 to vector<8x128xf32>
    %95 = arith.subf %94, %93 : vector<8x128xf32>
    %cst_51 = arith.constant 0.000000e+00 : f32
    %96 = vector.broadcast %cst_51 : f32 to vector<8x128xf32>
    %97 = arith.maximumf %96, %95 : vector<8x128xf32>
    %98 = vector.extract_strided_slice %84 {offsets = [0, 0, 0], sizes = [4, 8, 128], strides = [1, 1, 1]} : vector<60x8x128xf32> to vector<4x8x128xf32>
    %99 = vector.shape_cast %97 : vector<8x128xf32> to vector<1x8x1x128xf32>
    %100 = vector.shape_cast %98 : vector<4x8x128xf32> to vector<4x1x8x128xf32>
    %101 = vector.broadcast %99 : vector<1x8x1x128xf32> to vector<4x8x8x128xf32>
    %102 = vector.broadcast %100 : vector<4x1x8x128xf32> to vector<4x8x8x128xf32>
    %103 = arith.mulf %101, %102 : vector<4x8x8x128xf32>
    %104 = arith.addf %68, %103 : vector<4x8x8x128xf32>
    %cst_52 = arith.constant 1.000000e+00 : f32
    %105 = vector.broadcast %cst_52 : f32 to vector<8x128xf32>
    %106 = arith.subf %90, %105 : vector<8x128xf32>
    %107 = math.absf %106 : vector<8x128xf32>
    %cst_53 = arith.constant 1.000000e+00 : f32
    %108 = vector.broadcast %cst_53 : f32 to vector<8x128xf32>
    %109 = arith.subf %108, %107 : vector<8x128xf32>
    %cst_54 = arith.constant 0.000000e+00 : f32
    %110 = vector.broadcast %cst_54 : f32 to vector<8x128xf32>
    %111 = arith.maximumf %110, %109 : vector<8x128xf32>
    %112 = vector.extract_strided_slice %84 {offsets = [4, 0, 0], sizes = [4, 8, 128], strides = [1, 1, 1]} : vector<60x8x128xf32> to vector<4x8x128xf32>
    %113 = vector.shape_cast %111 : vector<8x128xf32> to vector<1x8x1x128xf32>
    %114 = vector.shape_cast %112 : vector<4x8x128xf32> to vector<4x1x8x128xf32>
    %115 = vector.broadcast %113 : vector<1x8x1x128xf32> to vector<4x8x8x128xf32>
    %116 = vector.broadcast %114 : vector<4x1x8x128xf32> to vector<4x8x8x128xf32>
    %117 = arith.mulf %115, %116 : vector<4x8x8x128xf32>
    %118 = arith.addf %104, %117 : vector<4x8x8x128xf32>
    %cst_55 = arith.constant 2.000000e+00 : f32
    %119 = vector.broadcast %cst_55 : f32 to vector<8x128xf32>
    %120 = arith.subf %90, %119 : vector<8x128xf32>
    %121 = math.absf %120 : vector<8x128xf32>
    %cst_56 = arith.constant 1.000000e+00 : f32
    %122 = vector.broadcast %cst_56 : f32 to vector<8x128xf32>
    %123 = arith.subf %122, %121 : vector<8x128xf32>
    %cst_57 = arith.constant 0.000000e+00 : f32
    %124 = vector.broadcast %cst_57 : f32 to vector<8x128xf32>
    %125 = arith.maximumf %124, %123 : vector<8x128xf32>
    %126 = vector.extract_strided_slice %84 {offsets = [8, 0, 0], sizes = [4, 8, 128], strides = [1, 1, 1]} : vector<60x8x128xf32> to vector<4x8x128xf32>
    %127 = vector.shape_cast %125 : vector<8x128xf32> to vector<1x8x1x128xf32>
    %128 = vector.shape_cast %126 : vector<4x8x128xf32> to vector<4x1x8x128xf32>
    %129 = vector.broadcast %127 : vector<1x8x1x128xf32> to vector<4x8x8x128xf32>
    %130 = vector.broadcast %128 : vector<4x1x8x128xf32> to vector<4x8x8x128xf32>
    %131 = arith.mulf %129, %130 : vector<4x8x8x128xf32>
    %132 = arith.addf %118, %131 : vector<4x8x8x128xf32>
    %cst_58 = arith.constant 3.000000e+00 : f32
    %133 = vector.broadcast %cst_58 : f32 to vector<8x128xf32>
    %134 = arith.subf %90, %133 : vector<8x128xf32>
    %135 = math.absf %134 : vector<8x128xf32>
    %cst_59 = arith.constant 1.000000e+00 : f32
    %136 = vector.broadcast %cst_59 : f32 to vector<8x128xf32>
    %137 = arith.subf %136, %135 : vector<8x128xf32>
    %cst_60 = arith.constant 0.000000e+00 : f32
    %138 = vector.broadcast %cst_60 : f32 to vector<8x128xf32>
    %139 = arith.maximumf %138, %137 : vector<8x128xf32>
    %140 = vector.extract_strided_slice %84 {offsets = [12, 0, 0], sizes = [4, 8, 128], strides = [1, 1, 1]} : vector<60x8x128xf32> to vector<4x8x128xf32>
    %141 = vector.shape_cast %139 : vector<8x128xf32> to vector<1x8x1x128xf32>
    %142 = vector.shape_cast %140 : vector<4x8x128xf32> to vector<4x1x8x128xf32>
    %143 = vector.broadcast %141 : vector<1x8x1x128xf32> to vector<4x8x8x128xf32>
    %144 = vector.broadcast %142 : vector<4x1x8x128xf32> to vector<4x8x8x128xf32>
    %145 = arith.mulf %143, %144 : vector<4x8x8x128xf32>
    %146 = arith.addf %132, %145 : vector<4x8x8x128xf32>
    %cst_61 = arith.constant 4.000000e+00 : f32
    %147 = vector.broadcast %cst_61 : f32 to vector<8x128xf32>
    %148 = arith.subf %90, %147 : vector<8x128xf32>
    %149 = math.absf %148 : vector<8x128xf32>
    %cst_62 = arith.constant 1.000000e+00 : f32
    %150 = vector.broadcast %cst_62 : f32 to vector<8x128xf32>
    %151 = arith.subf %150, %149 : vector<8x128xf32>
    %cst_63 = arith.constant 0.000000e+00 : f32
    %152 = vector.broadcast %cst_63 : f32 to vector<8x128xf32>
    %153 = arith.maximumf %152, %151 : vector<8x128xf32>
    %154 = vector.extract_strided_slice %84 {offsets = [16, 0, 0], sizes = [4, 8, 128], strides = [1, 1, 1]} : vector<60x8x128xf32> to vector<4x8x128xf32>
    %155 = vector.shape_cast %153 : vector<8x128xf32> to vector<1x8x1x128xf32>
    %156 = vector.shape_cast %154 : vector<4x8x128xf32> to vector<4x1x8x128xf32>
    %157 = vector.broadcast %155 : vector<1x8x1x128xf32> to vector<4x8x8x128xf32>
    %158 = vector.broadcast %156 : vector<4x1x8x128xf32> to vector<4x8x8x128xf32>
    %159 = arith.mulf %157, %158 : vector<4x8x8x128xf32>
    %160 = arith.addf %146, %159 : vector<4x8x8x128xf32>
    %cst_64 = arith.constant 5.000000e+00 : f32
    %161 = vector.broadcast %cst_64 : f32 to vector<8x128xf32>
    %162 = arith.subf %90, %161 : vector<8x128xf32>
    %163 = math.absf %162 : vector<8x128xf32>
    %cst_65 = arith.constant 1.000000e+00 : f32
    %164 = vector.broadcast %cst_65 : f32 to vector<8x128xf32>
    %165 = arith.subf %164, %163 : vector<8x128xf32>
    %cst_66 = arith.constant 0.000000e+00 : f32
    %166 = vector.broadcast %cst_66 : f32 to vector<8x128xf32>
    %167 = arith.maximumf %166, %165 : vector<8x128xf32>
    %168 = vector.extract_strided_slice %84 {offsets = [20, 0, 0], sizes = [4, 8, 128], strides = [1, 1, 1]} : vector<60x8x128xf32> to vector<4x8x128xf32>
    %169 = vector.shape_cast %167 : vector<8x128xf32> to vector<1x8x1x128xf32>
    %170 = vector.shape_cast %168 : vector<4x8x128xf32> to vector<4x1x8x128xf32>
    %171 = vector.broadcast %169 : vector<1x8x1x128xf32> to vector<4x8x8x128xf32>
    %172 = vector.broadcast %170 : vector<4x1x8x128xf32> to vector<4x8x8x128xf32>
    %173 = arith.mulf %171, %172 : vector<4x8x8x128xf32>
    %174 = arith.addf %160, %173 : vector<4x8x8x128xf32>
    %cst_67 = arith.constant 6.000000e+00 : f32
    %175 = vector.broadcast %cst_67 : f32 to vector<8x128xf32>
    %176 = arith.subf %90, %175 : vector<8x128xf32>
    %177 = math.absf %176 : vector<8x128xf32>
    %cst_68 = arith.constant 1.000000e+00 : f32
    %178 = vector.broadcast %cst_68 : f32 to vector<8x128xf32>
    %179 = arith.subf %178, %177 : vector<8x128xf32>
    %cst_69 = arith.constant 0.000000e+00 : f32
    %180 = vector.broadcast %cst_69 : f32 to vector<8x128xf32>
    %181 = arith.maximumf %180, %179 : vector<8x128xf32>
    %182 = vector.extract_strided_slice %84 {offsets = [24, 0, 0], sizes = [4, 8, 128], strides = [1, 1, 1]} : vector<60x8x128xf32> to vector<4x8x128xf32>
    %183 = vector.shape_cast %181 : vector<8x128xf32> to vector<1x8x1x128xf32>
    %184 = vector.shape_cast %182 : vector<4x8x128xf32> to vector<4x1x8x128xf32>
    %185 = vector.broadcast %183 : vector<1x8x1x128xf32> to vector<4x8x8x128xf32>
    %186 = vector.broadcast %184 : vector<4x1x8x128xf32> to vector<4x8x8x128xf32>
    %187 = arith.mulf %185, %186 : vector<4x8x8x128xf32>
    %188 = arith.addf %174, %187 : vector<4x8x8x128xf32>
    %cst_70 = arith.constant 7.000000e+00 : f32
    %189 = vector.broadcast %cst_70 : f32 to vector<8x128xf32>
    %190 = arith.subf %90, %189 : vector<8x128xf32>
    %191 = math.absf %190 : vector<8x128xf32>
    %cst_71 = arith.constant 1.000000e+00 : f32
    %192 = vector.broadcast %cst_71 : f32 to vector<8x128xf32>
    %193 = arith.subf %192, %191 : vector<8x128xf32>
    %cst_72 = arith.constant 0.000000e+00 : f32
    %194 = vector.broadcast %cst_72 : f32 to vector<8x128xf32>
    %195 = arith.maximumf %194, %193 : vector<8x128xf32>
    %196 = vector.extract_strided_slice %84 {offsets = [28, 0, 0], sizes = [4, 8, 128], strides = [1, 1, 1]} : vector<60x8x128xf32> to vector<4x8x128xf32>
    %197 = vector.shape_cast %195 : vector<8x128xf32> to vector<1x8x1x128xf32>
    %198 = vector.shape_cast %196 : vector<4x8x128xf32> to vector<4x1x8x128xf32>
    %199 = vector.broadcast %197 : vector<1x8x1x128xf32> to vector<4x8x8x128xf32>
    %200 = vector.broadcast %198 : vector<4x1x8x128xf32> to vector<4x8x8x128xf32>
    %201 = arith.mulf %199, %200 : vector<4x8x8x128xf32>
    %202 = arith.addf %188, %201 : vector<4x8x8x128xf32>
    %cst_73 = arith.constant 8.000000e+00 : f32
    %203 = vector.broadcast %cst_73 : f32 to vector<8x128xf32>
    %204 = arith.subf %90, %203 : vector<8x128xf32>
    %205 = math.absf %204 : vector<8x128xf32>
    %cst_74 = arith.constant 1.000000e+00 : f32
    %206 = vector.broadcast %cst_74 : f32 to vector<8x128xf32>
    %207 = arith.subf %206, %205 : vector<8x128xf32>
    %cst_75 = arith.constant 0.000000e+00 : f32
    %208 = vector.broadcast %cst_75 : f32 to vector<8x128xf32>
    %209 = arith.maximumf %208, %207 : vector<8x128xf32>
    %210 = vector.extract_strided_slice %84 {offsets = [32, 0, 0], sizes = [4, 8, 128], strides = [1, 1, 1]} : vector<60x8x128xf32> to vector<4x8x128xf32>
    %211 = vector.shape_cast %209 : vector<8x128xf32> to vector<1x8x1x128xf32>
    %212 = vector.shape_cast %210 : vector<4x8x128xf32> to vector<4x1x8x128xf32>
    %213 = vector.broadcast %211 : vector<1x8x1x128xf32> to vector<4x8x8x128xf32>
    %214 = vector.broadcast %212 : vector<4x1x8x128xf32> to vector<4x8x8x128xf32>
    %215 = arith.mulf %213, %214 : vector<4x8x8x128xf32>
    %216 = arith.addf %202, %215 : vector<4x8x8x128xf32>
    %cst_76 = arith.constant 9.000000e+00 : f32
    %217 = vector.broadcast %cst_76 : f32 to vector<8x128xf32>
    %218 = arith.subf %90, %217 : vector<8x128xf32>
    %219 = math.absf %218 : vector<8x128xf32>
    %cst_77 = arith.constant 1.000000e+00 : f32
    %220 = vector.broadcast %cst_77 : f32 to vector<8x128xf32>
    %221 = arith.subf %220, %219 : vector<8x128xf32>
    %cst_78 = arith.constant 0.000000e+00 : f32
    %222 = vector.broadcast %cst_78 : f32 to vector<8x128xf32>
    %223 = arith.maximumf %222, %221 : vector<8x128xf32>
    %224 = vector.extract_strided_slice %84 {offsets = [36, 0, 0], sizes = [4, 8, 128], strides = [1, 1, 1]} : vector<60x8x128xf32> to vector<4x8x128xf32>
    %225 = vector.shape_cast %223 : vector<8x128xf32> to vector<1x8x1x128xf32>
    %226 = vector.shape_cast %224 : vector<4x8x128xf32> to vector<4x1x8x128xf32>
    %227 = vector.broadcast %225 : vector<1x8x1x128xf32> to vector<4x8x8x128xf32>
    %228 = vector.broadcast %226 : vector<4x1x8x128xf32> to vector<4x8x8x128xf32>
    %229 = arith.mulf %227, %228 : vector<4x8x8x128xf32>
    %230 = arith.addf %216, %229 : vector<4x8x8x128xf32>
    %cst_79 = arith.constant 1.000000e+01 : f32
    %231 = vector.broadcast %cst_79 : f32 to vector<8x128xf32>
    %232 = arith.subf %90, %231 : vector<8x128xf32>
    %233 = math.absf %232 : vector<8x128xf32>
    %cst_80 = arith.constant 1.000000e+00 : f32
    %234 = vector.broadcast %cst_80 : f32 to vector<8x128xf32>
    %235 = arith.subf %234, %233 : vector<8x128xf32>
    %cst_81 = arith.constant 0.000000e+00 : f32
    %236 = vector.broadcast %cst_81 : f32 to vector<8x128xf32>
    %237 = arith.maximumf %236, %235 : vector<8x128xf32>
    %238 = vector.extract_strided_slice %84 {offsets = [40, 0, 0], sizes = [4, 8, 128], strides = [1, 1, 1]} : vector<60x8x128xf32> to vector<4x8x128xf32>
    %239 = vector.shape_cast %237 : vector<8x128xf32> to vector<1x8x1x128xf32>
    %240 = vector.shape_cast %238 : vector<4x8x128xf32> to vector<4x1x8x128xf32>
    %241 = vector.broadcast %239 : vector<1x8x1x128xf32> to vector<4x8x8x128xf32>
    %242 = vector.broadcast %240 : vector<4x1x8x128xf32> to vector<4x8x8x128xf32>
    %243 = arith.mulf %241, %242 : vector<4x8x8x128xf32>
    %244 = arith.addf %230, %243 : vector<4x8x8x128xf32>
    %cst_82 = arith.constant 1.100000e+01 : f32
    %245 = vector.broadcast %cst_82 : f32 to vector<8x128xf32>
    %246 = arith.subf %90, %245 : vector<8x128xf32>
    %247 = math.absf %246 : vector<8x128xf32>
    %cst_83 = arith.constant 1.000000e+00 : f32
    %248 = vector.broadcast %cst_83 : f32 to vector<8x128xf32>
    %249 = arith.subf %248, %247 : vector<8x128xf32>
    %cst_84 = arith.constant 0.000000e+00 : f32
    %250 = vector.broadcast %cst_84 : f32 to vector<8x128xf32>
    %251 = arith.maximumf %250, %249 : vector<8x128xf32>
    %252 = vector.extract_strided_slice %84 {offsets = [44, 0, 0], sizes = [4, 8, 128], strides = [1, 1, 1]} : vector<60x8x128xf32> to vector<4x8x128xf32>
    %253 = vector.shape_cast %251 : vector<8x128xf32> to vector<1x8x1x128xf32>
    %254 = vector.shape_cast %252 : vector<4x8x128xf32> to vector<4x1x8x128xf32>
    %255 = vector.broadcast %253 : vector<1x8x1x128xf32> to vector<4x8x8x128xf32>
    %256 = vector.broadcast %254 : vector<4x1x8x128xf32> to vector<4x8x8x128xf32>
    %257 = arith.mulf %255, %256 : vector<4x8x8x128xf32>
    %258 = arith.addf %244, %257 : vector<4x8x8x128xf32>
    %cst_85 = arith.constant 1.200000e+01 : f32
    %259 = vector.broadcast %cst_85 : f32 to vector<8x128xf32>
    %260 = arith.subf %90, %259 : vector<8x128xf32>
    %261 = math.absf %260 : vector<8x128xf32>
    %cst_86 = arith.constant 1.000000e+00 : f32
    %262 = vector.broadcast %cst_86 : f32 to vector<8x128xf32>
    %263 = arith.subf %262, %261 : vector<8x128xf32>
    %cst_87 = arith.constant 0.000000e+00 : f32
    %264 = vector.broadcast %cst_87 : f32 to vector<8x128xf32>
    %265 = arith.maximumf %264, %263 : vector<8x128xf32>
    %266 = vector.extract_strided_slice %84 {offsets = [48, 0, 0], sizes = [4, 8, 128], strides = [1, 1, 1]} : vector<60x8x128xf32> to vector<4x8x128xf32>
    %267 = vector.shape_cast %265 : vector<8x128xf32> to vector<1x8x1x128xf32>
    %268 = vector.shape_cast %266 : vector<4x8x128xf32> to vector<4x1x8x128xf32>
    %269 = vector.broadcast %267 : vector<1x8x1x128xf32> to vector<4x8x8x128xf32>
    %270 = vector.broadcast %268 : vector<4x1x8x128xf32> to vector<4x8x8x128xf32>
    %271 = arith.mulf %269, %270 : vector<4x8x8x128xf32>
    %272 = arith.addf %258, %271 : vector<4x8x8x128xf32>
    %cst_88 = arith.constant 1.300000e+01 : f32
    %273 = vector.broadcast %cst_88 : f32 to vector<8x128xf32>
    %274 = arith.subf %90, %273 : vector<8x128xf32>
    %275 = math.absf %274 : vector<8x128xf32>
    %cst_89 = arith.constant 1.000000e+00 : f32
    %276 = vector.broadcast %cst_89 : f32 to vector<8x128xf32>
    %277 = arith.subf %276, %275 : vector<8x128xf32>
    %cst_90 = arith.constant 0.000000e+00 : f32
    %278 = vector.broadcast %cst_90 : f32 to vector<8x128xf32>
    %279 = arith.maximumf %278, %277 : vector<8x128xf32>
    %280 = vector.extract_strided_slice %84 {offsets = [52, 0, 0], sizes = [4, 8, 128], strides = [1, 1, 1]} : vector<60x8x128xf32> to vector<4x8x128xf32>
    %281 = vector.shape_cast %279 : vector<8x128xf32> to vector<1x8x1x128xf32>
    %282 = vector.shape_cast %280 : vector<4x8x128xf32> to vector<4x1x8x128xf32>
    %283 = vector.broadcast %281 : vector<1x8x1x128xf32> to vector<4x8x8x128xf32>
    %284 = vector.broadcast %282 : vector<4x1x8x128xf32> to vector<4x8x8x128xf32>
    %285 = arith.mulf %283, %284 : vector<4x8x8x128xf32>
    %286 = arith.addf %272, %285 : vector<4x8x8x128xf32>
    %cst_91 = arith.constant 1.400000e+01 : f32
    %287 = vector.broadcast %cst_91 : f32 to vector<8x128xf32>
    %288 = arith.subf %90, %287 : vector<8x128xf32>
    %289 = math.absf %288 : vector<8x128xf32>
    %cst_92 = arith.constant 1.000000e+00 : f32
    %290 = vector.broadcast %cst_92 : f32 to vector<8x128xf32>
    %291 = arith.subf %290, %289 : vector<8x128xf32>
    %cst_93 = arith.constant 0.000000e+00 : f32
    %292 = vector.broadcast %cst_93 : f32 to vector<8x128xf32>
    %293 = arith.maximumf %292, %291 : vector<8x128xf32>
    %294 = vector.extract_strided_slice %84 {offsets = [56, 0, 0], sizes = [4, 8, 128], strides = [1, 1, 1]} : vector<60x8x128xf32> to vector<4x8x128xf32>
    %295 = vector.shape_cast %293 : vector<8x128xf32> to vector<1x8x1x128xf32>
    %296 = vector.shape_cast %294 : vector<4x8x128xf32> to vector<4x1x8x128xf32>
    %297 = vector.broadcast %295 : vector<1x8x1x128xf32> to vector<4x8x8x128xf32>
    %298 = vector.broadcast %296 : vector<4x1x8x128xf32> to vector<4x8x8x128xf32>
    %299 = arith.mulf %297, %298 : vector<4x8x8x128xf32>
    %300 = arith.addf %286, %299 : vector<4x8x8x128xf32>
    %301 = vector.shape_cast %300 : vector<4x8x8x128xf32> to vector<4x64x128xf32>
    %cst_94 = arith.constant dense<0xFF800000> : vector<4x64xf32>
    %302 = vector.multi_reduction <maximumf>, %301, %cst_94 [2] : vector<4x64x128xf32> to vector<4x64xf32>
    %303 = vector.shape_cast %302 : vector<4x64xf32> to vector<4x64x1xf32>
    %304 = vector.broadcast %303 : vector<4x64x1xf32> to vector<4x64x128xf32>
    %305 = arith.subf %301, %304 : vector<4x64x128xf32>
    %306 = math.exp %305 : vector<4x64x128xf32>
    %307 = vector.shape_cast %5 : vector<1x128xf32> to vector<1x1x128xf32>
    %308 = vector.broadcast %307 : vector<1x1x128xf32> to vector<4x64x128xf32>
    %309 = arith.mulf %306, %308 : vector<4x64x128xf32>
    %cst_95 = arith.constant dense<0.000000e+00> : vector<4x64xf32>
    %310 = vector.multi_reduction <add>, %309, %cst_95 [2] : vector<4x64x128xf32> to vector<4x64xf32>
    %311 = vector.shape_cast %310 : vector<4x64xf32> to vector<4x64x1xf32>
    %312 = vector.shape_cast %3 : vector<1x128xf32> to vector<1x1x128xf32>
    %313 = vector.broadcast %312 : vector<1x1x128xf32> to vector<4x64x128xf32>
    %314 = arith.mulf %306, %313 : vector<4x64x128xf32>
    %cst_96 = arith.constant dense<0.000000e+00> : vector<4x64xf32>
    %315 = vector.multi_reduction <add>, %314, %cst_96 [2] : vector<4x64x128xf32> to vector<4x64xf32>
    %316 = vector.shape_cast %315 : vector<4x64xf32> to vector<4x64x1xf32>
    %317 = tpu.reciprocal %311 : vector<4x64x1xf32> -> vector<4x64x1xf32>
    %318 = vector.shape_cast %5 : vector<1x128xf32> to vector<1x1x128xf32>
    %319 = vector.broadcast %317 : vector<4x64x1xf32> to vector<4x64x128xf32>
    %320 = vector.broadcast %318 : vector<1x1x128xf32> to vector<4x64x128xf32>
    %321 = arith.mulf %319, %320 : vector<4x64x128xf32>
    %322 = tpu.reciprocal %316 : vector<4x64x1xf32> -> vector<4x64x1xf32>
    %323 = vector.shape_cast %3 : vector<1x128xf32> to vector<1x1x128xf32>
    %324 = vector.broadcast %322 : vector<4x64x1xf32> to vector<4x64x128xf32>
    %325 = vector.broadcast %323 : vector<1x1x128xf32> to vector<4x64x128xf32>
    %326 = arith.mulf %324, %325 : vector<4x64x128xf32>
    %327 = arith.addf %321, %326 : vector<4x64x128xf32>
    %328 = arith.mulf %306, %327 : vector<4x64x128xf32>
    %cst_97 = arith.constant dense<0.000000e+00> : vector<4x16x64xf32>
    %329 = tpu.matmul %63, %328, %cst_97 {dimension_numbers = #tpu.dot_dimension_numbers<[2], [2], [1], [1], [0, 0, 0, 1, 1, 1], [0], [0]>} : vector<4x16x128xf32>, vector<4x64x128xf32>, vector<4x16x64xf32> -> vector<4x16x64xf32>
    %c0_98 = arith.constant 0 : index
    %c0_99 = arith.constant 0 : index
    %330 = vector.load %arg15[%c0_98, %c0_99] : memref<64x64xf32, #tpu.memory_space<vmem>>, vector<64x64xf32>
    %331 = vector.shape_cast %329 : vector<4x16x64xf32> to vector<64x64xf32>
    %cst_100 = arith.constant dense<0.000000e+00> : vector<64x64xf32>
    %332 = tpu.matmul %330, %331, %cst_100 {dimension_numbers = #tpu.dot_dimension_numbers<[1], [0], [0], [1], [0, 0, 1, 1], [], []>} : vector<64x64xf32>, vector<64x64xf32>, vector<64x64xf32> -> vector<64x64xf32>
    %c0_101 = arith.constant 0 : index
    %c0_102 = arith.constant 0 : index
    %333 = vector.load %arg16[%c0_101, %c0_102] : memref<64x1xf32, #tpu.memory_space<vmem>>, vector<64x1xf32>
    %334 = vector.broadcast %333 : vector<64x1xf32> to vector<64x64xf32>
    %335 = arith.addf %332, %334 : vector<64x64xf32>
    %c0_103 = arith.constant 0 : index
    %c0_104 = arith.constant 0 : index
    %336 = vector.load %arg17[%c0_103, %c0_104] : memref<64x64xf32, #tpu.memory_space<vmem>>, vector<64x64xf32>
    tpu.vector_store %arg17[%c0_103, %c0_104], %335 {strides = array<i32>} : memref<64x64xf32, #tpu.memory_space<vmem>>, vector<64x64xf32>,
    return
  }
}

</mosaic_0001>

<llo_original>
// kernel: squeeze.2
$region0: #{squeeze.2}
  %s0 = inlined_call_operand.vmem [shape: f32[2,8,8], index: 0, kind: input, shape index: {}]
  %s1 = inlined_call_operand.vmem [shape: f32[1,128], index: 1, kind: output, shape index: {}]
  $region1: #{squeeze.2} parent=0
    #allocation0 [shape = 'u8[4096]{0}', space=vmem, size = 0x1000, scoped, tag = 'scoped mem for output reshape']
    %v2 = vld [vmem:[%s0] sm:$0x1]
    %vm3 = vcmask 64512
    %4 = vst.msk [vmem:[#allocation0] sm:$0x1] %vm3, %v2
    %s5 = scalar_lea.vmem %s0, 15
    %v6 = vld [vmem:[%s5] sm:$0x1]
    %7 = vrot.lane.b32.xlu0 %v6, 120
    %v8 = vpop.permute.xlu0 %7
    %vm9 = vcmask 1048512
    %10 = vst.msk [vmem:[#allocation0] sm:$0x1] %vm9, %v8
    %s11 = scalar_lea.vmem %s0, 14
    %v12 = vld [vmem:[%s11] sm:$0x1]
    %13 = vrot.lane.b32.xlu0 %v12, 112
    %v14 = vpop.permute.xlu0 %13
    %vm15 = vcmask 982912
    %16 = vst.msk [vmem:[#allocation0] sm:$0x1] %vm15, %v14
    %s17 = scalar_lea.vmem %s0, 13
    %v18 = vld [vmem:[%s17] sm:$0x1]
    %19 = vrot.lane.b32.xlu0 %v18, 104
    %v20 = vpop.permute.xlu0 %19
    %vm21 = vcmask 917312
    %22 = vst.msk [vmem:[#allocation0] sm:$0x1] %vm21, %v20
    %s23 = scalar_lea.vmem %s0, 12
    %v24 = vld [vmem:[%s23] sm:$0x1]
    %25 = vrot.lane.b32.xlu0 %v24, 96
    %v26 = vpop.permute.xlu0 %25
    %vm27 = vcmask 851712
    %28 = vst.msk [vmem:[#allocation0] sm:$0x1] %vm27, %v26
    %s29 = scalar_lea.vmem %s0, 11
    %v30 = vld [vmem:[%s29] sm:$0x1]
    %31 = vrot.lane.b32.xlu0 %v30, 88
    %v32 = vpop.permute.xlu0 %31
    %vm33 = vcmask 786112
    %34 = vst.msk [vmem:[#allocation0] sm:$0x1] %vm33, %v32
    %s35 = scalar_lea.vmem %s0, 10
    %v36 = vld [vmem:[%s35] sm:$0x1]
    %37 = vrot.lane.b32.xlu0 %v36, 80
    %v38 = vpop.permute.xlu0 %37
    %vm39 = vcmask 720512
    %40 = vst.msk [vmem:[#allocation0] sm:$0x1] %vm39, %v38
    %s41 = scalar_lea.vmem %s0, 9
    %v42 = vld [vmem:[%s41] sm:$0x1]
    %43 = vrot.lane.b32.xlu0 %v42, 72
    %v44 = vpop.permute.xlu0 %43
    %vm45 = vcmask 654912
    %46 = vst.msk [vmem:[#allocation0] sm:$0x1] %vm45, %v44
    %s47 = scalar_lea.vmem %s0, 8
    %v48 = vld [vmem:[%s47] sm:$0x1]
    %49 = vrot.lane.b32.xlu0 %v48, 64
    %v50 = vpop.permute.xlu0 %49
    %vm51 = vcmask 589312
    %52 = vst.msk [vmem:[#allocation0] sm:$0x1] %vm51, %v50
    %s53 = scalar_lea.vmem %s0, 7
    %v54 = vld [vmem:[%s53] sm:$0x1]
    %55 = vrot.lane.b32.xlu0 %v54, 56
    %v56 = vpop.permute.xlu0 %55
    %vm57 = vcmask 523712
    %58 = vst.msk [vmem:[#allocation0] sm:$0x1] %vm57, %v56
    %s59 = scalar_lea.vmem %s0, 6
    %v60 = vld [vmem:[%s59] sm:$0x1]
    %61 = vrot.lane.b32.xlu0 %v60, 48
    %v62 = vpop.permute.xlu0 %61
    %vm63 = vcmask 458112
    %64 = vst.msk [vmem:[#allocation0] sm:$0x1] %vm63, %v62
    %s65 = scalar_lea.vmem %s0, 5
    %v66 = vld [vmem:[%s65] sm:$0x1]
    %67 = vrot.lane.b32.xlu0 %v66, 40
    %v68 = vpop.permute.xlu0 %67
    %vm69 = vcmask 392512
    %70 = vst.msk [vmem:[#allocation0] sm:$0x1] %vm69, %v68
    %s71 = scalar_lea.vmem %s0, 4
    %v72 = vld [vmem:[%s71] sm:$0x1]
    %73 = vrot.lane.b32.xlu0 %v72, 32
    %v74 = vpop.permute.xlu0 %73
    %vm75 = vcmask 326912
    %76 = vst.msk [vmem:[#allocation0] sm:$0x1] %vm75, %v74
    %s77 = scalar_lea.vmem %s0, 3
    %v78 = vld [vmem:[%s77] sm:$0x1]
    %79 = vrot.lane.b32.xlu0 %v78, 24
    %v80 = vpop.permute.xlu0 %79
    %vm81 = vcmask 261312
    %82 = vst.msk [vmem:[#allocation0] sm:$0x1] %vm81, %v80
    %s83 = scalar_lea.vmem %s0, 2
    %v84 = vld [vmem:[%s83] sm:$0x1]
    %85 = vrot.lane.b32.xlu0 %v84, 16
    %v86 = vpop.permute.xlu0 %85
    %vm87 = vcmask 195712
    %88 = vst.msk [vmem:[#allocation0] sm:$0x1] %vm87, %v86
    %s89 = scalar_lea.vmem %s0, 1
    %v90 = vld [vmem:[%s89] sm:$0x1]
    %91 = vrot.lane.b32.xlu0 %v90, 8
    %v92 = vpop.permute.xlu0 %91
    %vm93 = vcmask 130112
    %94 = vst.msk [vmem:[#allocation0] sm:$0x1] %vm93, %v92
    %s96 = ssub.s32 2, 1
    %v97 = vld [vmem:[#allocation0] sm:%s96]
    %s99 = ssub.s32 2, 1
    %100 = vst [vmem:[%s1] sm:%s99] %v97

// kernel: tile.26
$region0: #{tile.26}
  #allocation0 [shape = 's32[1]{0}', space=sflag, size = 0x4, scoped, tag = 'scoped memory for tile.26']
  %s0 = inlined_call_operand.vmem [shape: f32[32], index: 0, kind: input, shape index: {}]
  %s1 = inlined_call_operand.vmem [shape: f32[2,32], index: 1, kind: output, shape index: {}]
  // Predicated region
  $region2: #{tile.26} parent=0 // pred_check
    _
  $region3: #{tile.26} parent=0 // pred_check_branch
    %3 = sbr.rel (0) target = $region5
  $region4: #{tile.26} parent=0 // pred_region
    _
  $region5: #{tile.26} parent=0 // pred_fallthru
    _
  %v4 = vld [vmem:[%s0] ss:$0 sm:$0xff]
  %5 = vst [vmem:[%s1] sm:$0x3] %v4

// kernel: tile.0
$region0: #{tile.0}
  %s0 = inlined_call_operand.vmem [shape: f32[2,32], index: 0, kind: input, shape index: {}]
  %s1 = inlined_call_operand.vmem [shape: f32[64,1], index: 1, kind: output, shape index: {}]
  $region1: #{tile.0} parent=0
    #allocation0 [shape = 'u8[4096]{0}', space=vmem, size = 0x1000, scoped, tag = 'scoped mem for input reshape']
    %s3 = ssub.s32 4, 1
    %v4 = vld [vmem:[%s0] sm:%s3]
    %5 = vst [vmem:[#allocation0] sm:%s3] %v4
    %v6 = vld [vmem:[#allocation0] sm:$0x3]
    %vm7 = vcmask 7168
    %8 = vst.msk [vmem:[%s1] sm:$0x1] %vm7, %v6
    %s9 = scalar_lea.vmem %s1, 31
    %10 = vst.msk [vmem:[%s9] sm:$0x2] %vm7, %v6
    %v11 = vld [vmem:[#allocation0] sm:$0x3]
    %12 = vrot.lane.b32.xlu0 %v11, 127
    %v13 = vpop.permute.xlu0 %12
    %vm14 = vcmask 7168
    %s15 = scalar_lea.vmem %s1, 1
    %16 = vst.msk [vmem:[%s15] sm:$0x1] %vm14, %v13
    %s17 = scalar_lea.vmem %s1, 32
    %18 = vst.msk [vmem:[%s17] sm:$0x2] %vm14, %v13
    %v19 = vld [vmem:[#allocation0] sm:$0x3]
    %20 = vrot.lane.b32.xlu0 %v19, 126
    %v21 = vpop.permute.xlu0 %20
    %vm22 = vcmask 7168
    %s23 = scalar_lea.vmem %s1, 2
    %24 = vst.msk [vmem:[%s23] sm:$0x1] %vm22, %v21
    %s25 = scalar_lea.vmem %s1, 33
    %26 = vst.msk [vmem:[%s25] sm:$0x2] %vm22, %v21
    %v27 = vld [vmem:[#allocation0] sm:$0x3]
    %28 = vrot.lane.b32.xlu0 %v27, 125
    %v29 = vpop.permute.xlu0 %28
    %vm30 = vcmask 7168
    %s31 = scalar_lea.vmem %s1, 3
    %32 = vst.msk [vmem:[%s31] sm:$0x1] %vm30, %v29
    %s33 = scalar_lea.vmem %s1, 34
    %34 = vst.msk [vmem:[%s33] sm:$0x2] %vm30, %v29
    %v35 = vld [vmem:[#allocation0] sm:$0x3]
    %36 = vrot.lane.b32.xlu0 %v35, 124
    %v37 = vpop.permute.xlu0 %36
    %vm38 = vcmask 7168
    %s39 = scalar_lea.vmem %s1, 4
    %40 = vst.msk [vmem:[%s39] sm:$0x1] %vm38, %v37
    %s41 = scalar_lea.vmem %s1, 35
    %42 = vst.msk [vmem:[%s41] sm:$0x2] %vm38, %v37
    %v43 = vld [vmem:[#allocation0] sm:$0x3]
    %44 = vrot.lane.b32.xlu0 %v43, 123
    %v45 = vpop.permute.xlu0 %44
    %vm46 = vcmask 7168
    %s47 = scalar_lea.vmem %s1, 5
    %48 = vst.msk [vmem:[%s47] sm:$0x1] %vm46, %v45
    %s49 = scalar_lea.vmem %s1, 36
    %50 = vst.msk [vmem:[%s49] sm:$0x2] %vm46, %v45
    %v51 = vld [vmem:[#allocation0] sm:$0x3]
    %52 = vrot.lane.b32.xlu0 %v51, 122
    %v53 = vpop.permute.xlu0 %52
    %vm54 = vcmask 7168
    %s55 = scalar_lea.vmem %s1, 6
    %56 = vst.msk [vmem:[%s55] sm:$0x1] %vm54, %v53
    %s57 = scalar_lea.vmem %s1, 37
    %58 = vst.msk [vmem:[%s57] sm:$0x2] %vm54, %v53
    %v59 = vld [vmem:[#allocation0] sm:$0x3]
    %60 = vrot.lane.b32.xlu0 %v59, 121
    %v61 = vpop.permute.xlu0 %60
    %vm62 = vcmask 7168
    %s63 = scalar_lea.vmem %s1, 7
    %64 = vst.msk [vmem:[%s63] sm:$0x1] %vm62, %v61
    %s65 = scalar_lea.vmem %s1, 38
    %66 = vst.msk [vmem:[%s65] sm:$0x2] %vm62, %v61
    %v67 = vld [vmem:[#allocation0] sm:$0x3]
    %68 = vrot.lane.b32.xlu0 %v67, 120
    %v69 = vpop.permute.xlu0 %68
    %vm70 = vcmask 7168
    %s71 = scalar_lea.vmem %s1, 8
    %72 = vst.msk [vmem:[%s71] sm:$0x1] %vm70, %v69
    %s73 = scalar_lea.vmem %s1, 39
    %74 = vst.msk [vmem:[%s73] sm:$0x2] %vm70, %v69
    %v75 = vld [vmem:[#allocation0] sm:$0x3]
    %76 = vrot.lane.b32.xlu0 %v75, 119
    %v77 = vpop.permute.xlu0 %76
    %vm78 = vcmask 7168
    %s79 = scalar_lea.vmem %s1, 9
    %80 = vst.msk [vmem:[%s79] sm:$0x1] %vm78, %v77
    %s81 = scalar_lea.vmem %s1, 40
    %82 = vst.msk [vmem:[%s81] sm:$0x2] %vm78, %v77
    %v83 = vld [vmem:[#allocation0] sm:$0x3]
    %84 = vrot.lane.b32.xlu0 %v83, 118
    %v85 = vpop.permute.xlu0 %84
    %vm86 = vcmask 7168
    %s87 = scalar_lea.vmem %s1, 10
    %88 = vst.msk [vmem:[%s87] sm:$0x1] %vm86, %v85
    %s89 = scalar_lea.vmem %s1, 41
    %90 = vst.msk [vmem:[%s89] sm:$0x2] %vm86, %v85
    %v91 = vld [vmem:[#allocation0] sm:$0x3]
    %92 = vrot.lane.b32.xlu0 %v91, 117
    %v93 = vpop.permute.xlu0 %92
    %vm94 = vcmask 7168
    %s95 = scalar_lea.vmem %s1, 11
    %96 = vst.msk [vmem:[%s95] sm:$0x1] %vm94, %v93
    %s97 = scalar_lea.vmem %s1, 42
    %98 = vst.msk [vmem:[%s97] sm:$0x2] %vm94, %v93
    %v99 = vld [vmem:[#allocation0] sm:$0x3]
    %100 = vrot.lane.b32.xlu0 %v99, 116
    %v101 = vpop.permute.xlu0 %100
    %vm102 = vcmask 7168
    %s103 = scalar_lea.vmem %s1, 12
    %104 = vst.msk [vmem:[%s103] sm:$0x1] %vm102, %v101
    %s105 = scalar_lea.vmem %s1, 43
    %106 = vst.msk [vmem:[%s105] sm:$0x2] %vm102, %v101
    %v107 = vld [vmem:[#allocation0] sm:$0x3]
    %108 = vrot.lane.b32.xlu0 %v107, 115
    %v109 = vpop.permute.xlu0 %108
    %vm110 = vcmask 7168
    %s111 = scalar_lea.vmem %s1, 13
    %112 = vst.msk [vmem:[%s111] sm:$0x1] %vm110, %v109
    %s113 = scalar_lea.vmem %s1, 44
    %114 = vst.msk [vmem:[%s113] sm:$0x2] %vm110, %v109
    %v115 = vld [vmem:[#allocation0] sm:$0x3]
    %116 = vrot.lane.b32.xlu0 %v115, 114
    %v117 = vpop.permute.xlu0 %116
    %vm118 = vcmask 7168
    %s119 = scalar_lea.vmem %s1, 14
    %120 = vst.msk [vmem:[%s119] sm:$0x1] %vm118, %v117
    %s121 = scalar_lea.vmem %s1, 45
    %122 = vst.msk [vmem:[%s121] sm:$0x2] %vm118, %v117
    %v123 = vld [vmem:[#allocation0] sm:$0x3]
    %124 = vrot.lane.b32.xlu0 %v123, 113
    %v125 = vpop.permute.xlu0 %124
    %vm126 = vcmask 7168
    %s127 = scalar_lea.vmem %s1, 15
    %128 = vst.msk [vmem:[%s127] sm:$0x1] %vm126, %v125
    %s129 = scalar_lea.vmem %s1, 46
    %130 = vst.msk [vmem:[%s129] sm:$0x2] %vm126, %v125
    %v131 = vld [vmem:[#allocation0] sm:$0x3]
    %132 = vrot.lane.b32.xlu0 %v131, 112
    %v133 = vpop.permute.xlu0 %132
    %vm134 = vcmask 7168
    %s135 = scalar_lea.vmem %s1, 16
    %136 = vst.msk [vmem:[%s135] sm:$0x1] %vm134, %v133
    %s137 = scalar_lea.vmem %s1, 47
    %138 = vst.msk [vmem:[%s137] sm:$0x2] %vm134, %v133
    %v139 = vld [vmem:[#allocation0] sm:$0x3]
    %140 = vrot.lane.b32.xlu0 %v139, 111
    %v141 = vpop.permute.xlu0 %140
    %vm142 = vcmask 7168
    %s143 = scalar_lea.vmem %s1, 17
    %144 = vst.msk [vmem:[%s143] sm:$0x1] %vm142, %v141
    %s145 = scalar_lea.vmem %s1, 48
    %146 = vst.msk [vmem:[%s145] sm:$0x2] %vm142, %v141
    %v147 = vld [vmem:[#allocation0] sm:$0x3]
    %148 = vrot.lane.b32.xlu0 %v147, 110
    %v149 = vpop.permute.xlu0 %148
    %vm150 = vcmask 7168
    %s151 = scalar_lea.vmem %s1, 18
    %152 = vst.msk [vmem:[%s151] sm:$0x1] %vm150, %v149
    %s153 = scalar_lea.vmem %s1, 49
    %154 = vst.msk [vmem:[%s153] sm:$0x2] %vm150, %v149
    %v155 = vld [vmem:[#allocation0] sm:$0x3]
    %156 = vrot.lane.b32.xlu0 %v155, 109
    %v157 = vpop.permute.xlu0 %156
    %vm158 = vcmask 7168
    %s159 = scalar_lea.vmem %s1, 19
    %160 = vst.msk [vmem:[%s159] sm:$0x1] %vm158, %v157
    %s161 = scalar_lea.vmem %s1, 50
    %162 = vst.msk [vmem:[%s161] sm:$0x2] %vm158, %v157
    %v163 = vld [vmem:[#allocation0] sm:$0x3]
    %164 = vrot.lane.b32.xlu0 %v163, 108
    %v165 = vpop.permute.xlu0 %164
    %vm166 = vcmask 7168
    %s167 = scalar_lea.vmem %s1, 20
    %168 = vst.msk [vmem:[%s167] sm:$0x1] %vm166, %v165
    %s169 = scalar_lea.vmem %s1, 51
    %170 = vst.msk [vmem:[%s169] sm:$0x2] %vm166, %v165
    %v171 = vld [vmem:[#allocation0] sm:$0x3]
    %172 = vrot.lane.b32.xlu0 %v171, 107
    %v173 = vpop.permute.xlu0 %172
    %vm174 = vcmask 7168
    %s175 = scalar_lea.vmem %s1, 21
    %176 = vst.msk [vmem:[%s175] sm:$0x1] %vm174, %v173
    %s177 = scalar_lea.vmem %s1, 52
    %178 = vst.msk [vmem:[%s177] sm:$0x2] %vm174, %v173
    %v179 = vld [vmem:[#allocation0] sm:$0x3]
    %180 = vrot.lane.b32.xlu0 %v179, 106
    %v181 = vpop.permute.xlu0 %180
    %vm182 = vcmask 7168
    %s183 = scalar_lea.vmem %s1, 22
    %184 = vst.msk [vmem:[%s183] sm:$0x1] %vm182, %v181
    %s185 = scalar_lea.vmem %s1, 53
    %186 = vst.msk [vmem:[%s185] sm:$0x2] %vm182, %v181
    %v187 = vld [vmem:[#allocation0] sm:$0x3]
    %188 = vrot.lane.b32.xlu0 %v187, 105
    %v189 = vpop.permute.xlu0 %188
    %vm190 = vcmask 7168
    %s191 = scalar_lea.vmem %s1, 23
    %192 = vst.msk [vmem:[%s191] sm:$0x1] %vm190, %v189
    %s193 = scalar_lea.vmem %s1, 54
    %194 = vst.msk [vmem:[%s193] sm:$0x2] %vm190, %v189
    %v195 = vld [vmem:[#allocation0] sm:$0x3]
    %196 = vrot.lane.b32.xlu0 %v195, 104
    %v197 = vpop.permute.xlu0 %196
    %vm198 = vcmask 7168
    %s199 = scalar_lea.vmem %s1, 24
    %200 = vst.msk [vmem:[%s199] sm:$0x1] %vm198, %v197
    %s201 = scalar_lea.vmem %s1, 55
    %202 = vst.msk [vmem:[%s201] sm:$0x2] %vm198, %v197
    %v203 = vld [vmem:[#allocation0] sm:$0x3]
    %204 = vrot.lane.b32.xlu0 %v203, 103
    %v205 = vpop.permute.xlu0 %204
    %vm206 = vcmask 7168
    %s207 = scalar_lea.vmem %s1, 25
    %208 = vst.msk [vmem:[%s207] sm:$0x1] %vm206, %v205
    %s209 = scalar_lea.vmem %s1, 56
    %210 = vst.msk [vmem:[%s209] sm:$0x2] %vm206, %v205
    %v211 = vld [vmem:[#allocation0] sm:$0x3]
    %212 = vrot.lane.b32.xlu0 %v211, 102
    %v213 = vpop.permute.xlu0 %212
    %vm214 = vcmask 7168
    %s215 = scalar_lea.vmem %s1, 26
    %216 = vst.msk [vmem:[%s215] sm:$0x1] %vm214, %v213
    %s217 = scalar_lea.vmem %s1, 57
    %218 = vst.msk [vmem:[%s217] sm:$0x2] %vm214, %v213
    %v219 = vld [vmem:[#allocation0] sm:$0x3]
    %220 = vrot.lane.b32.xlu0 %v219, 101
    %v221 = vpop.permute.xlu0 %220
    %vm222 = vcmask 7168
    %s223 = scalar_lea.vmem %s1, 27
    %224 = vst.msk [vmem:[%s223] sm:$0x1] %vm222, %v221
    %s225 = scalar_lea.vmem %s1, 58
    %226 = vst.msk [vmem:[%s225] sm:$0x2] %vm222, %v221
    %v227 = vld [vmem:[#allocation0] sm:$0x3]
    %228 = vrot.lane.b32.xlu0 %v227, 100
    %v229 = vpop.permute.xlu0 %228
    %vm230 = vcmask 7168
    %s231 = scalar_lea.vmem %s1, 28
    %232 = vst.msk [vmem:[%s231] sm:$0x1] %vm230, %v229
    %s233 = scalar_lea.vmem %s1, 59
    %234 = vst.msk [vmem:[%s233] sm:$0x2] %vm230, %v229
    %v235 = vld [vmem:[#allocation0] sm:$0x3]
    %236 = vrot.lane.b32.xlu0 %v235, 99
    %v237 = vpop.permute.xlu0 %236
    %vm238 = vcmask 7168
    %s239 = scalar_lea.vmem %s1, 29
    %240 = vst.msk [vmem:[%s239] sm:$0x1] %vm238, %v237
    %s241 = scalar_lea.vmem %s1, 60
    %242 = vst.msk [vmem:[%s241] sm:$0x2] %vm238, %v237
    %v243 = vld [vmem:[#allocation0] sm:$0x3]
    %244 = vrot.lane.b32.xlu0 %v243, 98
    %v245 = vpop.permute.xlu0 %244
    %vm246 = vcmask 7168
    %s247 = scalar_lea.vmem %s1, 30
    %248 = vst.msk [vmem:[%s247] sm:$0x1] %vm246, %v245
    %s249 = scalar_lea.vmem %s1, 61
    %250 = vst.msk [vmem:[%s249] sm:$0x2] %vm246, %v245
    %v251 = vld [vmem:[#allocation0] sm:$0x3]
    %252 = vrot.lane.b32.xlu0 %v251, 97
    %v253 = vpop.permute.xlu0 %252
    %vm254 = vcmask 7168
    %s255 = scalar_lea.vmem %s1, 31
    %256 = vst.msk [vmem:[%s255] sm:$0x1] %vm254, %v253
    %s257 = scalar_lea.vmem %s1, 62
    %258 = vst.msk [vmem:[%s257] sm:$0x2] %vm254, %v253

// kernel: tsa_forward.1
$region0: #{tsa_forward.1}
  #allocation0 [shape = 'u32[]', space=smem, size = 0x4, offset = 0x4, fixed_abs, tag = 'smem constant byte address 0x4 - core index']
  #allocation1 [shape = 'u32[72,128]{1,0:T(1,128)}', space=vmem, size = 0x9000, scoped, tag = 'internal scratch']
  %s0 = inlined_call_operand.vmem [shape: f32[32,128], index: 0, kind: input, shape index: {}]
  %s1 = inlined_call_operand.vmem [shape: f32[4,16,64], index: 1, kind: input, shape index: {}]
  %s2 = inlined_call_operand.vmem [shape: f32[1,128], index: 2, kind: input, shape index: {}]
  %s3 = inlined_call_operand.vmem [shape: f32[1,1024], index: 3, kind: input, shape index: {}]
  %s4 = inlined_call_operand.vmem [shape: f32[128,1], index: 4, kind: input, shape index: {}]
  %s5 = inlined_call_operand.vmem [shape: f32[128,1], index: 5, kind: input, shape index: {}]
  %s6 = inlined_call_operand.vmem [shape: f32[1,128], index: 6, kind: input, shape index: {}]
  %s7 = inlined_call_operand.vmem [shape: f32[8,1], index: 7, kind: input, shape index: {}]
  %s8 = inlined_call_operand.vmem [shape: f32[15,1], index: 8, kind: input, shape index: {}]
  %s9 = inlined_call_operand.vmem [shape: f32[1,1024], index: 9, kind: input, shape index: {}]
  %s10 = inlined_call_operand.vmem [shape: f32[32,32], index: 10, kind: input, shape index: {}]
  %s11 = inlined_call_operand.vmem [shape: f32[32,1], index: 11, kind: input, shape index: {}]
  %s12 = inlined_call_operand.vmem [shape: f32[32,32], index: 12, kind: input, shape index: {}]
  %s13 = inlined_call_operand.vmem [shape: f32[32,1], index: 13, kind: input, shape index: {}]
  %s14 = inlined_call_operand.vmem [shape: f32[60,15], index: 14, kind: input, shape index: {}]
  %s15 = inlined_call_operand.vmem [shape: f32[64,64], index: 15, kind: input, shape index: {}]
  %s16 = inlined_call_operand.vmem [shape: f32[64,1], index: 16, kind: input, shape index: {}]
  %s17 = inlined_call_operand.vmem [shape: f32[64,64], index: 17, kind: output, shape index: {}]
  %s18 = sld [smem:[#allocation0]]
  $region78: #{tsa_forward.1} parent=0
    _
  %s20 = ssub.s32 1, %s18
  %s21 = scalar_select 0, %s20, %s18
  // Predicated region
  $region2: #{tsa_forward.1} parent=0 // pred_check
    _
  $region3: #{tsa_forward.1} parent=0 // pred_check_branch
    %23 = sbr.rel (0) target = $region5
  $region4: #{tsa_forward.1} parent=0 // pred_region
    _
  $region5: #{tsa_forward.1} parent=0 // pred_fallthru
    _
  // Predicated region
  $region6: #{tsa_forward.1} parent=0 // pred_check
    _
  $region7: #{tsa_forward.1} parent=0 // pred_check_branch
    %25 = sbr.rel (0) target = $region9
  $region8: #{tsa_forward.1} parent=0 // pred_region
    _
  $region9: #{tsa_forward.1} parent=0 // pred_fallthru
    _
  // Predicated region
  $region10: #{tsa_forward.1} parent=0 // pred_check
    _
  $region11: #{tsa_forward.1} parent=0 // pred_check_branch
    %27 = sbr.rel (0) target = $region13
  $region12: #{tsa_forward.1} parent=0 // pred_region
    _
  $region13: #{tsa_forward.1} parent=0 // pred_fallthru
    _
  // Predicated region
  $region14: #{tsa_forward.1} parent=0 // pred_check
    _
  $region15: #{tsa_forward.1} parent=0 // pred_check_branch
    %29 = sbr.rel (0) target = $region17
  $region16: #{tsa_forward.1} parent=0 // pred_region
    _
  $region17: #{tsa_forward.1} parent=0 // pred_fallthru
    _
  // Predicated region
  $region18: #{tsa_forward.1} parent=0 // pred_check
    _
  $region19: #{tsa_forward.1} parent=0 // pred_check_branch
    %31 = sbr.rel (0) target = $region21
  $region20: #{tsa_forward.1} parent=0 // pred_region
    _
  $region21: #{tsa_forward.1} parent=0 // pred_fallthru
    _
  // Predicated region
  $region22: #{tsa_forward.1} parent=0 // pred_check
    _
  $region23: #{tsa_forward.1} parent=0 // pred_check_branch
    %33 = sbr.rel (0) target = $region25
  $region24: #{tsa_forward.1} parent=0 // pred_region
    _
  $region25: #{tsa_forward.1} parent=0 // pred_fallthru
    _
  // Predicated region
  $region26: #{tsa_forward.1} parent=0 // pred_check
    _
  $region27: #{tsa_forward.1} parent=0 // pred_check_branch
    %35 = sbr.rel (0) target = $region29
  $region28: #{tsa_forward.1} parent=0 // pred_region
    _
  $region29: #{tsa_forward.1} parent=0 // pred_fallthru
    _
  // Predicated region
  $region30: #{tsa_forward.1} parent=0 // pred_check
    _
  $region31: #{tsa_forward.1} parent=0 // pred_check_branch
    %37 = sbr.rel (0) target = $region33
  $region32: #{tsa_forward.1} parent=0 // pred_region
    _
  $region33: #{tsa_forward.1} parent=0 // pred_fallthru
    _
  // Predicated region
  $region34: #{tsa_forward.1} parent=0 // pred_check
    _
  $region35: #{tsa_forward.1} parent=0 // pred_check_branch
    %39 = sbr.rel (0) target = $region37
  $region36: #{tsa_forward.1} parent=0 // pred_region
    _
  $region37: #{tsa_forward.1} parent=0 // pred_fallthru
    _
  // Predicated region
  $region38: #{tsa_forward.1} parent=0 // pred_check
    _
  $region39: #{tsa_forward.1} parent=0 // pred_check_branch
    %41 = sbr.rel (0) target = $region41
  $region40: #{tsa_forward.1} parent=0 // pred_region
    _
  $region41: #{tsa_forward.1} parent=0 // pred_fallthru
    _
  // Predicated region
  $region42: #{tsa_forward.1} parent=0 // pred_check
    _
  $region43: #{tsa_forward.1} parent=0 // pred_check_branch
    %43 = sbr.rel (0) target = $region45
  $region44: #{tsa_forward.1} parent=0 // pred_region
    _
  $region45: #{tsa_forward.1} parent=0 // pred_fallthru
    _
  // Predicated region
  $region46: #{tsa_forward.1} parent=0 // pred_check
    _
  $region47: #{tsa_forward.1} parent=0 // pred_check_branch
    %45 = sbr.rel (0) target = $region49
  $region48: #{tsa_forward.1} parent=0 // pred_region
    _
  $region49: #{tsa_forward.1} parent=0 // pred_fallthru
    _
  // Predicated region
  $region50: #{tsa_forward.1} parent=0 // pred_check
    _
  $region51: #{tsa_forward.1} parent=0 // pred_check_branch
    %47 = sbr.rel (0) target = $region53
  $region52: #{tsa_forward.1} parent=0 // pred_region
    _
  $region53: #{tsa_forward.1} parent=0 // pred_fallthru
    _
  // Predicated region
  $region54: #{tsa_forward.1} parent=0 // pred_check
    _
  $region55: #{tsa_forward.1} parent=0 // pred_check_branch
    %49 = sbr.rel (0) target = $region57
  $region56: #{tsa_forward.1} parent=0 // pred_region
    _
  $region57: #{tsa_forward.1} parent=0 // pred_fallthru
    _
  // Predicated region
  $region58: #{tsa_forward.1} parent=0 // pred_check
    _
  $region59: #{tsa_forward.1} parent=0 // pred_check_branch
    %51 = sbr.rel (0) target = $region61
  $region60: #{tsa_forward.1} parent=0 // pred_region
    _
  $region61: #{tsa_forward.1} parent=0 // pred_fallthru
    _
  // Predicated region
  $region62: #{tsa_forward.1} parent=0 // pred_check
    _
  $region63: #{tsa_forward.1} parent=0 // pred_check_branch
    %53 = sbr.rel (0) target = $region65
  $region64: #{tsa_forward.1} parent=0 // pred_region
    _
  $region65: #{tsa_forward.1} parent=0 // pred_fallthru
    _
  // Predicated region
  $region66: #{tsa_forward.1} parent=0 // pred_check
    _
  $region67: #{tsa_forward.1} parent=0 // pred_check_branch
    %55 = sbr.rel (0) target = $region69
  $region68: #{tsa_forward.1} parent=0 // pred_region
    _
  $region69: #{tsa_forward.1} parent=0 // pred_fallthru
    _
  %v56 = vld [vmem:[%s2] sm:$0x1]
  %v57 = vld [vmem:[%s3] sm:$0xff]
  %v58 = vld [vmem:[%s6] sm:$0x1]
  %v59 = vsub.f32 1.0, %v58
  %v60 = vadd.f32 %v56, 1.0
  %v61 = vmul.f32 %v60, 3.5
  %v62 = vmul.f32 %v58, 100.0
  %v63 = vadd.f32 %v61, %v62
  %v64 = vadd.f32 %v57, 1.0
  %v65 = vmul.f32 %v64, 3.5
  %v66 = vld [vmem:[%s4] sm:$0xff]
  %v67 = vld [vmem:[%s4 + $0x8] sm:$0xff]
  %v68 = vld [vmem:[%s4 + $0x10] sm:$0xff]
  %v69 = vld [vmem:[%s4 + $0x18] sm:$0xff]
  %v70 = vld [vmem:[%s4 + $0x20] sm:$0xff]
  %v71 = vld [vmem:[%s4 + $0x28] sm:$0xff]
  %v72 = vld [vmem:[%s4 + $0x30] sm:$0xff]
  %v73 = vld [vmem:[%s4 + $0x38] sm:$0xff]
  %v74 = vld [vmem:[%s4 + $0x40] sm:$0xff]
  %v75 = vld [vmem:[%s4 + $0x48] sm:$0xff]
  %v76 = vld [vmem:[%s4 + $0x50] sm:$0xff]
  %v77 = vld [vmem:[%s4 + $0x58] sm:$0xff]
  %v78 = vld [vmem:[%s4 + $0x60] sm:$0xff]
  %v79 = vld [vmem:[%s4 + $0x68] sm:$0xff]
  %v80 = vld [vmem:[%s4 + $0x70] sm:$0xff]
  %v81 = vld [vmem:[%s4 + $0x78] sm:$0xff]
  %v83 = vperm.slane %v63, 0
  %86 = vset.pattern.permute.xlu0 0
  %87 = vperm.xlu0 %86, %v66
  %v88 = vpop.permute.xlu0 %87
  %91 = vset.pattern.permute.xlu0 0
  %92 = vperm.xlu0 %91, %v67
  %v93 = vpop.permute.xlu0 %92
  %96 = vset.pattern.permute.xlu0 0
  %97 = vperm.xlu0 %96, %v68
  %v98 = vpop.permute.xlu0 %97
  %101 = vset.pattern.permute.xlu0 0
  %102 = vperm.xlu0 %101, %v69
  %v103 = vpop.permute.xlu0 %102
  %106 = vset.pattern.permute.xlu0 0
  %107 = vperm.xlu0 %106, %v70
  %v108 = vpop.permute.xlu0 %107
  %111 = vset.pattern.permute.xlu0 0
  %112 = vperm.xlu0 %111, %v71
  %v113 = vpop.permute.xlu0 %112
  %116 = vset.pattern.permute.xlu0 0
  %117 = vperm.xlu0 %116, %v72
  %v118 = vpop.permute.xlu0 %117
  %121 = vset.pattern.permute.xlu0 0
  %122 = vperm.xlu0 %121, %v73
  %v123 = vpop.permute.xlu0 %122
  %126 = vset.pattern.permute.xlu0 0
  %127 = vperm.xlu0 %126, %v74
  %v128 = vpop.permute.xlu0 %127
  %131 = vset.pattern.permute.xlu0 0
  %132 = vperm.xlu0 %131, %v75
  %v133 = vpop.permute.xlu0 %132
  %136 = vset.pattern.permute.xlu0 0
  %137 = vperm.xlu0 %136, %v76
  %v138 = vpop.permute.xlu0 %137
  %141 = vset.pattern.permute.xlu0 0
  %142 = vperm.xlu0 %141, %v77
  %v143 = vpop.permute.xlu0 %142
  %146 = vset.pattern.permute.xlu0 0
  %147 = vperm.xlu0 %146, %v78
  %v148 = vpop.permute.xlu0 %147
  %151 = vset.pattern.permute.xlu0 0
  %152 = vperm.xlu0 %151, %v79
  %v153 = vpop.permute.xlu0 %152
  %156 = vset.pattern.permute.xlu0 0
  %157 = vperm.xlu0 %156, %v80
  %v158 = vpop.permute.xlu0 %157
  %161 = vset.pattern.permute.xlu0 0
  %162 = vperm.xlu0 %161, %v81
  %v163 = vpop.permute.xlu0 %162
  %v165 = vsub.f32 %v83, %v88
  %v166 = vsub.f32 %v83, %v93
  %v167 = vsub.f32 %v83, %v98
  %v168 = vsub.f32 %v83, %v103
  %v169 = vsub.f32 %v83, %v108
  %v170 = vsub.f32 %v83, %v113
  %v171 = vsub.f32 %v83, %v118
  %v172 = vsub.f32 %v83, %v123
  %v173 = vsub.f32 %v83, %v128
  %v174 = vsub.f32 %v83, %v133
  %v175 = vsub.f32 %v83, %v138
  %v176 = vsub.f32 %v83, %v143
  %v177 = vsub.f32 %v83, %v148
  %v178 = vsub.f32 %v83, %v153
  %v179 = vsub.f32 %v83, %v158
  %v180 = vsub.f32 %v83, %v163
  %v181 = vand.u32 2147483647, %v165
  %v182 = vand.u32 2147483647, %v166
  %v183 = vand.u32 2147483647, %v167
  %v184 = vand.u32 2147483647, %v168
  %v185 = vand.u32 2147483647, %v169
  %v186 = vand.u32 2147483647, %v170
  %v187 = vand.u32 2147483647, %v171
  %v188 = vand.u32 2147483647, %v172
  %v189 = vand.u32 2147483647, %v173
  %v190 = vand.u32 2147483647, %v174
  %v191 = vand.u32 2147483647, %v175
  %v192 = vand.u32 2147483647, %v176
  %v193 = vand.u32 2147483647, %v177
  %v194 = vand.u32 2147483647, %v178
  %v195 = vand.u32 2147483647, %v179
  %v196 = vand.u32 2147483647, %v180
  %v197 = vsub.f32 1.0, %v181
  %v198 = vsub.f32 1.0, %v182
  %v199 = vsub.f32 1.0, %v183
  %v200 = vsub.f32 1.0, %v184
  %v201 = vsub.f32 1.0, %v185
  %v202 = vsub.f32 1.0, %v186
  %v203 = vsub.f32 1.0, %v187
  %v204 = vsub.f32 1.0, %v188
  %v205 = vsub.f32 1.0, %v189
  %v206 = vsub.f32 1.0, %v190
  %v207 = vsub.f32 1.0, %v191
  %v208 = vsub.f32 1.0, %v192
  %v209 = vsub.f32 1.0, %v193
  %v210 = vsub.f32 1.0, %v194
  %v211 = vsub.f32 1.0, %v195
  %v212 = vsub.f32 1.0, %v196
  %v213 = vmax.f32 %v197, 0.0
  %v214 = vmax.f32 %v198, 0.0
  %v215 = vmax.f32 %v199, 0.0
  %v216 = vmax.f32 %v200, 0.0
  %v217 = vmax.f32 %v201, 0.0
  %v218 = vmax.f32 %v202, 0.0
  %v219 = vmax.f32 %v203, 0.0
  %v220 = vmax.f32 %v204, 0.0
  %v221 = vmax.f32 %v205, 0.0
  %v222 = vmax.f32 %v206, 0.0
  %v223 = vmax.f32 %v207, 0.0
  %v224 = vmax.f32 %v208, 0.0
  %v225 = vmax.f32 %v209, 0.0
  %v226 = vmax.f32 %v210, 0.0
  %v227 = vmax.f32 %v211, 0.0
  %v228 = vmax.f32 %v212, 0.0
  %v229 = vld [vmem:[%s5] sm:$0xff]
  %v230 = vld [vmem:[%s5 + $0x8] sm:$0xff]
  %v231 = vld [vmem:[%s5 + $0x10] sm:$0xff]
  %v232 = vld [vmem:[%s5 + $0x18] sm:$0xff]
  %v233 = vld [vmem:[%s5 + $0x20] sm:$0xff]
  %v234 = vld [vmem:[%s5 + $0x28] sm:$0xff]
  %v235 = vld [vmem:[%s5 + $0x30] sm:$0xff]
  %v236 = vld [vmem:[%s5 + $0x38] sm:$0xff]
  %v237 = vld [vmem:[%s5 + $0x40] sm:$0xff]
  %v238 = vld [vmem:[%s5 + $0x48] sm:$0xff]
  %v239 = vld [vmem:[%s5 + $0x50] sm:$0xff]
  %v240 = vld [vmem:[%s5 + $0x58] sm:$0xff]
  %v241 = vld [vmem:[%s5 + $0x60] sm:$0xff]
  %v242 = vld [vmem:[%s5 + $0x68] sm:$0xff]
  %v243 = vld [vmem:[%s5 + $0x70] sm:$0xff]
  %v244 = vld [vmem:[%s5 + $0x78] sm:$0xff]
  %v246 = vperm.slane %v65, 0
  %249 = vset.pattern.permute.xlu0 0
  %250 = vperm.xlu0 %249, %v229
  %v251 = vpop.permute.xlu0 %250
  %254 = vset.pattern.permute.xlu0 0
  %255 = vperm.xlu0 %254, %v230
  %v256 = vpop.permute.xlu0 %255
  %259 = vset.pattern.permute.xlu0 0
  %260 = vperm.xlu0 %259, %v231
  %v261 = vpop.permute.xlu0 %260
  %264 = vset.pattern.permute.xlu0 0
  %265 = vperm.xlu0 %264, %v232
  %v266 = vpop.permute.xlu0 %265
  %269 = vset.pattern.permute.xlu0 0
  %270 = vperm.xlu0 %269, %v233
  %v271 = vpop.permute.xlu0 %270
  %274 = vset.pattern.permute.xlu0 0
  %275 = vperm.xlu0 %274, %v234
  %v276 = vpop.permute.xlu0 %275
  %279 = vset.pattern.permute.xlu0 0
  %280 = vperm.xlu0 %279, %v235
  %v281 = vpop.permute.xlu0 %280
  %284 = vset.pattern.permute.xlu0 0
  %285 = vperm.xlu0 %284, %v236
  %v286 = vpop.permute.xlu0 %285
  %289 = vset.pattern.permute.xlu0 0
  %290 = vperm.xlu0 %289, %v237
  %v291 = vpop.permute.xlu0 %290
  %294 = vset.pattern.permute.xlu0 0
  %295 = vperm.xlu0 %294, %v238
  %v296 = vpop.permute.xlu0 %295
  %299 = vset.pattern.permute.xlu0 0
  %300 = vperm.xlu0 %299, %v239
  %v301 = vpop.permute.xlu0 %300
  %304 = vset.pattern.permute.xlu0 0
  %305 = vperm.xlu0 %304, %v240
  %v306 = vpop.permute.xlu0 %305
  %309 = vset.pattern.permute.xlu0 0
  %310 = vperm.xlu0 %309, %v241
  %v311 = vpop.permute.xlu0 %310
  %314 = vset.pattern.permute.xlu0 0
  %315 = vperm.xlu0 %314, %v242
  %v316 = vpop.permute.xlu0 %315
  %319 = vset.pattern.permute.xlu0 0
  %320 = vperm.xlu0 %319, %v243
  %v321 = vpop.permute.xlu0 %320
  %324 = vset.pattern.permute.xlu0 0
  %325 = vperm.xlu0 %324, %v244
  %v326 = vpop.permute.xlu0 %325
  %v328 = vsub.f32 %v246, %v251
  %v329 = vsub.f32 %v246, %v256
  %v330 = vsub.f32 %v246, %v261
  %v331 = vsub.f32 %v246, %v266
  %v332 = vsub.f32 %v246, %v271
  %v333 = vsub.f32 %v246, %v276
  %v334 = vsub.f32 %v246, %v281
  %v335 = vsub.f32 %v246, %v286
  %v336 = vsub.f32 %v246, %v291
  %v337 = vsub.f32 %v246, %v296
  %v338 = vsub.f32 %v246, %v301
  %v339 = vsub.f32 %v246, %v306
  %v340 = vsub.f32 %v246, %v311
  %v341 = vsub.f32 %v246, %v316
  %v342 = vsub.f32 %v246, %v321
  %v343 = vsub.f32 %v246, %v326
  %v344 = vand.u32 2147483647, %v328
  %v345 = vand.u32 2147483647, %v329
  %v346 = vand.u32 2147483647, %v330
  %v347 = vand.u32 2147483647, %v331
  %v348 = vand.u32 2147483647, %v332
  %v349 = vand.u32 2147483647, %v333
  %v350 = vand.u32 2147483647, %v334
  %v351 = vand.u32 2147483647, %v335
  %v352 = vand.u32 2147483647, %v336
  %v353 = vand.u32 2147483647, %v337
  %v354 = vand.u32 2147483647, %v338
  %v355 = vand.u32 2147483647, %v339
  %v356 = vand.u32 2147483647, %v340
  %v357 = vand.u32 2147483647, %v341
  %v358 = vand.u32 2147483647, %v342
  %v359 = vand.u32 2147483647, %v343
  %v360 = vsub.f32 1.0, %v344
  %v361 = vsub.f32 1.0, %v345
  %v362 = vsub.f32 1.0, %v346
  %v363 = vsub.f32 1.0, %v347
  %v364 = vsub.f32 1.0, %v348
  %v365 = vsub.f32 1.0, %v349
  %v366 = vsub.f32 1.0, %v350
  %v367 = vsub.f32 1.0, %v351
  %v368 = vsub.f32 1.0, %v352
  %v369 = vsub.f32 1.0, %v353
  %v370 = vsub.f32 1.0, %v354
  %v371 = vsub.f32 1.0, %v355
  %v372 = vsub.f32 1.0, %v356
  %v373 = vsub.f32 1.0, %v357
  %v374 = vsub.f32 1.0, %v358
  %v375 = vsub.f32 1.0, %v359
  %v376 = vmax.f32 %v360, 0.0
  %v377 = vmax.f32 %v361, 0.0
  %v378 = vmax.f32 %v362, 0.0
  %v379 = vmax.f32 %v363, 0.0
  %v380 = vmax.f32 %v364, 0.0
  %v381 = vmax.f32 %v365, 0.0
  %v382 = vmax.f32 %v366, 0.0
  %v383 = vmax.f32 %v367, 0.0
  %v384 = vmax.f32 %v368, 0.0
  %v385 = vmax.f32 %v369, 0.0
  %v386 = vmax.f32 %v370, 0.0
  %v387 = vmax.f32 %v371, 0.0
  %v388 = vmax.f32 %v372, 0.0
  %v389 = vmax.f32 %v373, 0.0
  %v390 = vmax.f32 %v374, 0.0
  %v391 = vmax.f32 %v375, 0.0
  %v392 = vld [vmem:[%s0] sm:$0xff]
  %v393 = vld [vmem:[%s0 + $0x8] sm:$0xff]
  %v394 = vld [vmem:[%s0 + $0x10] sm:$0xff]
  %v395 = vld [vmem:[%s0 + $0x18] sm:$0xff]
  %v396 = vmul.f32 %v213, %v376
  %v397 = vmul.f32 %v214, %v377
  %v398 = vmul.f32 %v215, %v378
  %v399 = vmul.f32 %v216, %v379
  %v400 = vmul.f32 %v217, %v380
  %v401 = vmul.f32 %v218, %v381
  %v402 = vmul.f32 %v219, %v382
  %v403 = vmul.f32 %v220, %v383
  %v404 = vmul.f32 %v221, %v384
  %v405 = vmul.f32 %v222, %v385
  %v406 = vmul.f32 %v223, %v386
  %v407 = vmul.f32 %v224, %v387
  %v408 = vmul.f32 %v225, %v388
  %v409 = vmul.f32 %v226, %v389
  %v410 = vmul.f32 %v227, %v390
  %v411 = vmul.f32 %v228, %v391
  %412 = vmatpush.msra.mxu0 %v411
  %413 = vmatpush.msra.mxu0 %v410
  %414 = vmatpush.msra.mxu0 %v409
  %415 = vmatpush.msra.mxu0 %v408
  %416 = vmatpush.msra.mxu0 %v407
  %417 = vmatpush.msra.mxu0 %v406
  %418 = vmatpush.msra.mxu0 %v405
  %419 = vmatpush.msra.mxu0 %v404
  %420 = vmatpush.msra.mxu0 %v403
  %421 = vmatpush.msra.mxu0 %v402
  %422 = vmatpush.msra.mxu0 %v401
  %423 = vmatpush.msra.mxu0 %v400
  %424 = vmatpush.msra.mxu0 %v399
  %425 = vmatpush.msra.mxu0 %v398
  %426 = vmatpush.msra.mxu0 %v397
  %427 = vmatpush.msra.mxu0 %v396
  %428 = vmatmul.f32.gmra.mxu0 %v392
  %v429 = vpop.f32.mrf.mxu0
  %v430 = vadd.f32 0.0, %v429
  %431 = vmatmul.f32.gmra.mxu0 %v393
  %v432 = vpop.f32.mrf.mxu0
  %v433 = vadd.f32 0.0, %v432
  %434 = vmatmul.f32.gmra.mxu0 %v394
  %v435 = vpop.f32.mrf.mxu0
  %v436 = vadd.f32 0.0, %v435
  %437 = vmatmul.f32.gmra.mxu0 %v395
  %v438 = vpop.f32.mrf.mxu0
  %v439 = vadd.f32 0.0, %v438
  %440 = vdwg.mxu0
  %v441 = vld [vmem:[%s10] sm:$0xff]
  %v442 = vld [vmem:[%s10 + $0x8] sm:$0xff]
  %v443 = vld [vmem:[%s10 + $0x10] sm:$0xff]
  %v444 = vld [vmem:[%s10 + $0x18] sm:$0xff]
  %v445 = vld [vmem:[%s11] sm:$0xff]
  %v446 = vld [vmem:[%s11 + $0x8] sm:$0xff]
  %v447 = vld [vmem:[%s11 + $0x10] sm:$0xff]
  %v448 = vld [vmem:[%s11 + $0x18] sm:$0xff]
  %450 = vset.pattern.permute.xlu0 0
  %451 = vperm.xlu0 %450, %v445
  %v452 = vpop.permute.xlu0 %451
  %455 = vset.pattern.permute.xlu0 0
  %456 = vperm.xlu0 %455, %v446
  %v457 = vpop.permute.xlu0 %456
  %460 = vset.pattern.permute.xlu0 0
  %461 = vperm.xlu0 %460, %v447
  %v462 = vpop.permute.xlu0 %461
  %465 = vset.pattern.permute.xlu0 0
  %466 = vperm.xlu0 %465, %v448
  %v467 = vpop.permute.xlu0 %466
  %vm469 = vcmask 261120
  %v471 = vsel %vm469, %v441, 0
  %v474 = vsel %vm469, %v442, 0
  %v477 = vsel %vm469, %v443, 0
  %v480 = vsel %vm469, %v444, 0
  %482 = vmatpush.msra.mxu0 0.0
  %483 = vmatpush.msra.mxu0 0.0
  %484 = vmatpush.msra.mxu0 0.0
  %485 = vmatpush.msra.mxu0 0.0
  %486 = vmatpush.msra.mxu0 0.0
  %487 = vmatpush.msra.mxu0 0.0
  %488 = vmatpush.msra.mxu0 0.0
  %489 = vmatpush.msra.mxu0 0.0
  %490 = vmatpush.msra.mxu0 0.0
  %491 = vmatpush.msra.mxu0 0.0
  %492 = vmatpush.msra.mxu0 0.0
  %493 = vmatpush.msra.mxu0 0.0
  %494 = vmatpush.msra.mxu0 %v439
  %495 = vmatpush.msra.mxu0 %v436
  %496 = vmatpush.msra.mxu0 %v433
  %497 = vmatpush.msra.mxu0 %v430
  %498 = vmatmul.f32.gmra.mxu0 %v471
  %v499 = vpop.f32.mrf.mxu0
  %v500 = vadd.f32 %v452, %v499
  %501 = vmatmul.f32.gmra.mxu0 %v474
  %v502 = vpop.f32.mrf.mxu0
  %v503 = vadd.f32 %v457, %v502
  %504 = vmatmul.f32.gmra.mxu0 %v477
  %v505 = vpop.f32.mrf.mxu0
  %v506 = vadd.f32 %v462, %v505
  %507 = vmatmul.f32.gmra.mxu0 %v480
  %v508 = vpop.f32.mrf.mxu0
  %v509 = vadd.f32 %v467, %v508
  %510 = vdwg.mxu0
  %v511 = vld [vmem:[%s12] sm:$0xff]
  %v512 = vld [vmem:[%s12 + $0x8] sm:$0xff]
  %v513 = vld [vmem:[%s12 + $0x10] sm:$0xff]
  %v514 = vld [vmem:[%s12 + $0x18] sm:$0xff]
  %v515 = vld [vmem:[%s13] sm:$0xff]
  %v516 = vld [vmem:[%s13 + $0x8] sm:$0xff]
  %v517 = vld [vmem:[%s13 + $0x10] sm:$0xff]
  %v518 = vld [vmem:[%s13 + $0x18] sm:$0xff]
  %520 = vset.pattern.permute.xlu0 0
  %521 = vperm.xlu0 %520, %v515
  %v522 = vpop.permute.xlu0 %521
  %525 = vset.pattern.permute.xlu0 0
  %526 = vperm.xlu0 %525, %v516
  %v527 = vpop.permute.xlu0 %526
  %530 = vset.pattern.permute.xlu0 0
  %531 = vperm.xlu0 %530, %v517
  %v532 = vpop.permute.xlu0 %531
  %535 = vset.pattern.permute.xlu0 0
  %536 = vperm.xlu0 %535, %v518
  %v537 = vpop.permute.xlu0 %536
  %v540 = vsel %vm469, %v511, 0
  %v543 = vsel %vm469, %v512, 0
  %v546 = vsel %vm469, %v513, 0
  %v549 = vsel %vm469, %v514, 0
  %551 = vmatpush.msra.mxu0 0.0
  %552 = vmatpush.msra.mxu0 0.0
  %553 = vmatpush.msra.mxu0 0.0
  %554 = vmatpush.msra.mxu0 0.0
  %555 = vmatpush.msra.mxu0 0.0
  %556 = vmatpush.msra.mxu0 0.0
  %557 = vmatpush.msra.mxu0 0.0
  %558 = vmatpush.msra.mxu0 0.0
  %559 = vmatpush.msra.mxu0 0.0
  %560 = vmatpush.msra.mxu0 0.0
  %561 = vmatpush.msra.mxu0 0.0
  %562 = vmatpush.msra.mxu0 0.0
  %563 = vmatpush.msra.mxu0 %v439
  %564 = vmatpush.msra.mxu0 %v436
  %565 = vmatpush.msra.mxu0 %v433
  %566 = vmatpush.msra.mxu0 %v430
  %567 = vmatmul.f32.gmra.mxu0 %v540
  %v568 = vpop.f32.mrf.mxu0
  %v569 = vadd.f32 %v522, %v568
  %570 = vmatmul.f32.gmra.mxu0 %v543
  %v571 = vpop.f32.mrf.mxu0
  %v572 = vadd.f32 %v527, %v571
  %573 = vmatmul.f32.gmra.mxu0 %v546
  %v574 = vpop.f32.mrf.mxu0
  %v575 = vadd.f32 %v532, %v574
  %576 = vmatmul.f32.gmra.mxu0 %v549
  %v577 = vpop.f32.mrf.mxu0
  %v578 = vadd.f32 %v537, %v577
  %579 = vdwg.mxu0
  %v581 = vperm.slane %v59, 0
  %v583 = vmul.f32 %v500, %v581
  %v584 = vmul.f32 %v503, %v581
  %v585 = vmul.f32 %v506, %v581
  %v586 = vmul.f32 %v509, %v581
  %v588 = vperm.slane %v58, 0
  %v590 = vmul.f32 %v500, %v588
  %v591 = vmul.f32 %v503, %v588
  %v592 = vmul.f32 %v506, %v588
  %v593 = vmul.f32 %v509, %v588
  %v594 = vmul.f32 %v569, %v581
  %v595 = vmul.f32 %v572, %v581
  %v596 = vmul.f32 %v575, %v581
  %v597 = vmul.f32 %v578, %v581
  %v598 = vmul.f32 %v569, %v588
  %v599 = vmul.f32 %v572, %v588
  %v600 = vmul.f32 %v575, %v588
  %v601 = vmul.f32 %v578, %v588
  %v602 = vld [vmem:[%s1] sm:$0xff]
  %v603 = vld [vmem:[%s1 + $0x8] sm:$0xff]
  %v604 = vld [vmem:[%s1 + $0x10] sm:$0xff]
  %v605 = vld [vmem:[%s1 + $0x18] sm:$0xff]
  %v606 = vld [vmem:[%s1 + $0x20] sm:$0xff]
  %v607 = vld [vmem:[%s1 + $0x28] sm:$0xff]
  %v608 = vld [vmem:[%s1 + $0x30] sm:$0xff]
  %v609 = vld [vmem:[%s1 + $0x38] sm:$0xff]
  %610 = vxpose.xlu0.b32.start [1/16] %v602, 128
  %611 = vxpose.xlu0.b32.cont [2/16] %v603, 128
  %612 = vxpose.xlu0.b32.cont [3/16] 0.0, 128
  %613 = vxpose.xlu0.b32.cont [4/16] 0.0, 128
  %614 = vxpose.xlu0.b32.cont [5/16] 0.0, 128
  %615 = vxpose.xlu0.b32.cont [6/16] 0.0, 128
  %616 = vxpose.xlu0.b32.cont [7/16] 0.0, 128
  %617 = vxpose.xlu0.b32.cont [8/16] 0.0, 128
  %618 = vxpose.xlu0.b32.cont [9/16] 0.0, 128
  %619 = vxpose.xlu0.b32.cont [10/16] 0.0, 128
  %620 = vxpose.xlu0.b32.cont [11/16] 0.0, 128
  %621 = vxpose.xlu0.b32.cont [12/16] 0.0, 128
  %622 = vxpose.xlu0.b32.cont [13/16] 0.0, 128
  %623 = vxpose.xlu0.b32.cont [14/16] 0.0, 128
  %624 = vxpose.xlu0.b32.cont [15/16] 0.0, 128
  %625 = vxpose.xlu0.b32.end [16/16] 0.0, 128
  %v626 = vpop.trf.xlu0
  %v627 = vpop.trf.xlu0
  %v628 = vpop.trf.xlu0
  %v629 = vpop.trf.xlu0
  %v630 = vpop.trf.xlu0
  %v631 = vpop.trf.xlu0
  %v632 = vpop.trf.xlu0
  %v633 = vpop.trf.xlu0
  %v634 = vpop.trf.xlu0
  %v635 = vpop.trf.xlu0
  %v636 = vpop.trf.xlu0
  %v637 = vpop.trf.xlu0
  %v638 = vpop.trf.xlu0
  %v639 = vpop.trf.xlu0
  %v640 = vpop.trf.xlu0
  %v641 = vpop.trf.xlu0
  %vm642 = vcmask 130048
  %v644 = vsel %vm642, %v626, 0
  %v647 = vsel %vm642, %v627, 0
  %v650 = vsel %vm642, %v628, 0
  %v653 = vsel %vm642, %v629, 0
  %v656 = vsel %vm642, %v630, 0
  %v659 = vsel %vm642, %v631, 0
  %v662 = vsel %vm642, %v632, 0
  %v665 = vsel %vm642, %v633, 0
  %667 = vmatpush.msra.mxu0 0.0
  %668 = vmatpush.msra.mxu0 0.0
  %669 = vmatpush.msra.mxu0 0.0
  %670 = vmatpush.msra.mxu0 0.0
  %671 = vmatpush.msra.mxu0 0.0
  %672 = vmatpush.msra.mxu0 0.0
  %673 = vmatpush.msra.mxu0 0.0
  %674 = vmatpush.msra.mxu0 0.0
  %675 = vmatpush.msra.mxu0 0.0
  %676 = vmatpush.msra.mxu0 0.0
  %677 = vmatpush.msra.mxu0 0.0
  %678 = vmatpush.msra.mxu0 0.0
  %679 = vmatpush.msra.mxu0 0.0
  %680 = vmatpush.msra.mxu0 0.0
  %681 = vmatpush.msra.mxu0 %v590
  %682 = vmatpush.msra.mxu0 %v583
  %683 = vmatmul.f32.gmra.mxu0 %v644
  %v684 = vpop.f32.mrf.mxu0
  %v685 = vadd.f32 0.0, %v684
  %686 = vmatmul.f32.gmra.mxu0 %v647
  %v687 = vpop.f32.mrf.mxu0
  %v688 = vadd.f32 0.0, %v687
  %689 = vmatmul.f32.gmra.mxu0 %v650
  %v690 = vpop.f32.mrf.mxu0
  %v691 = vadd.f32 0.0, %v690
  %692 = vmatmul.f32.gmra.mxu0 %v653
  %v693 = vpop.f32.mrf.mxu0
  %v694 = vadd.f32 0.0, %v693
  %695 = vmatmul.f32.gmra.mxu0 %v656
  %v696 = vpop.f32.mrf.mxu0
  %v697 = vadd.f32 0.0, %v696
  %698 = vmatmul.f32.gmra.mxu0 %v659
  %v699 = vpop.f32.mrf.mxu0
  %v700 = vadd.f32 0.0, %v699
  %701 = vmatmul.f32.gmra.mxu0 %v662
  %v702 = vpop.f32.mrf.mxu0
  %v703 = vadd.f32 0.0, %v702
  %704 = vmatmul.f32.gmra.mxu0 %v665
  %v705 = vpop.f32.mrf.mxu0
  %v706 = vadd.f32 0.0, %v705
  %707 = vdwg.mxu0
  %708 = vxpose.xlu0.b32.start [1/16] %v604, 128
  %709 = vxpose.xlu0.b32.cont [2/16] %v605, 128
  %710 = vxpose.xlu0.b32.cont [3/16] 0.0, 128
  %711 = vxpose.xlu0.b32.cont [4/16] 0.0, 128
  %712 = vxpose.xlu0.b32.cont [5/16] 0.0, 128
  %713 = vxpose.xlu0.b32.cont [6/16] 0.0, 128
  %714 = vxpose.xlu0.b32.cont [7/16] 0.0, 128
  %715 = vxpose.xlu0.b32.cont [8/16] 0.0, 128
  %716 = vxpose.xlu0.b32.cont [9/16] 0.0, 128
  %717 = vxpose.xlu0.b32.cont [10/16] 0.0, 128
  %718 = vxpose.xlu0.b32.cont [11/16] 0.0, 128
  %719 = vxpose.xlu0.b32.cont [12/16] 0.0, 128
  %720 = vxpose.xlu0.b32.cont [13/16] 0.0, 128
  %721 = vxpose.xlu0.b32.cont [14/16] 0.0, 128
  %722 = vxpose.xlu0.b32.cont [15/16] 0.0, 128
  %723 = vxpose.xlu0.b32.end [16/16] 0.0, 128
  %v724 = vpop.trf.xlu0
  %v725 = vpop.trf.xlu0
  %v726 = vpop.trf.xlu0
  %v727 = vpop.trf.xlu0
  %v728 = vpop.trf.xlu0
  %v729 = vpop.trf.xlu0
  %v730 = vpop.trf.xlu0
  %v731 = vpop.trf.xlu0
  %v732 = vpop.trf.xlu0
  %v733 = vpop.trf.xlu0
  %v734 = vpop.trf.xlu0
  %v735 = vpop.trf.xlu0
  %v736 = vpop.trf.xlu0
  %v737 = vpop.trf.xlu0
  %v738 = vpop.trf.xlu0
  %v739 = vpop.trf.xlu0
  %v741 = vsel %vm642, %v724, 0
  %v744 = vsel %vm642, %v725, 0
  %v747 = vsel %vm642, %v726, 0
  %v750 = vsel %vm642, %v727, 0
  %v753 = vsel %vm642, %v728, 0
  %v756 = vsel %vm642, %v729, 0
  %v759 = vsel %vm642, %v730, 0
  %v762 = vsel %vm642, %v731, 0
  %764 = vmatpush.msra.mxu0 0.0
  %765 = vmatpush.msra.mxu0 0.0
  %766 = vmatpush.msra.mxu0 0.0
  %767 = vmatpush.msra.mxu0 0.0
  %768 = vmatpush.msra.mxu0 0.0
  %769 = vmatpush.msra.mxu0 0.0
  %770 = vmatpush.msra.mxu0 0.0
  %771 = vmatpush.msra.mxu0 0.0
  %772 = vmatpush.msra.mxu0 0.0
  %773 = vmatpush.msra.mxu0 0.0
  %774 = vmatpush.msra.mxu0 0.0
  %775 = vmatpush.msra.mxu0 0.0
  %776 = vmatpush.msra.mxu0 0.0
  %777 = vmatpush.msra.mxu0 0.0
  %778 = vmatpush.msra.mxu0 %v591
  %779 = vmatpush.msra.mxu0 %v584
  %780 = vmatmul.f32.gmra.mxu0 %v741
  %v781 = vpop.f32.mrf.mxu0
  %v782 = vadd.f32 0.0, %v781
  %783 = vmatmul.f32.gmra.mxu0 %v744
  %v784 = vpop.f32.mrf.mxu0
  %v785 = vadd.f32 0.0, %v784
  %786 = vmatmul.f32.gmra.mxu0 %v747
  %v787 = vpop.f32.mrf.mxu0
  %v788 = vadd.f32 0.0, %v787
  %789 = vmatmul.f32.gmra.mxu0 %v750
  %v790 = vpop.f32.mrf.mxu0
  %v791 = vadd.f32 0.0, %v790
  %792 = vmatmul.f32.gmra.mxu0 %v753
  %v793 = vpop.f32.mrf.mxu0
  %v794 = vadd.f32 0.0, %v793
  %795 = vmatmul.f32.gmra.mxu0 %v756
  %v796 = vpop.f32.mrf.mxu0
  %v797 = vadd.f32 0.0, %v796
  %798 = vmatmul.f32.gmra.mxu0 %v759
  %v799 = vpop.f32.mrf.mxu0
  %v800 = vadd.f32 0.0, %v799
  %801 = vmatmul.f32.gmra.mxu0 %v762
  %v802 = vpop.f32.mrf.mxu0
  %v803 = vadd.f32 0.0, %v802
  %804 = vdwg.mxu0
  %805 = vxpose.xlu0.b32.start [1/16] %v606, 128
  %806 = vxpose.xlu0.b32.cont [2/16] %v607, 128
  %807 = vxpose.xlu0.b32.cont [3/16] 0.0, 128
  %808 = vxpose.xlu0.b32.cont [4/16] 0.0, 128
  %809 = vxpose.xlu0.b32.cont [5/16] 0.0, 128
  %810 = vxpose.xlu0.b32.cont [6/16] 0.0, 128
  %811 = vxpose.xlu0.b32.cont [7/16] 0.0, 128
  %812 = vxpose.xlu0.b32.cont [8/16] 0.0, 128
  %813 = vxpose.xlu0.b32.cont [9/16] 0.0, 128
  %814 = vxpose.xlu0.b32.cont [10/16] 0.0, 128
  %815 = vxpose.xlu0.b32.cont [11/16] 0.0, 128
  %816 = vxpose.xlu0.b32.cont [12/16] 0.0, 128
  %817 = vxpose.xlu0.b32.cont [13/16] 0.0, 128
  %818 = vxpose.xlu0.b32.cont [14/16] 0.0, 128
  %819 = vxpose.xlu0.b32.cont [15/16] 0.0, 128
  %820 = vxpose.xlu0.b32.end [16/16] 0.0, 128
  %v821 = vpop.trf.xlu0
  %v822 = vpop.trf.xlu0
  %v823 = vpop.trf.xlu0
  %v824 = vpop.trf.xlu0
  %v825 = vpop.trf.xlu0
  %v826 = vpop.trf.xlu0
  %v827 = vpop.trf.xlu0
  %v828 = vpop.trf.xlu0
  %v829 = vpop.trf.xlu0
  %v830 = vpop.trf.xlu0
  %v831 = vpop.trf.xlu0
  %v832 = vpop.trf.xlu0
  %v833 = vpop.trf.xlu0
  %v834 = vpop.trf.xlu0
  %v835 = vpop.trf.xlu0
  %v836 = vpop.trf.xlu0
  %v838 = vsel %vm642, %v821, 0
  %v841 = vsel %vm642, %v822, 0
  %v844 = vsel %vm642, %v823, 0
  %v847 = vsel %vm642, %v824, 0
  %v850 = vsel %vm642, %v825, 0
  %v853 = vsel %vm642, %v826, 0
  %v856 = vsel %vm642, %v827, 0
  %v859 = vsel %vm642, %v828, 0
  %861 = vmatpush.msra.mxu0 0.0
  %862 = vmatpush.msra.mxu0 0.0
  %863 = vmatpush.msra.mxu0 0.0
  %864 = vmatpush.msra.mxu0 0.0
  %865 = vmatpush.msra.mxu0 0.0
  %866 = vmatpush.msra.mxu0 0.0
  %867 = vmatpush.msra.mxu0 0.0
  %868 = vmatpush.msra.mxu0 0.0
  %869 = vmatpush.msra.mxu0 0.0
  %870 = vmatpush.msra.mxu0 0.0
  %871 = vmatpush.msra.mxu0 0.0
  %872 = vmatpush.msra.mxu0 0.0
  %873 = vmatpush.msra.mxu0 0.0
  %874 = vmatpush.msra.mxu0 0.0
  %875 = vmatpush.msra.mxu0 %v592
  %876 = vmatpush.msra.mxu0 %v585
  %877 = vmatmul.f32.gmra.mxu0 %v838
  %v878 = vpop.f32.mrf.mxu0
  %v879 = vadd.f32 0.0, %v878
  %880 = vmatmul.f32.gmra.mxu0 %v841
  %v881 = vpop.f32.mrf.mxu0
  %v882 = vadd.f32 0.0, %v881
  %883 = vmatmul.f32.gmra.mxu0 %v844
  %v884 = vpop.f32.mrf.mxu0
  %v885 = vadd.f32 0.0, %v884
  %886 = vmatmul.f32.gmra.mxu0 %v847
  %v887 = vpop.f32.mrf.mxu0
  %v888 = vadd.f32 0.0, %v887
  %889 = vmatmul.f32.gmra.mxu0 %v850
  %v890 = vpop.f32.mrf.mxu0
  %v891 = vadd.f32 0.0, %v890
  %892 = vmatmul.f32.gmra.mxu0 %v853
  %v893 = vpop.f32.mrf.mxu0
  %v894 = vadd.f32 0.0, %v893
  %895 = vmatmul.f32.gmra.mxu0 %v856
  %v896 = vpop.f32.mrf.mxu0
  %v897 = vadd.f32 0.0, %v896
  %898 = vmatmul.f32.gmra.mxu0 %v859
  %v899 = vpop.f32.mrf.mxu0
  %v900 = vadd.f32 0.0, %v899
  %901 = vdwg.mxu0
  %902 = vxpose.xlu0.b32.start [1/16] %v608, 128
  %903 = vxpose.xlu0.b32.cont [2/16] %v609, 128
  %904 = vxpose.xlu0.b32.cont [3/16] 0.0, 128
  %905 = vxpose.xlu0.b32.cont [4/16] 0.0, 128
  %906 = vxpose.xlu0.b32.cont [5/16] 0.0, 128
  %907 = vxpose.xlu0.b32.cont [6/16] 0.0, 128
  %908 = vxpose.xlu0.b32.cont [7/16] 0.0, 128
  %909 = vxpose.xlu0.b32.cont [8/16] 0.0, 128
  %910 = vxpose.xlu0.b32.cont [9/16] 0.0, 128
  %911 = vxpose.xlu0.b32.cont [10/16] 0.0, 128
  %912 = vxpose.xlu0.b32.cont [11/16] 0.0, 128
  %913 = vxpose.xlu0.b32.cont [12/16] 0.0, 128
  %914 = vxpose.xlu0.b32.cont [13/16] 0.0, 128
  %915 = vxpose.xlu0.b32.cont [14/16] 0.0, 128
  %916 = vxpose.xlu0.b32.cont [15/16] 0.0, 128
  %917 = vxpose.xlu0.b32.end [16/16] 0.0, 128
  %v918 = vpop.trf.xlu0
  %v919 = vpop.trf.xlu0
  %v920 = vpop.trf.xlu0
  %v921 = vpop.trf.xlu0
  %v922 = vpop.trf.xlu0
  %v923 = vpop.trf.xlu0
  %v924 = vpop.trf.xlu0
  %v925 = vpop.trf.xlu0
  %v926 = vpop.trf.xlu0
  %v927 = vpop.trf.xlu0
  %v928 = vpop.trf.xlu0
  %v929 = vpop.trf.xlu0
  %v930 = vpop.trf.xlu0
  %v931 = vpop.trf.xlu0
  %v932 = vpop.trf.xlu0
  %v933 = vpop.trf.xlu0
  %v935 = vsel %vm642, %v918, 0
  %v938 = vsel %vm642, %v919, 0
  %v941 = vsel %vm642, %v920, 0
  %v944 = vsel %vm642, %v921, 0
  %v947 = vsel %vm642, %v922, 0
  %v950 = vsel %vm642, %v923, 0
  %v953 = vsel %vm642, %v924, 0
  %v956 = vsel %vm642, %v925, 0
  %958 = vmatpush.msra.mxu0 0.0
  %959 = vmatpush.msra.mxu0 0.0
  %960 = vmatpush.msra.mxu0 0.0
  %961 = vmatpush.msra.mxu0 0.0
  %962 = vmatpush.msra.mxu0 0.0
  %963 = vmatpush.msra.mxu0 0.0
  %964 = vmatpush.msra.mxu0 0.0
  %965 = vmatpush.msra.mxu0 0.0
  %966 = vmatpush.msra.mxu0 0.0
  %967 = vmatpush.msra.mxu0 0.0
  %968 = vmatpush.msra.mxu0 0.0
  %969 = vmatpush.msra.mxu0 0.0
  %970 = vmatpush.msra.mxu0 0.0
  %971 = vmatpush.msra.mxu0 0.0
  %972 = vmatpush.msra.mxu0 %v593
  %973 = vmatpush.msra.mxu0 %v586
  %974 = vmatmul.f32.gmra.mxu0 %v935
  %v975 = vpop.f32.mrf.mxu0
  %v976 = vadd.f32 0.0, %v975
  %977 = vmatmul.f32.gmra.mxu0 %v938
  %v978 = vpop.f32.mrf.mxu0
  %v979 = vadd.f32 0.0, %v978
  %980 = vmatmul.f32.gmra.mxu0 %v941
  %v981 = vpop.f32.mrf.mxu0
  %v982 = vadd.f32 0.0, %v981
  %983 = vmatmul.f32.gmra.mxu0 %v944
  %v984 = vpop.f32.mrf.mxu0
  %v985 = vadd.f32 0.0, %v984
  %986 = vmatmul.f32.gmra.mxu0 %v947
  %v987 = vpop.f32.mrf.mxu0
  %v988 = vadd.f32 0.0, %v987
  %989 = vmatmul.f32.gmra.mxu0 %v950
  %v990 = vpop.f32.mrf.mxu0
  %v991 = vadd.f32 0.0, %v990
  %992 = vmatmul.f32.gmra.mxu0 %v953
  %v993 = vpop.f32.mrf.mxu0
  %v994 = vadd.f32 0.0, %v993
  %995 = vmatmul.f32.gmra.mxu0 %v956
  %v996 = vpop.f32.mrf.mxu0
  %v997 = vadd.f32 0.0, %v996
  %998 = vdwg.mxu0
  %v999 = vmul.f32 %v685, 0.35355338
  %v1000 = vmul.f32 %v688, 0.35355338
  %v1001 = vmul.f32 %v691, 0.35355338
  %v1002 = vmul.f32 %v694, 0.35355338
  %v1003 = vmul.f32 %v697, 0.35355338
  %v1004 = vmul.f32 %v700, 0.35355338
  %v1005 = vmul.f32 %v703, 0.35355338
  %v1006 = vmul.f32 %v706, 0.35355338
  %v1007 = vmul.f32 %v782, 0.35355338
  %v1008 = vmul.f32 %v785, 0.35355338
  %v1009 = vmul.f32 %v788, 0.35355338
  %v1010 = vmul.f32 %v791, 0.35355338
  %v1011 = vmul.f32 %v794, 0.35355338
  %v1012 = vmul.f32 %v797, 0.35355338
  %v1013 = vmul.f32 %v800, 0.35355338
  %v1014 = vmul.f32 %v803, 0.35355338
  %v1015 = vmul.f32 %v879, 0.35355338
  %v1016 = vmul.f32 %v882, 0.35355338
  %v1017 = vmul.f32 %v885, 0.35355338
  %v1018 = vmul.f32 %v888, 0.35355338
  %v1019 = vmul.f32 %v891, 0.35355338
  %v1020 = vmul.f32 %v894, 0.35355338
  %v1021 = vmul.f32 %v897, 0.35355338
  %v1022 = vmul.f32 %v900, 0.35355338
  %v1023 = vmul.f32 %v976, 0.35355338
  %v1024 = vmul.f32 %v979, 0.35355338
  %v1025 = vmul.f32 %v982, 0.35355338
  %v1026 = vmul.f32 %v985, 0.35355338
  %v1027 = vmul.f32 %v988, 0.35355338
  %v1028 = vmul.f32 %v991, 0.35355338
  %v1029 = vmul.f32 %v994, 0.35355338
  %v1030 = vmul.f32 %v997, 0.35355338
  %v1031 = vld [vmem:[%s9] sm:$0xff]
  %v1032 = vmul.f32 %v57, 3.5
  %v1033 = vsub.f32 %v1031, %v1032
  %v1034 = vld [vmem:[%s8] sm:$0xff]
  %v1035 = vld [vmem:[%s8 + $0x8] sm:$0x7f]
  %v1037 = vperm.slane %v1033, 0
  %v1038 = vperm.slane %v1033, 1
  %v1039 = vperm.slane %v1033, 2
  %v1040 = vperm.slane %v1033, 3
  %v1041 = vperm.slane %v1033, 4
  %v1042 = vperm.slane %v1033, 5
  %v1043 = vperm.slane %v1033, 6
  %v1044 = vperm.slane %v1033, 7
  %1054 = vset.pattern.permute.xlu0 0
  %1055 = vperm.xlu0 %1054, %v1034
  %v1056 = vpop.permute.xlu0 %1055
  %1059 = vset.pattern.permute.xlu0 0
  %1060 = vperm.xlu0 %1059, %v1035
  %v1061 = vpop.permute.xlu0 %1060
  %v1063 = vsub.f32 %v1037, %v1056
  %v1064 = vsub.f32 %v1038, %v1056
  %v1065 = vsub.f32 %v1039, %v1056
  %v1066 = vsub.f32 %v1040, %v1056
  %v1067 = vsub.f32 %v1041, %v1056
  %v1068 = vsub.f32 %v1042, %v1056
  %v1069 = vsub.f32 %v1043, %v1056
  %v1070 = vsub.f32 %v1044, %v1056
  %v1071 = vsub.f32 %v1037, %v1061
  %v1072 = vsub.f32 %v1038, %v1061
  %v1073 = vsub.f32 %v1039, %v1061
  %v1074 = vsub.f32 %v1040, %v1061
  %v1075 = vsub.f32 %v1041, %v1061
  %v1076 = vsub.f32 %v1042, %v1061
  %v1077 = vsub.f32 %v1043, %v1061
  %v1078 = vsub.f32 %v1044, %v1061
  %v1079 = vand.u32 2147483647, %v1063
  %v1080 = vand.u32 2147483647, %v1064
  %v1081 = vand.u32 2147483647, %v1065
  %v1082 = vand.u32 2147483647, %v1066
  %v1083 = vand.u32 2147483647, %v1067
  %v1084 = vand.u32 2147483647, %v1068
  %v1085 = vand.u32 2147483647, %v1069
  %v1086 = vand.u32 2147483647, %v1070
  %v1087 = vand.u32 2147483647, %v1071
  %v1088 = vand.u32 2147483647, %v1072
  %v1089 = vand.u32 2147483647, %v1073
  %v1090 = vand.u32 2147483647, %v1074
  %v1091 = vand.u32 2147483647, %v1075
  %v1092 = vand.u32 2147483647, %v1076
  %v1093 = vand.u32 2147483647, %v1077
  %v1094 = vand.u32 2147483647, %v1078
  %v1095 = vsub.f32 1.0, %v1079
  %v1096 = vsub.f32 1.0, %v1080
  %v1097 = vsub.f32 1.0, %v1081
  %v1098 = vsub.f32 1.0, %v1082
  %v1099 = vsub.f32 1.0, %v1083
  %v1100 = vsub.f32 1.0, %v1084
  %v1101 = vsub.f32 1.0, %v1085
  %v1102 = vsub.f32 1.0, %v1086
  %v1103 = vsub.f32 1.0, %v1087
  %v1104 = vsub.f32 1.0, %v1088
  %v1105 = vsub.f32 1.0, %v1089
  %v1106 = vsub.f32 1.0, %v1090
  %v1107 = vsub.f32 1.0, %v1091
  %v1108 = vsub.f32 1.0, %v1092
  %v1109 = vsub.f32 1.0, %v1093
  %v1110 = vsub.f32 1.0, %v1094
  %v1111 = vmax.f32 %v1095, 0.0
  %v1112 = vmax.f32 %v1096, 0.0
  %v1113 = vmax.f32 %v1097, 0.0
  %v1114 = vmax.f32 %v1098, 0.0
  %v1115 = vmax.f32 %v1099, 0.0
  %v1116 = vmax.f32 %v1100, 0.0
  %v1117 = vmax.f32 %v1101, 0.0
  %v1118 = vmax.f32 %v1102, 0.0
  %v1119 = vmax.f32 %v1103, 0.0
  %v1120 = vmax.f32 %v1104, 0.0
  %v1121 = vmax.f32 %v1105, 0.0
  %v1122 = vmax.f32 %v1106, 0.0
  %v1123 = vmax.f32 %v1107, 0.0
  %v1124 = vmax.f32 %v1108, 0.0
  %v1125 = vmax.f32 %v1109, 0.0
  %v1126 = vmax.f32 %v1110, 0.0
  %v1127 = vld [vmem:[%s14] sm:$0xff]
  %v1128 = vld [vmem:[%s14 + $0x8] sm:$0xff]
  %v1129 = vld [vmem:[%s14 + $0x10] sm:$0xff]
  %v1130 = vld [vmem:[%s14 + $0x18] sm:$0xff]
  %v1131 = vld [vmem:[%s14 + $0x20] sm:$0xff]
  %v1132 = vld [vmem:[%s14 + $0x28] sm:$0xff]
  %v1133 = vld [vmem:[%s14 + $0x30] sm:$0xff]
  %v1134 = vld [vmem:[%s14 + $0x38] sm:$0xf]
  %vm1135 = vcmask 121856
  %v1137 = vsel %vm1135, %v1127, 0
  %v1140 = vsel %vm1135, %v1128, 0
  %v1143 = vsel %vm1135, %v1129, 0
  %v1146 = vsel %vm1135, %v1130, 0
  %v1149 = vsel %vm1135, %v1131, 0
  %v1152 = vsel %vm1135, %v1132, 0
  %v1155 = vsel %vm1135, %v1133, 0
  %v1158 = vsel %vm1135, %v1134, 0
  %vm1160 = vcmask 1046528
  %v1162 = vsel %vm1160, %v1119, 0
  %v1165 = vsel %vm1160, %v1120, 0
  %v1168 = vsel %vm1160, %v1121, 0
  %v1171 = vsel %vm1160, %v1122, 0
  %v1174 = vsel %vm1160, %v1123, 0
  %v1177 = vsel %vm1160, %v1124, 0
  %v1180 = vsel %vm1160, %v1125, 0
  %v1183 = vsel %vm1160, %v1126, 0
  %1185 = vmatpush.msra.mxu0 0.0
  %1186 = vmatpush.msra.mxu0 0.0
  %1187 = vmatpush.msra.mxu0 0.0
  %1188 = vmatpush.msra.mxu0 0.0
  %1189 = vmatpush.msra.mxu0 0.0
  %1190 = vmatpush.msra.mxu0 0.0
  %1191 = vmatpush.msra.mxu0 0.0
  %1192 = vmatpush.msra.mxu0 0.0
  %1193 = vmatpush.msra.mxu0 0.0
  %1194 = vmatpush.msra.mxu0 0.0
  %1195 = vmatpush.msra.mxu0 0.0
  %1196 = vmatpush.msra.mxu0 0.0
  %1197 = vmatpush.msra.mxu0 0.0
  %1198 = vmatpush.msra.mxu0 0.0
  %1199 = vmatpush.msra.mxu0 %v1162
  %1200 = vmatpush.msra.mxu0 %v1111
  %1201 = vmatmul.f32.gmra.mxu0 %v1137
  %v1202 = vpop.f32.mrf.mxu0
  %v1203 = vadd.f32 0.0, %v1202
  %1204 = vmatmul.f32.gmra.mxu0 %v1140
  %v1205 = vpop.f32.mrf.mxu0
  %v1206 = vadd.f32 0.0, %v1205
  %1207 = vmatmul.f32.gmra.mxu0 %v1143
  %v1208 = vpop.f32.mrf.mxu0
  %v1209 = vadd.f32 0.0, %v1208
  %1210 = vmatmul.f32.gmra.mxu0 %v1146
  %v1211 = vpop.f32.mrf.mxu0
  %v1212 = vadd.f32 0.0, %v1211
  %1213 = vmatmul.f32.gmra.mxu0 %v1149
  %v1214 = vpop.f32.mrf.mxu0
  %v1215 = vadd.f32 0.0, %v1214
  %1216 = vmatmul.f32.gmra.mxu0 %v1152
  %v1217 = vpop.f32.mrf.mxu0
  %v1218 = vadd.f32 0.0, %v1217
  %1219 = vmatmul.f32.gmra.mxu0 %v1155
  %v1220 = vpop.f32.mrf.mxu0
  %v1221 = vadd.f32 0.0, %v1220
  %1222 = vmatmul.f32.gmra.mxu0 %v1158
  %v1223 = vpop.f32.mrf.mxu0
  %v1224 = vadd.f32 0.0, %v1223
  %1225 = vdwg.mxu0
  %1226 = vmatpush.msra.mxu0 0.0
  %1227 = vmatpush.msra.mxu0 0.0
  %1228 = vmatpush.msra.mxu0 0.0
  %1229 = vmatpush.msra.mxu0 0.0
  %1230 = vmatpush.msra.mxu0 0.0
  %1231 = vmatpush.msra.mxu0 0.0
  %1232 = vmatpush.msra.mxu0 0.0
  %1233 = vmatpush.msra.mxu0 0.0
  %1234 = vmatpush.msra.mxu0 0.0
  %1235 = vmatpush.msra.mxu0 0.0
  %1236 = vmatpush.msra.mxu0 0.0
  %1237 = vmatpush.msra.mxu0 0.0
  %1238 = vmatpush.msra.mxu0 0.0
  %1239 = vmatpush.msra.mxu0 0.0
  %1240 = vmatpush.msra.mxu0 %v1165
  %1241 = vmatpush.msra.mxu0 %v1112
  %1242 = vmatmul.f32.gmra.mxu0 %v1137
  %v1243 = vpop.f32.mrf.mxu0
  %v1244 = vadd.f32 0.0, %v1243
  %1245 = vmatmul.f32.gmra.mxu0 %v1140
  %v1246 = vpop.f32.mrf.mxu0
  %v1247 = vadd.f32 0.0, %v1246
  %1248 = vmatmul.f32.gmra.mxu0 %v1143
  %v1249 = vpop.f32.mrf.mxu0
  %v1250 = vadd.f32 0.0, %v1249
  %1251 = vmatmul.f32.gmra.mxu0 %v1146
  %v1252 = vpop.f32.mrf.mxu0
  %v1253 = vadd.f32 0.0, %v1252
  %1254 = vmatmul.f32.gmra.mxu0 %v1149
  %v1255 = vpop.f32.mrf.mxu0
  %v1256 = vadd.f32 0.0, %v1255
  %1257 = vmatmul.f32.gmra.mxu0 %v1152
  %v1258 = vpop.f32.mrf.mxu0
  %v1259 = vadd.f32 0.0, %v1258
  %1260 = vmatmul.f32.gmra.mxu0 %v1155
  %v1261 = vpop.f32.mrf.mxu0
  %v1262 = vadd.f32 0.0, %v1261
  %1263 = vmatmul.f32.gmra.mxu0 %v1158
  %v1264 = vpop.f32.mrf.mxu0
  %v1265 = vadd.f32 0.0, %v1264
  %1266 = vdwg.mxu0
  %1267 = vmatpush.msra.mxu0 0.0
  %1268 = vmatpush.msra.mxu0 0.0
  %1269 = vmatpush.msra.mxu0 0.0
  %1270 = vmatpush.msra.mxu0 0.0
  %1271 = vmatpush.msra.mxu0 0.0
  %1272 = vmatpush.msra.mxu0 0.0
  %1273 = vmatpush.msra.mxu0 0.0
  %1274 = vmatpush.msra.mxu0 0.0
  %1275 = vmatpush.msra.mxu0 0.0
  %1276 = vmatpush.msra.mxu0 0.0
  %1277 = vmatpush.msra.mxu0 0.0
  %1278 = vmatpush.msra.mxu0 0.0
  %1279 = vmatpush.msra.mxu0 0.0
  %1280 = vmatpush.msra.mxu0 0.0
  %1281 = vmatpush.msra.mxu0 %v1168
  %1282 = vmatpush.msra.mxu0 %v1113
  %1283 = vmatmul.f32.gmra.mxu0 %v1137
  %v1284 = vpop.f32.mrf.mxu0
  %v1285 = vadd.f32 0.0, %v1284
  %1286 = vmatmul.f32.gmra.mxu0 %v1140
  %v1287 = vpop.f32.mrf.mxu0
  %v1288 = vadd.f32 0.0, %v1287
  %1289 = vmatmul.f32.gmra.mxu0 %v1143
  %v1290 = vpop.f32.mrf.mxu0
  %v1291 = vadd.f32 0.0, %v1290
  %1292 = vmatmul.f32.gmra.mxu0 %v1146
  %v1293 = vpop.f32.mrf.mxu0
  %v1294 = vadd.f32 0.0, %v1293
  %1295 = vmatmul.f32.gmra.mxu0 %v1149
  %v1296 = vpop.f32.mrf.mxu0
  %v1297 = vadd.f32 0.0, %v1296
  %1298 = vmatmul.f32.gmra.mxu0 %v1152
  %v1299 = vpop.f32.mrf.mxu0
  %v1300 = vadd.f32 0.0, %v1299
  %1301 = vmatmul.f32.gmra.mxu0 %v1155
  %v1302 = vpop.f32.mrf.mxu0
  %v1303 = vadd.f32 0.0, %v1302
  %1304 = vmatmul.f32.gmra.mxu0 %v1158
  %v1305 = vpop.f32.mrf.mxu0
  %v1306 = vadd.f32 0.0, %v1305
  %1307 = vdwg.mxu0
  %1308 = vmatpush.msra.mxu0 0.0
  %1309 = vmatpush.msra.mxu0 0.0
  %1310 = vmatpush.msra.mxu0 0.0
  %1311 = vmatpush.msra.mxu0 0.0
  %1312 = vmatpush.msra.mxu0 0.0
  %1313 = vmatpush.msra.mxu0 0.0
  %1314 = vmatpush.msra.mxu0 0.0
  %1315 = vmatpush.msra.mxu0 0.0
  %1316 = vmatpush.msra.mxu0 0.0
  %1317 = vmatpush.msra.mxu0 0.0
  %1318 = vmatpush.msra.mxu0 0.0
  %1319 = vmatpush.msra.mxu0 0.0
  %1320 = vmatpush.msra.mxu0 0.0
  %1321 = vmatpush.msra.mxu0 0.0
  %1322 = vmatpush.msra.mxu0 %v1171
  %1323 = vmatpush.msra.mxu0 %v1114
  %1324 = vmatmul.f32.gmra.mxu0 %v1137
  %v1325 = vpop.f32.mrf.mxu0
  %v1326 = vadd.f32 0.0, %v1325
  %1327 = vmatmul.f32.gmra.mxu0 %v1140
  %v1328 = vpop.f32.mrf.mxu0
  %v1329 = vadd.f32 0.0, %v1328
  %1330 = vmatmul.f32.gmra.mxu0 %v1143
  %v1331 = vpop.f32.mrf.mxu0
  %v1332 = vadd.f32 0.0, %v1331
  %1333 = vmatmul.f32.gmra.mxu0 %v1146
  %v1334 = vpop.f32.mrf.mxu0
  %v1335 = vadd.f32 0.0, %v1334
  %1336 = vmatmul.f32.gmra.mxu0 %v1149
  %v1337 = vpop.f32.mrf.mxu0
  %v1338 = vadd.f32 0.0, %v1337
  %1339 = vmatmul.f32.gmra.mxu0 %v1152
  %v1340 = vpop.f32.mrf.mxu0
  %v1341 = vadd.f32 0.0, %v1340
  %1342 = vmatmul.f32.gmra.mxu0 %v1155
  %v1343 = vpop.f32.mrf.mxu0
  %v1344 = vadd.f32 0.0, %v1343
  %1345 = vmatmul.f32.gmra.mxu0 %v1158
  %v1346 = vpop.f32.mrf.mxu0
  %v1347 = vadd.f32 0.0, %v1346
  %1348 = vdwg.mxu0
  %1349 = vmatpush.msra.mxu0 0.0
  %1350 = vmatpush.msra.mxu0 0.0
  %1351 = vmatpush.msra.mxu0 0.0
  %1352 = vmatpush.msra.mxu0 0.0
  %1353 = vmatpush.msra.mxu0 0.0
  %1354 = vmatpush.msra.mxu0 0.0
  %1355 = vmatpush.msra.mxu0 0.0
  %1356 = vmatpush.msra.mxu0 0.0
  %1357 = vmatpush.msra.mxu0 0.0
  %1358 = vmatpush.msra.mxu0 0.0
  %1359 = vmatpush.msra.mxu0 0.0
  %1360 = vmatpush.msra.mxu0 0.0
  %1361 = vmatpush.msra.mxu0 0.0
  %1362 = vmatpush.msra.mxu0 0.0
  %1363 = vmatpush.msra.mxu0 %v1174
  %1364 = vmatpush.msra.mxu0 %v1115
  %1365 = vmatmul.f32.gmra.mxu0 %v1137
  %v1366 = vpop.f32.mrf.mxu0
  %v1367 = vadd.f32 0.0, %v1366
  %1368 = vmatmul.f32.gmra.mxu0 %v1140
  %v1369 = vpop.f32.mrf.mxu0
  %v1370 = vadd.f32 0.0, %v1369
  %1371 = vmatmul.f32.gmra.mxu0 %v1143
  %v1372 = vpop.f32.mrf.mxu0
  %v1373 = vadd.f32 0.0, %v1372
  %1374 = vmatmul.f32.gmra.mxu0 %v1146
  %v1375 = vpop.f32.mrf.mxu0
  %v1376 = vadd.f32 0.0, %v1375
  %1377 = vmatmul.f32.gmra.mxu0 %v1149
  %v1378 = vpop.f32.mrf.mxu0
  %v1379 = vadd.f32 0.0, %v1378
  %1380 = vmatmul.f32.gmra.mxu0 %v1152
  %v1381 = vpop.f32.mrf.mxu0
  %v1382 = vadd.f32 0.0, %v1381
  %1383 = vmatmul.f32.gmra.mxu0 %v1155
  %v1384 = vpop.f32.mrf.mxu0
  %v1385 = vadd.f32 0.0, %v1384
  %1386 = vmatmul.f32.gmra.mxu0 %v1158
  %v1387 = vpop.f32.mrf.mxu0
  %v1388 = vadd.f32 0.0, %v1387
  %1389 = vdwg.mxu0
  %1390 = vmatpush.msra.mxu0 0.0
  %1391 = vmatpush.msra.mxu0 0.0
  %1392 = vmatpush.msra.mxu0 0.0
  %1393 = vmatpush.msra.mxu0 0.0
  %1394 = vmatpush.msra.mxu0 0.0
  %1395 = vmatpush.msra.mxu0 0.0
  %1396 = vmatpush.msra.mxu0 0.0
  %1397 = vmatpush.msra.mxu0 0.0
  %1398 = vmatpush.msra.mxu0 0.0
  %1399 = vmatpush.msra.mxu0 0.0
  %1400 = vmatpush.msra.mxu0 0.0
  %1401 = vmatpush.msra.mxu0 0.0
  %1402 = vmatpush.msra.mxu0 0.0
  %1403 = vmatpush.msra.mxu0 0.0
  %1404 = vmatpush.msra.mxu0 %v1177
  %1405 = vmatpush.msra.mxu0 %v1116
  %1406 = vmatmul.f32.gmra.mxu0 %v1137
  %v1407 = vpop.f32.mrf.mxu0
  %v1408 = vadd.f32 0.0, %v1407
  %1409 = vmatmul.f32.gmra.mxu0 %v1140
  %v1410 = vpop.f32.mrf.mxu0
  %v1411 = vadd.f32 0.0, %v1410
  %1412 = vmatmul.f32.gmra.mxu0 %v1143
  %v1413 = vpop.f32.mrf.mxu0
  %v1414 = vadd.f32 0.0, %v1413
  %1415 = vmatmul.f32.gmra.mxu0 %v1146
  %v1416 = vpop.f32.mrf.mxu0
  %v1417 = vadd.f32 0.0, %v1416
  %1418 = vmatmul.f32.gmra.mxu0 %v1149
  %v1419 = vpop.f32.mrf.mxu0
  %v1420 = vadd.f32 0.0, %v1419
  %1421 = vmatmul.f32.gmra.mxu0 %v1152
  %v1422 = vpop.f32.mrf.mxu0
  %v1423 = vadd.f32 0.0, %v1422
  %1424 = vmatmul.f32.gmra.mxu0 %v1155
  %v1425 = vpop.f32.mrf.mxu0
  %v1426 = vadd.f32 0.0, %v1425
  %1427 = vmatmul.f32.gmra.mxu0 %v1158
  %v1428 = vpop.f32.mrf.mxu0
  %v1429 = vadd.f32 0.0, %v1428
  %1430 = vdwg.mxu0
  %1431 = vmatpush.msra.mxu0 0.0
  %1432 = vmatpush.msra.mxu0 0.0
  %1433 = vmatpush.msra.mxu0 0.0
  %1434 = vmatpush.msra.mxu0 0.0
  %1435 = vmatpush.msra.mxu0 0.0
  %1436 = vmatpush.msra.mxu0 0.0
  %1437 = vmatpush.msra.mxu0 0.0
  %1438 = vmatpush.msra.mxu0 0.0
  %1439 = vmatpush.msra.mxu0 0.0
  %1440 = vmatpush.msra.mxu0 0.0
  %1441 = vmatpush.msra.mxu0 0.0
  %1442 = vmatpush.msra.mxu0 0.0
  %1443 = vmatpush.msra.mxu0 0.0
  %1444 = vmatpush.msra.mxu0 0.0
  %1445 = vmatpush.msra.mxu0 %v1180
  %1446 = vmatpush.msra.mxu0 %v1117
  %1447 = vmatmul.f32.gmra.mxu0 %v1137
  %v1448 = vpop.f32.mrf.mxu0
  %v1449 = vadd.f32 0.0, %v1448
  %1450 = vmatmul.f32.gmra.mxu0 %v1140
  %v1451 = vpop.f32.mrf.mxu0
  %v1452 = vadd.f32 0.0, %v1451
  %1453 = vmatmul.f32.gmra.mxu0 %v1143
  %v1454 = vpop.f32.mrf.mxu0
  %v1455 = vadd.f32 0.0, %v1454
  %1456 = vmatmul.f32.gmra.mxu0 %v1146
  %v1457 = vpop.f32.mrf.mxu0
  %v1458 = vadd.f32 0.0, %v1457
  %1459 = vmatmul.f32.gmra.mxu0 %v1149
  %v1460 = vpop.f32.mrf.mxu0
  %v1461 = vadd.f32 0.0, %v1460
  %1462 = vmatmul.f32.gmra.mxu0 %v1152
  %v1463 = vpop.f32.mrf.mxu0
  %v1464 = vadd.f32 0.0, %v1463
  %1465 = vmatmul.f32.gmra.mxu0 %v1155
  %v1466 = vpop.f32.mrf.mxu0
  %v1467 = vadd.f32 0.0, %v1466
  %1468 = vmatmul.f32.gmra.mxu0 %v1158
  %v1469 = vpop.f32.mrf.mxu0
  %v1470 = vadd.f32 0.0, %v1469
  %1471 = vdwg.mxu0
  %1472 = vmatpush.msra.mxu0 0.0
  %1473 = vmatpush.msra.mxu0 0.0
  %1474 = vmatpush.msra.mxu0 0.0
  %1475 = vmatpush.msra.mxu0 0.0
  %1476 = vmatpush.msra.mxu0 0.0
  %1477 = vmatpush.msra.mxu0 0.0
  %1478 = vmatpush.msra.mxu0 0.0
  %1479 = vmatpush.msra.mxu0 0.0
  %1480 = vmatpush.msra.mxu0 0.0
  %1481 = vmatpush.msra.mxu0 0.0
  %1482 = vmatpush.msra.mxu0 0.0
  %1483 = vmatpush.msra.mxu0 0.0
  %1484 = vmatpush.msra.mxu0 0.0
  %1485 = vmatpush.msra.mxu0 0.0
  %1486 = vmatpush.msra.mxu0 %v1183
  %1487 = vmatpush.msra.mxu0 %v1118
  %1488 = vmatmul.f32.gmra.mxu0 %v1137
  %v1489 = vpop.f32.mrf.mxu0
  %v1490 = vadd.f32 0.0, %v1489
  %1491 = vmatmul.f32.gmra.mxu0 %v1140
  %v1492 = vpop.f32.mrf.mxu0
  %v1493 = vadd.f32 0.0, %v1492
  %1494 = vmatmul.f32.gmra.mxu0 %v1143
  %v1495 = vpop.f32.mrf.mxu0
  %v1496 = vadd.f32 0.0, %v1495
  %1497 = vmatmul.f32.gmra.mxu0 %v1146
  %v1498 = vpop.f32.mrf.mxu0
  %v1499 = vadd.f32 0.0, %v1498
  %1500 = vmatmul.f32.gmra.mxu0 %v1149
  %v1501 = vpop.f32.mrf.mxu0
  %v1502 = vadd.f32 0.0, %v1501
  %1503 = vmatmul.f32.gmra.mxu0 %v1152
  %v1504 = vpop.f32.mrf.mxu0
  %v1505 = vadd.f32 0.0, %v1504
  %1506 = vmatmul.f32.gmra.mxu0 %v1155
  %v1507 = vpop.f32.mrf.mxu0
  %v1508 = vadd.f32 0.0, %v1507
  %1509 = vmatmul.f32.gmra.mxu0 %v1158
  %v1510 = vpop.f32.mrf.mxu0
  %v1511 = vadd.f32 0.0, %v1510
  %1512 = vdwg.mxu0
  %v1513 = vrot.slane %v1285, 4
  %vm1514 = vcmask 1047556
  %v1515 = vsel %vm1514, %v1513, %v1203
  %v1516 = vrot.slane %v1203, 4
  %v1517 = vsel %vm1514, %v1285, %v1516
  %v1519 = vunpack.c.l.s4 1983009808
  %v1520 = vunpack.c.0.s8 %v1519
  %v1521 = vperm.slane %v1515, %v1520
  %v1523 = vunpack.c.l.s4 1983009808
  %v1524 = vunpack.c.0.s8 %v1523
  %v1525 = vperm.slane %v1517, %v1524
  %v1526 = vrot.slane %v1326, 4
  %v1527 = vsel %vm1514, %v1526, %v1244
  %v1528 = vrot.slane %v1244, 4
  %v1529 = vsel %vm1514, %v1326, %v1528
  %v1531 = vunpack.c.l.s4 1983009808
  %v1532 = vunpack.c.0.s8 %v1531
  %v1533 = vperm.slane %v1527, %v1532
  %v1535 = vunpack.c.l.s4 1983009808
  %v1536 = vunpack.c.0.s8 %v1535
  %v1537 = vperm.slane %v1529, %v1536
  %v1538 = vrot.slane %v1449, 4
  %v1539 = vsel %vm1514, %v1538, %v1367
  %v1540 = vrot.slane %v1367, 4
  %v1541 = vsel %vm1514, %v1449, %v1540
  %v1543 = vunpack.c.l.s4 1983009808
  %v1544 = vunpack.c.0.s8 %v1543
  %v1545 = vperm.slane %v1539, %v1544
  %v1547 = vunpack.c.l.s4 1983009808
  %v1548 = vunpack.c.0.s8 %v1547
  %v1549 = vperm.slane %v1541, %v1548
  %v1550 = vrot.slane %v1490, 4
  %v1551 = vsel %vm1514, %v1550, %v1408
  %v1552 = vrot.slane %v1408, 4
  %v1553 = vsel %vm1514, %v1490, %v1552
  %v1555 = vunpack.c.l.s4 1983009808
  %v1556 = vunpack.c.0.s8 %v1555
  %v1557 = vperm.slane %v1551, %v1556
  %v1559 = vunpack.c.l.s4 1983009808
  %v1560 = vunpack.c.0.s8 %v1559
  %v1561 = vperm.slane %v1553, %v1560
  %v1562 = vrot.slane %v1533, 4
  %v1563 = vsel %vm1514, %v1562, %v1521
  %v1564 = vrot.slane %v1521, 4
  %v1565 = vsel %vm1514, %v1533, %v1564
  %v1567 = vunpack.c.l.s4 1934713408
  %v1568 = vunpack.c.0.s8 %v1567
  %v1569 = vperm.slane %v1563, %v1568
  %v1571 = vunpack.c.l.s4 1934713408
  %v1572 = vunpack.c.0.s8 %v1571
  %v1573 = vperm.slane %v1565, %v1572
  %v1574 = vrot.slane %v1537, 4
  %v1575 = vsel %vm1514, %v1574, %v1525
  %v1576 = vrot.slane %v1525, 4
  %v1577 = vsel %vm1514, %v1537, %v1576
  %v1579 = vunpack.c.l.s4 1934713408
  %v1580 = vunpack.c.0.s8 %v1579
  %v1581 = vperm.slane %v1575, %v1580
  %v1583 = vunpack.c.l.s4 1934713408
  %v1584 = vunpack.c.0.s8 %v1583
  %v1585 = vperm.slane %v1577, %v1584
  %v1586 = vrot.slane %v1557, 4
  %v1587 = vsel %vm1514, %v1586, %v1545
  %v1588 = vrot.slane %v1545, 4
  %v1589 = vsel %vm1514, %v1557, %v1588
  %v1591 = vunpack.c.l.s4 1934713408
  %v1592 = vunpack.c.0.s8 %v1591
  %v1593 = vperm.slane %v1587, %v1592
  %v1595 = vunpack.c.l.s4 1934713408
  %v1596 = vunpack.c.0.s8 %v1595
  %v1597 = vperm.slane %v1589, %v1596
  %v1598 = vrot.slane %v1561, 4
  %v1599 = vsel %vm1514, %v1598, %v1549
  %v1600 = vrot.slane %v1549, 4
  %v1601 = vsel %vm1514, %v1561, %v1600
  %v1603 = vunpack.c.l.s4 1934713408
  %v1604 = vunpack.c.0.s8 %v1603
  %v1605 = vperm.slane %v1599, %v1604
  %v1607 = vunpack.c.l.s4 1934713408
  %v1608 = vunpack.c.0.s8 %v1607
  %v1609 = vperm.slane %v1601, %v1608
  %v1610 = vrot.slane %v1593, 4
  %v1611 = vsel %vm1514, %v1610, %v1569
  %v1612 = vrot.slane %v1569, 4
  %v1613 = vsel %vm1514, %v1593, %v1612
  %v1614 = vrot.slane %v1597, 4
  %v1615 = vsel %vm1514, %v1614, %v1573
  %v1616 = vrot.slane %v1573, 4
  %v1617 = vsel %vm1514, %v1597, %v1616
  %v1618 = vrot.slane %v1605, 4
  %v1619 = vsel %vm1514, %v1618, %v1581
  %v1620 = vrot.slane %v1581, 4
  %v1621 = vsel %vm1514, %v1605, %v1620
  %v1622 = vrot.slane %v1609, 4
  %v1623 = vsel %vm1514, %v1622, %v1585
  %v1624 = vrot.slane %v1585, 4
  %v1625 = vsel %vm1514, %v1609, %v1624
  %v1626 = vrot.slane %v1288, 4
  %v1627 = vsel %vm1514, %v1626, %v1206
  %v1628 = vrot.slane %v1206, 4
  %v1629 = vsel %vm1514, %v1288, %v1628
  %v1631 = vunpack.c.l.s4 1983009808
  %v1632 = vunpack.c.0.s8 %v1631
  %v1633 = vperm.slane %v1627, %v1632
  %v1635 = vunpack.c.l.s4 1983009808
  %v1636 = vunpack.c.0.s8 %v1635
  %v1637 = vperm.slane %v1629, %v1636
  %v1638 = vrot.slane %v1329, 4
  %v1639 = vsel %vm1514, %v1638, %v1247
  %v1640 = vrot.slane %v1247, 4
  %v1641 = vsel %vm1514, %v1329, %v1640
  %v1643 = vunpack.c.l.s4 1983009808
  %v1644 = vunpack.c.0.s8 %v1643
  %v1645 = vperm.slane %v1639, %v1644
  %v1647 = vunpack.c.l.s4 1983009808
  %v1648 = vunpack.c.0.s8 %v1647
  %v1649 = vperm.slane %v1641, %v1648
  %v1650 = vrot.slane %v1452, 4
  %v1651 = vsel %vm1514, %v1650, %v1370
  %v1652 = vrot.slane %v1370, 4
  %v1653 = vsel %vm1514, %v1452, %v1652
  %v1655 = vunpack.c.l.s4 1983009808
  %v1656 = vunpack.c.0.s8 %v1655
  %v1657 = vperm.slane %v1651, %v1656
  %v1659 = vunpack.c.l.s4 1983009808
  %v1660 = vunpack.c.0.s8 %v1659
  %v1661 = vperm.slane %v1653, %v1660
  %v1662 = vrot.slane %v1493, 4
  %v1663 = vsel %vm1514, %v1662, %v1411
  %v1664 = vrot.slane %v1411, 4
  %v1665 = vsel %vm1514, %v1493, %v1664
  %v1667 = vunpack.c.l.s4 1983009808
  %v1668 = vunpack.c.0.s8 %v1667
  %v1669 = vperm.slane %v1663, %v1668
  %v1671 = vunpack.c.l.s4 1983009808
  %v1672 = vunpack.c.0.s8 %v1671
  %v1673 = vperm.slane %v1665, %v1672
  %v1674 = vrot.slane %v1645, 4
  %v1675 = vsel %vm1514, %v1674, %v1633
  %v1676 = vrot.slane %v1633, 4
  %v1677 = vsel %vm1514, %v1645, %v1676
  %v1679 = vunpack.c.l.s4 1934713408
  %v1680 = vunpack.c.0.s8 %v1679
  %v1681 = vperm.slane %v1675, %v1680
  %v1683 = vunpack.c.l.s4 1934713408
  %v1684 = vunpack.c.0.s8 %v1683
  %v1685 = vperm.slane %v1677, %v1684
  %v1686 = vrot.slane %v1649, 4
  %v1687 = vsel %vm1514, %v1686, %v1637
  %v1688 = vrot.slane %v1637, 4
  %v1689 = vsel %vm1514, %v1649, %v1688
  %v1691 = vunpack.c.l.s4 1934713408
  %v1692 = vunpack.c.0.s8 %v1691
  %v1693 = vperm.slane %v1687, %v1692
  %v1695 = vunpack.c.l.s4 1934713408
  %v1696 = vunpack.c.0.s8 %v1695
  %v1697 = vperm.slane %v1689, %v1696
  %v1698 = vrot.slane %v1669, 4
  %v1699 = vsel %vm1514, %v1698, %v1657
  %v1700 = vrot.slane %v1657, 4
  %v1701 = vsel %vm1514, %v1669, %v1700
  %v1703 = vunpack.c.l.s4 1934713408
  %v1704 = vunpack.c.0.s8 %v1703
  %v1705 = vperm.slane %v1699, %v1704
  %v1707 = vunpack.c.l.s4 1934713408
  %v1708 = vunpack.c.0.s8 %v1707
  %v1709 = vperm.slane %v1701, %v1708
  %v1710 = vrot.slane %v1673, 4
  %v1711 = vsel %vm1514, %v1710, %v1661
  %v1712 = vrot.slane %v1661, 4
  %v1713 = vsel %vm1514, %v1673, %v1712
  %v1715 = vunpack.c.l.s4 1934713408
  %v1716 = vunpack.c.0.s8 %v1715
  %v1717 = vperm.slane %v1711, %v1716
  %v1719 = vunpack.c.l.s4 1934713408
  %v1720 = vunpack.c.0.s8 %v1719
  %v1721 = vperm.slane %v1713, %v1720
  %v1722 = vrot.slane %v1705, 4
  %v1723 = vsel %vm1514, %v1722, %v1681
  %v1724 = vrot.slane %v1681, 4
  %v1725 = vsel %vm1514, %v1705, %v1724
  %v1726 = vrot.slane %v1709, 4
  %v1727 = vsel %vm1514, %v1726, %v1685
  %v1728 = vrot.slane %v1685, 4
  %v1729 = vsel %vm1514, %v1709, %v1728
  %v1730 = vrot.slane %v1717, 4
  %v1731 = vsel %vm1514, %v1730, %v1693
  %v1732 = vrot.slane %v1693, 4
  %v1733 = vsel %vm1514, %v1717, %v1732
  %v1734 = vrot.slane %v1721, 4
  %v1735 = vsel %vm1514, %v1734, %v1697
  %v1736 = vrot.slane %v1697, 4
  %v1737 = vsel %vm1514, %v1721, %v1736
  %v1738 = vrot.slane %v1291, 4
  %v1739 = vsel %vm1514, %v1738, %v1209
  %v1740 = vrot.slane %v1209, 4
  %v1741 = vsel %vm1514, %v1291, %v1740
  %v1743 = vunpack.c.l.s4 1983009808
  %v1744 = vunpack.c.0.s8 %v1743
  %v1745 = vperm.slane %v1739, %v1744
  %v1747 = vunpack.c.l.s4 1983009808
  %v1748 = vunpack.c.0.s8 %v1747
  %v1749 = vperm.slane %v1741, %v1748
  %v1750 = vrot.slane %v1332, 4
  %v1751 = vsel %vm1514, %v1750, %v1250
  %v1752 = vrot.slane %v1250, 4
  %v1753 = vsel %vm1514, %v1332, %v1752
  %v1755 = vunpack.c.l.s4 1983009808
  %v1756 = vunpack.c.0.s8 %v1755
  %v1757 = vperm.slane %v1751, %v1756
  %v1759 = vunpack.c.l.s4 1983009808
  %v1760 = vunpack.c.0.s8 %v1759
  %v1761 = vperm.slane %v1753, %v1760
  %v1762 = vrot.slane %v1455, 4
  %v1763 = vsel %vm1514, %v1762, %v1373
  %v1764 = vrot.slane %v1373, 4
  %v1765 = vsel %vm1514, %v1455, %v1764
  %v1767 = vunpack.c.l.s4 1983009808
  %v1768 = vunpack.c.0.s8 %v1767
  %v1769 = vperm.slane %v1763, %v1768
  %v1771 = vunpack.c.l.s4 1983009808
  %v1772 = vunpack.c.0.s8 %v1771
  %v1773 = vperm.slane %v1765, %v1772
  %v1774 = vrot.slane %v1496, 4
  %v1775 = vsel %vm1514, %v1774, %v1414
  %v1776 = vrot.slane %v1414, 4
  %v1777 = vsel %vm1514, %v1496, %v1776
  %v1779 = vunpack.c.l.s4 1983009808
  %v1780 = vunpack.c.0.s8 %v1779
  %v1781 = vperm.slane %v1775, %v1780
  %v1783 = vunpack.c.l.s4 1983009808
  %v1784 = vunpack.c.0.s8 %v1783
  %v1785 = vperm.slane %v1777, %v1784
  %v1786 = vrot.slane %v1757, 4
  %v1787 = vsel %vm1514, %v1786, %v1745
  %v1788 = vrot.slane %v1745, 4
  %v1789 = vsel %vm1514, %v1757, %v1788
  %v1791 = vunpack.c.l.s4 1934713408
  %v1792 = vunpack.c.0.s8 %v1791
  %v1793 = vperm.slane %v1787, %v1792
  %v1795 = vunpack.c.l.s4 1934713408
  %v1796 = vunpack.c.0.s8 %v1795
  %v1797 = vperm.slane %v1789, %v1796
  %v1798 = vrot.slane %v1761, 4
  %v1799 = vsel %vm1514, %v1798, %v1749
  %v1800 = vrot.slane %v1749, 4
  %v1801 = vsel %vm1514, %v1761, %v1800
  %v1803 = vunpack.c.l.s4 1934713408
  %v1804 = vunpack.c.0.s8 %v1803
  %v1805 = vperm.slane %v1799, %v1804
  %v1807 = vunpack.c.l.s4 1934713408
  %v1808 = vunpack.c.0.s8 %v1807
  %v1809 = vperm.slane %v1801, %v1808
  %v1810 = vrot.slane %v1781, 4
  %v1811 = vsel %vm1514, %v1810, %v1769
  %v1812 = vrot.slane %v1769, 4
  %v1813 = vsel %vm1514, %v1781, %v1812
  %v1815 = vunpack.c.l.s4 1934713408
  %v1816 = vunpack.c.0.s8 %v1815
  %v1817 = vperm.slane %v1811, %v1816
  %v1819 = vunpack.c.l.s4 1934713408
  %v1820 = vunpack.c.0.s8 %v1819
  %v1821 = vperm.slane %v1813, %v1820
  %v1822 = vrot.slane %v1785, 4
  %v1823 = vsel %vm1514, %v1822, %v1773
  %v1824 = vrot.slane %v1773, 4
  %v1825 = vsel %vm1514, %v1785, %v1824
  %v1827 = vunpack.c.l.s4 1934713408
  %v1828 = vunpack.c.0.s8 %v1827
  %v1829 = vperm.slane %v1823, %v1828
  %v1831 = vunpack.c.l.s4 1934713408
  %v1832 = vunpack.c.0.s8 %v1831
  %v1833 = vperm.slane %v1825, %v1832
  %v1834 = vrot.slane %v1817, 4
  %v1835 = vsel %vm1514, %v1834, %v1793
  %v1836 = vrot.slane %v1793, 4
  %v1837 = vsel %vm1514, %v1817, %v1836
  %v1838 = vrot.slane %v1821, 4
  %v1839 = vsel %vm1514, %v1838, %v1797
  %v1840 = vrot.slane %v1797, 4
  %v1841 = vsel %vm1514, %v1821, %v1840
  %v1842 = vrot.slane %v1829, 4
  %v1843 = vsel %vm1514, %v1842, %v1805
  %v1844 = vrot.slane %v1805, 4
  %v1845 = vsel %vm1514, %v1829, %v1844
  %v1846 = vrot.slane %v1833, 4
  %v1847 = vsel %vm1514, %v1846, %v1809
  %v1848 = vrot.slane %v1809, 4
  %v1849 = vsel %vm1514, %v1833, %v1848
  %v1850 = vrot.slane %v1294, 4
  %v1851 = vsel %vm1514, %v1850, %v1212
  %v1852 = vrot.slane %v1212, 4
  %v1853 = vsel %vm1514, %v1294, %v1852
  %v1855 = vunpack.c.l.s4 1983009808
  %v1856 = vunpack.c.0.s8 %v1855
  %v1857 = vperm.slane %v1851, %v1856
  %v1859 = vunpack.c.l.s4 1983009808
  %v1860 = vunpack.c.0.s8 %v1859
  %v1861 = vperm.slane %v1853, %v1860
  %v1862 = vrot.slane %v1335, 4
  %v1863 = vsel %vm1514, %v1862, %v1253
  %v1864 = vrot.slane %v1253, 4
  %v1865 = vsel %vm1514, %v1335, %v1864
  %v1867 = vunpack.c.l.s4 1983009808
  %v1868 = vunpack.c.0.s8 %v1867
  %v1869 = vperm.slane %v1863, %v1868
  %v1871 = vunpack.c.l.s4 1983009808
  %v1872 = vunpack.c.0.s8 %v1871
  %v1873 = vperm.slane %v1865, %v1872
  %v1874 = vrot.slane %v1458, 4
  %v1875 = vsel %vm1514, %v1874, %v1376
  %v1876 = vrot.slane %v1376, 4
  %v1877 = vsel %vm1514, %v1458, %v1876
  %v1879 = vunpack.c.l.s4 1983009808
  %v1880 = vunpack.c.0.s8 %v1879
  %v1881 = vperm.slane %v1875, %v1880
  %v1883 = vunpack.c.l.s4 1983009808
  %v1884 = vunpack.c.0.s8 %v1883
  %v1885 = vperm.slane %v1877, %v1884
  %v1886 = vrot.slane %v1499, 4
  %v1887 = vsel %vm1514, %v1886, %v1417
  %v1888 = vrot.slane %v1417, 4
  %v1889 = vsel %vm1514, %v1499, %v1888
  %v1891 = vunpack.c.l.s4 1983009808
  %v1892 = vunpack.c.0.s8 %v1891
  %v1893 = vperm.slane %v1887, %v1892
  %v1895 = vunpack.c.l.s4 1983009808
  %v1896 = vunpack.c.0.s8 %v1895
  %v1897 = vperm.slane %v1889, %v1896
  %v1898 = vrot.slane %v1869, 4
  %v1899 = vsel %vm1514, %v1898, %v1857
  %v1900 = vrot.slane %v1857, 4
  %v1901 = vsel %vm1514, %v1869, %v1900
  %v1903 = vunpack.c.l.s4 1934713408
  %v1904 = vunpack.c.0.s8 %v1903
  %v1905 = vperm.slane %v1899, %v1904
  %v1907 = vunpack.c.l.s4 1934713408
  %v1908 = vunpack.c.0.s8 %v1907
  %v1909 = vperm.slane %v1901, %v1908
  %v1910 = vrot.slane %v1873, 4
  %v1911 = vsel %vm1514, %v1910, %v1861
  %v1912 = vrot.slane %v1861, 4
  %v1913 = vsel %vm1514, %v1873, %v1912
  %v1915 = vunpack.c.l.s4 1934713408
  %v1916 = vunpack.c.0.s8 %v1915
  %v1917 = vperm.slane %v1911, %v1916
  %v1919 = vunpack.c.l.s4 1934713408
  %v1920 = vunpack.c.0.s8 %v1919
  %v1921 = vperm.slane %v1913, %v1920
  %v1922 = vrot.slane %v1893, 4
  %v1923 = vsel %vm1514, %v1922, %v1881
  %v1924 = vrot.slane %v1881, 4
  %v1925 = vsel %vm1514, %v1893, %v1924
  %v1927 = vunpack.c.l.s4 1934713408
  %v1928 = vunpack.c.0.s8 %v1927
  %v1929 = vperm.slane %v1923, %v1928
  %v1931 = vunpack.c.l.s4 1934713408
  %v1932 = vunpack.c.0.s8 %v1931
  %v1933 = vperm.slane %v1925, %v1932
  %v1934 = vrot.slane %v1897, 4
  %v1935 = vsel %vm1514, %v1934, %v1885
  %v1936 = vrot.slane %v1885, 4
  %v1937 = vsel %vm1514, %v1897, %v1936
  %v1939 = vunpack.c.l.s4 1934713408
  %v1940 = vunpack.c.0.s8 %v1939
  %v1941 = vperm.slane %v1935, %v1940
  %v1943 = vunpack.c.l.s4 1934713408
  %v1944 = vunpack.c.0.s8 %v1943
  %v1945 = vperm.slane %v1937, %v1944
  %v1946 = vrot.slane %v1929, 4
  %v1947 = vsel %vm1514, %v1946, %v1905
  %v1948 = vrot.slane %v1905, 4
  %v1949 = vsel %vm1514, %v1929, %v1948
  %v1950 = vrot.slane %v1933, 4
  %v1951 = vsel %vm1514, %v1950, %v1909
  %v1952 = vrot.slane %v1909, 4
  %v1953 = vsel %vm1514, %v1933, %v1952
  %v1954 = vrot.slane %v1941, 4
  %v1955 = vsel %vm1514, %v1954, %v1917
  %v1956 = vrot.slane %v1917, 4
  %v1957 = vsel %vm1514, %v1941, %v1956
  %v1958 = vrot.slane %v1945, 4
  %v1959 = vsel %vm1514, %v1958, %v1921
  %v1960 = vrot.slane %v1921, 4
  %v1961 = vsel %vm1514, %v1945, %v1960
  %v1962 = vrot.slane %v1297, 4
  %v1963 = vsel %vm1514, %v1962, %v1215
  %v1964 = vrot.slane %v1215, 4
  %v1965 = vsel %vm1514, %v1297, %v1964
  %v1967 = vunpack.c.l.s4 1983009808
  %v1968 = vunpack.c.0.s8 %v1967
  %v1969 = vperm.slane %v1963, %v1968
  %v1971 = vunpack.c.l.s4 1983009808
  %v1972 = vunpack.c.0.s8 %v1971
  %v1973 = vperm.slane %v1965, %v1972
  %v1974 = vrot.slane %v1338, 4
  %v1975 = vsel %vm1514, %v1974, %v1256
  %v1976 = vrot.slane %v1256, 4
  %v1977 = vsel %vm1514, %v1338, %v1976
  %v1979 = vunpack.c.l.s4 1983009808
  %v1980 = vunpack.c.0.s8 %v1979
  %v1981 = vperm.slane %v1975, %v1980
  %v1983 = vunpack.c.l.s4 1983009808
  %v1984 = vunpack.c.0.s8 %v1983
  %v1985 = vperm.slane %v1977, %v1984
  %v1986 = vrot.slane %v1461, 4
  %v1987 = vsel %vm1514, %v1986, %v1379
  %v1988 = vrot.slane %v1379, 4
  %v1989 = vsel %vm1514, %v1461, %v1988
  %v1991 = vunpack.c.l.s4 1983009808
  %v1992 = vunpack.c.0.s8 %v1991
  %v1993 = vperm.slane %v1987, %v1992
  %v1995 = vunpack.c.l.s4 1983009808
  %v1996 = vunpack.c.0.s8 %v1995
  %v1997 = vperm.slane %v1989, %v1996
  %v1998 = vrot.slane %v1502, 4
  %v1999 = vsel %vm1514, %v1998, %v1420
  %v2000 = vrot.slane %v1420, 4
  %v2001 = vsel %vm1514, %v1502, %v2000
  %v2003 = vunpack.c.l.s4 1983009808
  %v2004 = vunpack.c.0.s8 %v2003
  %v2005 = vperm.slane %v1999, %v2004
  %v2007 = vunpack.c.l.s4 1983009808
  %v2008 = vunpack.c.0.s8 %v2007
  %v2009 = vperm.slane %v2001, %v2008
  %v2010 = vrot.slane %v1981, 4
  %v2011 = vsel %vm1514, %v2010, %v1969
  %v2012 = vrot.slane %v1969, 4
  %v2013 = vsel %vm1514, %v1981, %v2012
  %v2015 = vunpack.c.l.s4 1934713408
  %v2016 = vunpack.c.0.s8 %v2015
  %v2017 = vperm.slane %v2011, %v2016
  %v2019 = vunpack.c.l.s4 1934713408
  %v2020 = vunpack.c.0.s8 %v2019
  %v2021 = vperm.slane %v2013, %v2020
  %v2022 = vrot.slane %v1985, 4
  %v2023 = vsel %vm1514, %v2022, %v1973
  %v2024 = vrot.slane %v1973, 4
  %v2025 = vsel %vm1514, %v1985, %v2024
  %v2027 = vunpack.c.l.s4 1934713408
  %v2028 = vunpack.c.0.s8 %v2027
  %v2029 = vperm.slane %v2023, %v2028
  %v2031 = vunpack.c.l.s4 1934713408
  %v2032 = vunpack.c.0.s8 %v2031
  %v2033 = vperm.slane %v2025, %v2032
  %v2034 = vrot.slane %v2005, 4
  %v2035 = vsel %vm1514, %v2034, %v1993
  %v2036 = vrot.slane %v1993, 4
  %v2037 = vsel %vm1514, %v2005, %v2036
  %v2039 = vunpack.c.l.s4 1934713408
  %v2040 = vunpack.c.0.s8 %v2039
  %v2041 = vperm.slane %v2035, %v2040
  %v2043 = vunpack.c.l.s4 1934713408
  %v2044 = vunpack.c.0.s8 %v2043
  %v2045 = vperm.slane %v2037, %v2044
  %v2046 = vrot.slane %v2009, 4
  %v2047 = vsel %vm1514, %v2046, %v1997
  %v2048 = vrot.slane %v1997, 4
  %v2049 = vsel %vm1514, %v2009, %v2048
  %v2051 = vunpack.c.l.s4 1934713408
  %v2052 = vunpack.c.0.s8 %v2051
  %v2053 = vperm.slane %v2047, %v2052
  %v2055 = vunpack.c.l.s4 1934713408
  %v2056 = vunpack.c.0.s8 %v2055
  %v2057 = vperm.slane %v2049, %v2056
  %v2058 = vrot.slane %v2041, 4
  %v2059 = vsel %vm1514, %v2058, %v2017
  %v2060 = vrot.slane %v2017, 4
  %v2061 = vsel %vm1514, %v2041, %v2060
  %v2062 = vrot.slane %v2045, 4
  %v2063 = vsel %vm1514, %v2062, %v2021
  %v2064 = vrot.slane %v2021, 4
  %v2065 = vsel %vm1514, %v2045, %v2064
  %v2066 = vrot.slane %v2053, 4
  %v2067 = vsel %vm1514, %v2066, %v2029
  %v2068 = vrot.slane %v2029, 4
  %v2069 = vsel %vm1514, %v2053, %v2068
  %v2070 = vrot.slane %v2057, 4
  %v2071 = vsel %vm1514, %v2070, %v2033
  %v2072 = vrot.slane %v2033, 4
  %v2073 = vsel %vm1514, %v2057, %v2072
  %v2074 = vrot.slane %v1300, 4
  %v2075 = vsel %vm1514, %v2074, %v1218
  %v2076 = vrot.slane %v1218, 4
  %v2077 = vsel %vm1514, %v1300, %v2076
  %v2079 = vunpack.c.l.s4 1983009808
  %v2080 = vunpack.c.0.s8 %v2079
  %v2081 = vperm.slane %v2075, %v2080
  %v2083 = vunpack.c.l.s4 1983009808
  %v2084 = vunpack.c.0.s8 %v2083
  %v2085 = vperm.slane %v2077, %v2084
  %v2086 = vrot.slane %v1341, 4
  %v2087 = vsel %vm1514, %v2086, %v1259
  %v2088 = vrot.slane %v1259, 4
  %v2089 = vsel %vm1514, %v1341, %v2088
  %v2091 = vunpack.c.l.s4 1983009808
  %v2092 = vunpack.c.0.s8 %v2091
  %v2093 = vperm.slane %v2087, %v2092
  %v2095 = vunpack.c.l.s4 1983009808
  %v2096 = vunpack.c.0.s8 %v2095
  %v2097 = vperm.slane %v2089, %v2096
  %v2098 = vrot.slane %v1464, 4
  %v2099 = vsel %vm1514, %v2098, %v1382
  %v2100 = vrot.slane %v1382, 4
  %v2101 = vsel %vm1514, %v1464, %v2100
  %v2103 = vunpack.c.l.s4 1983009808
  %v2104 = vunpack.c.0.s8 %v2103
  %v2105 = vperm.slane %v2099, %v2104
  %v2107 = vunpack.c.l.s4 1983009808
  %v2108 = vunpack.c.0.s8 %v2107
  %v2109 = vperm.slane %v2101, %v2108
  %v2110 = vrot.slane %v1505, 4
  %v2111 = vsel %vm1514, %v2110, %v1423
  %v2112 = vrot.slane %v1423, 4
  %v2113 = vsel %vm1514, %v1505, %v2112
  %v2115 = vunpack.c.l.s4 1983009808
  %v2116 = vunpack.c.0.s8 %v2115
  %v2117 = vperm.slane %v2111, %v2116
  %v2119 = vunpack.c.l.s4 1983009808
  %v2120 = vunpack.c.0.s8 %v2119
  %v2121 = vperm.slane %v2113, %v2120
  %v2122 = vrot.slane %v2093, 4
  %v2123 = vsel %vm1514, %v2122, %v2081
  %v2124 = vrot.slane %v2081, 4
  %v2125 = vsel %vm1514, %v2093, %v2124
  %v2127 = vunpack.c.l.s4 1934713408
  %v2128 = vunpack.c.0.s8 %v2127
  %v2129 = vperm.slane %v2123, %v2128
  %v2131 = vunpack.c.l.s4 1934713408
  %v2132 = vunpack.c.0.s8 %v2131
  %v2133 = vperm.slane %v2125, %v2132
  %v2134 = vrot.slane %v2097, 4
  %v2135 = vsel %vm1514, %v2134, %v2085
  %v2136 = vrot.slane %v2085, 4
  %v2137 = vsel %vm1514, %v2097, %v2136
  %v2139 = vunpack.c.l.s4 1934713408
  %v2140 = vunpack.c.0.s8 %v2139
  %v2141 = vperm.slane %v2135, %v2140
  %v2143 = vunpack.c.l.s4 1934713408
  %v2144 = vunpack.c.0.s8 %v2143
  %v2145 = vperm.slane %v2137, %v2144
  %v2146 = vrot.slane %v2117, 4
  %v2147 = vsel %vm1514, %v2146, %v2105
  %v2148 = vrot.slane %v2105, 4
  %v2149 = vsel %vm1514, %v2117, %v2148
  %v2151 = vunpack.c.l.s4 1934713408
  %v2152 = vunpack.c.0.s8 %v2151
  %v2153 = vperm.slane %v2147, %v2152
  %v2155 = vunpack.c.l.s4 1934713408
  %v2156 = vunpack.c.0.s8 %v2155
  %v2157 = vperm.slane %v2149, %v2156
  %v2158 = vrot.slane %v2121, 4
  %v2159 = vsel %vm1514, %v2158, %v2109
  %v2160 = vrot.slane %v2109, 4
  %v2161 = vsel %vm1514, %v2121, %v2160
  %v2163 = vunpack.c.l.s4 1934713408
  %v2164 = vunpack.c.0.s8 %v2163
  %v2165 = vperm.slane %v2159, %v2164
  %v2167 = vunpack.c.l.s4 1934713408
  %v2168 = vunpack.c.0.s8 %v2167
  %v2169 = vperm.slane %v2161, %v2168
  %v2170 = vrot.slane %v2153, 4
  %v2171 = vsel %vm1514, %v2170, %v2129
  %v2172 = vrot.slane %v2129, 4
  %v2173 = vsel %vm1514, %v2153, %v2172
  %v2174 = vrot.slane %v2157, 4
  %v2175 = vsel %vm1514, %v2174, %v2133
  %v2176 = vrot.slane %v2133, 4
  %v2177 = vsel %vm1514, %v2157, %v2176
  %v2178 = vrot.slane %v2165, 4
  %v2179 = vsel %vm1514, %v2178, %v2141
  %v2180 = vrot.slane %v2141, 4
  %v2181 = vsel %vm1514, %v2165, %v2180
  %v2182 = vrot.slane %v2169, 4
  %v2183 = vsel %vm1514, %v2182, %v2145
  %v2184 = vrot.slane %v2145, 4
  %v2185 = vsel %vm1514, %v2169, %v2184
  %v2186 = vrot.slane %v1303, 4
  %v2187 = vsel %vm1514, %v2186, %v1221
  %v2188 = vrot.slane %v1221, 4
  %v2189 = vsel %vm1514, %v1303, %v2188
  %v2191 = vunpack.c.l.s4 1983009808
  %v2192 = vunpack.c.0.s8 %v2191
  %v2193 = vperm.slane %v2187, %v2192
  %v2195 = vunpack.c.l.s4 1983009808
  %v2196 = vunpack.c.0.s8 %v2195
  %v2197 = vperm.slane %v2189, %v2196
  %v2198 = vrot.slane %v1344, 4
  %v2199 = vsel %vm1514, %v2198, %v1262
  %v2200 = vrot.slane %v1262, 4
  %v2201 = vsel %vm1514, %v1344, %v2200
  %v2203 = vunpack.c.l.s4 1983009808
  %v2204 = vunpack.c.0.s8 %v2203
  %v2205 = vperm.slane %v2199, %v2204
  %v2207 = vunpack.c.l.s4 1983009808
  %v2208 = vunpack.c.0.s8 %v2207
  %v2209 = vperm.slane %v2201, %v2208
  %v2210 = vrot.slane %v1467, 4
  %v2211 = vsel %vm1514, %v2210, %v1385
  %v2212 = vrot.slane %v1385, 4
  %v2213 = vsel %vm1514, %v1467, %v2212
  %v2215 = vunpack.c.l.s4 1983009808
  %v2216 = vunpack.c.0.s8 %v2215
  %v2217 = vperm.slane %v2211, %v2216
  %v2219 = vunpack.c.l.s4 1983009808
  %v2220 = vunpack.c.0.s8 %v2219
  %v2221 = vperm.slane %v2213, %v2220
  %v2222 = vrot.slane %v1508, 4
  %v2223 = vsel %vm1514, %v2222, %v1426
  %v2224 = vrot.slane %v1426, 4
  %v2225 = vsel %vm1514, %v1508, %v2224
  %v2227 = vunpack.c.l.s4 1983009808
  %v2228 = vunpack.c.0.s8 %v2227
  %v2229 = vperm.slane %v2223, %v2228
  %v2231 = vunpack.c.l.s4 1983009808
  %v2232 = vunpack.c.0.s8 %v2231
  %v2233 = vperm.slane %v2225, %v2232
  %v2234 = vrot.slane %v2205, 4
  %v2235 = vsel %vm1514, %v2234, %v2193
  %v2236 = vrot.slane %v2193, 4
  %v2237 = vsel %vm1514, %v2205, %v2236
  %v2239 = vunpack.c.l.s4 1934713408
  %v2240 = vunpack.c.0.s8 %v2239
  %v2241 = vperm.slane %v2235, %v2240
  %v2243 = vunpack.c.l.s4 1934713408
  %v2244 = vunpack.c.0.s8 %v2243
  %v2245 = vperm.slane %v2237, %v2244
  %v2246 = vrot.slane %v2209, 4
  %v2247 = vsel %vm1514, %v2246, %v2197
  %v2248 = vrot.slane %v2197, 4
  %v2249 = vsel %vm1514, %v2209, %v2248
  %v2251 = vunpack.c.l.s4 1934713408
  %v2252 = vunpack.c.0.s8 %v2251
  %v2253 = vperm.slane %v2247, %v2252
  %v2255 = vunpack.c.l.s4 1934713408
  %v2256 = vunpack.c.0.s8 %v2255
  %v2257 = vperm.slane %v2249, %v2256
  %v2258 = vrot.slane %v2229, 4
  %v2259 = vsel %vm1514, %v2258, %v2217
  %v2260 = vrot.slane %v2217, 4
  %v2261 = vsel %vm1514, %v2229, %v2260
  %v2263 = vunpack.c.l.s4 1934713408
  %v2264 = vunpack.c.0.s8 %v2263
  %v2265 = vperm.slane %v2259, %v2264
  %v2267 = vunpack.c.l.s4 1934713408
  %v2268 = vunpack.c.0.s8 %v2267
  %v2269 = vperm.slane %v2261, %v2268
  %v2270 = vrot.slane %v2233, 4
  %v2271 = vsel %vm1514, %v2270, %v2221
  %v2272 = vrot.slane %v2221, 4
  %v2273 = vsel %vm1514, %v2233, %v2272
  %v2275 = vunpack.c.l.s4 1934713408
  %v2276 = vunpack.c.0.s8 %v2275
  %v2277 = vperm.slane %v2271, %v2276
  %v2279 = vunpack.c.l.s4 1934713408
  %v2280 = vunpack.c.0.s8 %v2279
  %v2281 = vperm.slane %v2273, %v2280
  %v2282 = vrot.slane %v2265, 4
  %v2283 = vsel %vm1514, %v2282, %v2241
  %v2284 = vrot.slane %v2241, 4
  %v2285 = vsel %vm1514, %v2265, %v2284
  %v2286 = vrot.slane %v2269, 4
  %v2287 = vsel %vm1514, %v2286, %v2245
  %v2288 = vrot.slane %v2245, 4
  %v2289 = vsel %vm1514, %v2269, %v2288
  %v2290 = vrot.slane %v2277, 4
  %v2291 = vsel %vm1514, %v2290, %v2253
  %v2292 = vrot.slane %v2253, 4
  %v2293 = vsel %vm1514, %v2277, %v2292
  %v2294 = vrot.slane %v2281, 4
  %v2295 = vsel %vm1514, %v2294, %v2257
  %v2296 = vrot.slane %v2257, 4
  %v2297 = vsel %vm1514, %v2281, %v2296
  %v2298 = vrot.slane %v1306, 4
  %v2299 = vsel %vm1514, %v2298, %v1224
  %v2301 = vunpack.c.l.s4 1983009808
  %v2302 = vunpack.c.0.s8 %v2301
  %v2303 = vperm.slane %v2299, %v2302
  %v2304 = vrot.slane %v1347, 4
  %v2305 = vsel %vm1514, %v2304, %v1265
  %v2307 = vunpack.c.l.s4 1983009808
  %v2308 = vunpack.c.0.s8 %v2307
  %v2309 = vperm.slane %v2305, %v2308
  %v2310 = vrot.slane %v1470, 4
  %v2311 = vsel %vm1514, %v2310, %v1388
  %v2313 = vunpack.c.l.s4 1983009808
  %v2314 = vunpack.c.0.s8 %v2313
  %v2315 = vperm.slane %v2311, %v2314
  %v2316 = vrot.slane %v1511, 4
  %v2317 = vsel %vm1514, %v2316, %v1429
  %v2319 = vunpack.c.l.s4 1983009808
  %v2320 = vunpack.c.0.s8 %v2319
  %v2321 = vperm.slane %v2317, %v2320
  %v2322 = vrot.slane %v2309, 4
  %v2323 = vsel %vm1514, %v2322, %v2303
  %v2324 = vrot.slane %v2303, 4
  %v2325 = vsel %vm1514, %v2309, %v2324
  %v2327 = vunpack.c.l.s4 1934713408
  %v2328 = vunpack.c.0.s8 %v2327
  %v2329 = vperm.slane %v2323, %v2328
  %v2331 = vunpack.c.l.s4 1934713408
  %v2332 = vunpack.c.0.s8 %v2331
  %v2333 = vperm.slane %v2325, %v2332
  %v2334 = vrot.slane %v2321, 4
  %v2335 = vsel %vm1514, %v2334, %v2315
  %v2336 = vrot.slane %v2315, 4
  %v2337 = vsel %vm1514, %v2321, %v2336
  %v2339 = vunpack.c.l.s4 1934713408
  %v2340 = vunpack.c.0.s8 %v2339
  %v2341 = vperm.slane %v2335, %v2340
  %v2343 = vunpack.c.l.s4 1934713408
  %v2344 = vunpack.c.0.s8 %v2343
  %v2345 = vperm.slane %v2337, %v2344
  %v2346 = vrot.slane %v2341, 4
  %v2347 = vsel %vm1514, %v2346, %v2329
  %v2348 = vrot.slane %v2329, 4
  %v2349 = vsel %vm1514, %v2341, %v2348
  %v2350 = vrot.slane %v2345, 4
  %v2351 = vsel %vm1514, %v2350, %v2333
  %v2352 = vrot.slane %v2333, 4
  %v2353 = vsel %vm1514, %v2345, %v2352
  %v2354 = vld [vmem:[%s7] sm:$0xff]
  %v2355 = vmul.f32 %v56, 3.5
  %2357 = vset.pattern.permute.xlu0 0
  %2358 = vperm.xlu0 %2357, %v2354
  %v2359 = vpop.permute.xlu0 %2358
  %v2362 = vperm.slane %v2355, 0
  %v2364 = vsub.f32 %v2359, %v2362
  %v2365 = vand.u32 2147483647, %v2364
  %v2366 = vsub.f32 1.0, %v2365
  %v2367 = vmax.f32 %v2366, 0.0
  %v2369 = vrot.slane %v2367, 1
  %v2370 = vrot.slane %v2367, 2
  %v2371 = vrot.slane %v2367, 3
  %v2372 = vrot.slane %v2367, 4
  %v2373 = vrot.slane %v2367, 5
  %v2374 = vrot.slane %v2367, 6
  %v2375 = vrot.slane %v2367, 7
  %v2376 = vperm.slane %v2367, 0
  %v2377 = vperm.slane %v2369, 0
  %v2378 = vperm.slane %v2370, 0
  %v2379 = vperm.slane %v2371, 0
  %v2380 = vperm.slane %v2372, 0
  %v2381 = vperm.slane %v2373, 0
  %v2382 = vperm.slane %v2374, 0
  %v2383 = vperm.slane %v2375, 0
  %v2392 = vmul.f32 %v2376, %v1611
  %v2393 = vmul.f32 %v2377, %v1611
  %v2394 = vmul.f32 %v2378, %v1611
  %v2395 = vmul.f32 %v2379, %v1611
  %v2396 = vmul.f32 %v2380, %v1611
  %v2397 = vmul.f32 %v2381, %v1611
  %v2398 = vmul.f32 %v2382, %v1611
  %v2399 = vmul.f32 %v2383, %v1611
  %v2400 = vmul.f32 %v2376, %v1613
  %v2401 = vmul.f32 %v2377, %v1613
  %v2402 = vmul.f32 %v2378, %v1613
  %v2403 = vmul.f32 %v2379, %v1613
  %v2404 = vmul.f32 %v2380, %v1613
  %v2405 = vmul.f32 %v2381, %v1613
  %v2406 = vmul.f32 %v2382, %v1613
  %v2407 = vmul.f32 %v2383, %v1613
  %v2408 = vmul.f32 %v2376, %v1615
  %v2409 = vmul.f32 %v2377, %v1615
  %v2410 = vmul.f32 %v2378, %v1615
  %v2411 = vmul.f32 %v2379, %v1615
  %v2412 = vmul.f32 %v2380, %v1615
  %v2413 = vmul.f32 %v2381, %v1615
  %v2414 = vmul.f32 %v2382, %v1615
  %v2415 = vmul.f32 %v2383, %v1615
  %v2416 = vmul.f32 %v2376, %v1617
  %v2417 = vmul.f32 %v2377, %v1617
  %v2418 = vmul.f32 %v2378, %v1617
  %v2419 = vmul.f32 %v2379, %v1617
  %v2420 = vmul.f32 %v2380, %v1617
  %v2421 = vmul.f32 %v2381, %v1617
  %v2422 = vmul.f32 %v2382, %v1617
  %v2423 = vmul.f32 %v2383, %v1617
  %v2424 = vadd.f32 %v999, %v2392
  %v2425 = vadd.f32 %v1000, %v2393
  %v2426 = vadd.f32 %v1001, %v2394
  %v2427 = vadd.f32 %v1002, %v2395
  %v2428 = vadd.f32 %v1003, %v2396
  %v2429 = vadd.f32 %v1004, %v2397
  %v2430 = vadd.f32 %v1005, %v2398
  %v2431 = vadd.f32 %v1006, %v2399
  %v2432 = vadd.f32 %v1007, %v2400
  %v2433 = vadd.f32 %v1008, %v2401
  %v2434 = vadd.f32 %v1009, %v2402
  %v2435 = vadd.f32 %v1010, %v2403
  %v2436 = vadd.f32 %v1011, %v2404
  %v2437 = vadd.f32 %v1012, %v2405
  %v2438 = vadd.f32 %v1013, %v2406
  %v2439 = vadd.f32 %v1014, %v2407
  %v2440 = vadd.f32 %v1015, %v2408
  %v2441 = vadd.f32 %v1016, %v2409
  %v2442 = vadd.f32 %v1017, %v2410
  %v2443 = vadd.f32 %v1018, %v2411
  %v2444 = vadd.f32 %v1019, %v2412
  %v2445 = vadd.f32 %v1020, %v2413
  %v2446 = vadd.f32 %v1021, %v2414
  %v2447 = vadd.f32 %v1022, %v2415
  %v2448 = vadd.f32 %v1023, %v2416
  %v2449 = vadd.f32 %v1024, %v2417
  %v2450 = vadd.f32 %v1025, %v2418
  %v2451 = vadd.f32 %v1026, %v2419
  %v2452 = vadd.f32 %v1027, %v2420
  %v2453 = vadd.f32 %v1028, %v2421
  %v2454 = vadd.f32 %v1029, %v2422
  %v2455 = vadd.f32 %v1030, %v2423
  %v2456 = vsub.f32 %v2364, 1.0
  %v2457 = vand.u32 2147483647, %v2456
  %v2458 = vsub.f32 1.0, %v2457
  %v2459 = vmax.f32 %v2458, 0.0
  %v2461 = vrot.slane %v2459, 1
  %v2462 = vrot.slane %v2459, 2
  %v2463 = vrot.slane %v2459, 3
  %v2464 = vrot.slane %v2459, 4
  %v2465 = vrot.slane %v2459, 5
  %v2466 = vrot.slane %v2459, 6
  %v2467 = vrot.slane %v2459, 7
  %v2468 = vperm.slane %v2459, 0
  %v2469 = vperm.slane %v2461, 0
  %v2470 = vperm.slane %v2462, 0
  %v2471 = vperm.slane %v2463, 0
  %v2472 = vperm.slane %v2464, 0
  %v2473 = vperm.slane %v2465, 0
  %v2474 = vperm.slane %v2466, 0
  %v2475 = vperm.slane %v2467, 0
  %v2484 = vmul.f32 %v2468, %v1619
  %v2485 = vmul.f32 %v2469, %v1619
  %v2486 = vmul.f32 %v2470, %v1619
  %v2487 = vmul.f32 %v2471, %v1619
  %v2488 = vmul.f32 %v2472, %v1619
  %v2489 = vmul.f32 %v2473, %v1619
  %v2490 = vmul.f32 %v2474, %v1619
  %v2491 = vmul.f32 %v2475, %v1619
  %v2492 = vmul.f32 %v2468, %v1621
  %v2493 = vmul.f32 %v2469, %v1621
  %v2494 = vmul.f32 %v2470, %v1621
  %v2495 = vmul.f32 %v2471, %v1621
  %v2496 = vmul.f32 %v2472, %v1621
  %v2497 = vmul.f32 %v2473, %v1621
  %v2498 = vmul.f32 %v2474, %v1621
  %v2499 = vmul.f32 %v2475, %v1621
  %v2500 = vmul.f32 %v2468, %v1623
  %v2501 = vmul.f32 %v2469, %v1623
  %v2502 = vmul.f32 %v2470, %v1623
  %v2503 = vmul.f32 %v2471, %v1623
  %v2504 = vmul.f32 %v2472, %v1623
  %v2505 = vmul.f32 %v2473, %v1623
  %v2506 = vmul.f32 %v2474, %v1623
  %v2507 = vmul.f32 %v2475, %v1623
  %v2508 = vmul.f32 %v2468, %v1625
  %v2509 = vmul.f32 %v2469, %v1625
  %v2510 = vmul.f32 %v2470, %v1625
  %v2511 = vmul.f32 %v2471, %v1625
  %v2512 = vmul.f32 %v2472, %v1625
  %v2513 = vmul.f32 %v2473, %v1625
  %v2514 = vmul.f32 %v2474, %v1625
  %v2515 = vmul.f32 %v2475, %v1625
  %v2516 = vadd.f32 %v2424, %v2484
  %v2517 = vadd.f32 %v2425, %v2485
  %v2518 = vadd.f32 %v2426, %v2486
  %v2519 = vadd.f32 %v2427, %v2487
  %v2520 = vadd.f32 %v2428, %v2488
  %v2521 = vadd.f32 %v2429, %v2489
  %v2522 = vadd.f32 %v2430, %v2490
  %v2523 = vadd.f32 %v2431, %v2491
  %v2524 = vadd.f32 %v2432, %v2492
  %v2525 = vadd.f32 %v2433, %v2493
  %v2526 = vadd.f32 %v2434, %v2494
  %v2527 = vadd.f32 %v2435, %v2495
  %v2528 = vadd.f32 %v2436, %v2496
  %v2529 = vadd.f32 %v2437, %v2497
  %v2530 = vadd.f32 %v2438, %v2498
  %v2531 = vadd.f32 %v2439, %v2499
  %v2532 = vadd.f32 %v2440, %v2500
  %v2533 = vadd.f32 %v2441, %v2501
  %v2534 = vadd.f32 %v2442, %v2502
  %v2535 = vadd.f32 %v2443, %v2503
  %v2536 = vadd.f32 %v2444, %v2504
  %v2537 = vadd.f32 %v2445, %v2505
  %v2538 = vadd.f32 %v2446, %v2506
  %v2539 = vadd.f32 %v2447, %v2507
  %v2540 = vadd.f32 %v2448, %v2508
  %v2541 = vadd.f32 %v2449, %v2509
  %v2542 = vadd.f32 %v2450, %v2510
  %v2543 = vadd.f32 %v2451, %v2511
  %v2544 = vadd.f32 %v2452, %v2512
  %v2545 = vadd.f32 %v2453, %v2513
  %v2546 = vadd.f32 %v2454, %v2514
  %v2547 = vadd.f32 %v2455, %v2515
  %v2548 = vsub.f32 %v2364, 2.0
  %v2549 = vand.u32 2147483647, %v2548
  %v2550 = vsub.f32 1.0, %v2549
  %v2551 = vmax.f32 %v2550, 0.0
  %v2553 = vrot.slane %v2551, 1
  %v2554 = vrot.slane %v2551, 2
  %v2555 = vrot.slane %v2551, 3
  %v2556 = vrot.slane %v2551, 4
  %v2557 = vrot.slane %v2551, 5
  %v2558 = vrot.slane %v2551, 6
  %v2559 = vrot.slane %v2551, 7
  %v2560 = vperm.slane %v2551, 0
  %v2561 = vperm.slane %v2553, 0
  %v2562 = vperm.slane %v2554, 0
  %v2563 = vperm.slane %v2555, 0
  %v2564 = vperm.slane %v2556, 0
  %v2565 = vperm.slane %v2557, 0
  %v2566 = vperm.slane %v2558, 0
  %v2567 = vperm.slane %v2559, 0
  %v2576 = vmul.f32 %v2560, %v1723
  %v2577 = vmul.f32 %v2561, %v1723
  %v2578 = vmul.f32 %v2562, %v1723
  %v2579 = vmul.f32 %v2563, %v1723
  %v2580 = vmul.f32 %v2564, %v1723
  %v2581 = vmul.f32 %v2565, %v1723
  %v2582 = vmul.f32 %v2566, %v1723
  %v2583 = vmul.f32 %v2567, %v1723
  %v2584 = vmul.f32 %v2560, %v1725
  %v2585 = vmul.f32 %v2561, %v1725
  %v2586 = vmul.f32 %v2562, %v1725
  %v2587 = vmul.f32 %v2563, %v1725
  %v2588 = vmul.f32 %v2564, %v1725
  %v2589 = vmul.f32 %v2565, %v1725
  %v2590 = vmul.f32 %v2566, %v1725
  %v2591 = vmul.f32 %v2567, %v1725
  %v2592 = vmul.f32 %v2560, %v1727
  %v2593 = vmul.f32 %v2561, %v1727
  %v2594 = vmul.f32 %v2562, %v1727
  %v2595 = vmul.f32 %v2563, %v1727
  %v2596 = vmul.f32 %v2564, %v1727
  %v2597 = vmul.f32 %v2565, %v1727
  %v2598 = vmul.f32 %v2566, %v1727
  %v2599 = vmul.f32 %v2567, %v1727
  %v2600 = vmul.f32 %v2560, %v1729
  %v2601 = vmul.f32 %v2561, %v1729
  %v2602 = vmul.f32 %v2562, %v1729
  %v2603 = vmul.f32 %v2563, %v1729
  %v2604 = vmul.f32 %v2564, %v1729
  %v2605 = vmul.f32 %v2565, %v1729
  %v2606 = vmul.f32 %v2566, %v1729
  %v2607 = vmul.f32 %v2567, %v1729
  %v2608 = vadd.f32 %v2516, %v2576
  %v2609 = vadd.f32 %v2517, %v2577
  %v2610 = vadd.f32 %v2518, %v2578
  %v2611 = vadd.f32 %v2519, %v2579
  %v2612 = vadd.f32 %v2520, %v2580
  %v2613 = vadd.f32 %v2521, %v2581
  %v2614 = vadd.f32 %v2522, %v2582
  %v2615 = vadd.f32 %v2523, %v2583
  %v2616 = vadd.f32 %v2524, %v2584
  %v2617 = vadd.f32 %v2525, %v2585
  %v2618 = vadd.f32 %v2526, %v2586
  %v2619 = vadd.f32 %v2527, %v2587
  %v2620 = vadd.f32 %v2528, %v2588
  %v2621 = vadd.f32 %v2529, %v2589
  %v2622 = vadd.f32 %v2530, %v2590
  %v2623 = vadd.f32 %v2531, %v2591
  %v2624 = vadd.f32 %v2532, %v2592
  %v2625 = vadd.f32 %v2533, %v2593
  %v2626 = vadd.f32 %v2534, %v2594
  %v2627 = vadd.f32 %v2535, %v2595
  %v2628 = vadd.f32 %v2536, %v2596
  %v2629 = vadd.f32 %v2537, %v2597
  %v2630 = vadd.f32 %v2538, %v2598
  %v2631 = vadd.f32 %v2539, %v2599
  %v2632 = vadd.f32 %v2540, %v2600
  %v2633 = vadd.f32 %v2541, %v2601
  %v2634 = vadd.f32 %v2542, %v2602
  %v2635 = vadd.f32 %v2543, %v2603
  %v2636 = vadd.f32 %v2544, %v2604
  %v2637 = vadd.f32 %v2545, %v2605
  %v2638 = vadd.f32 %v2546, %v2606
  %v2639 = vadd.f32 %v2547, %v2607
  %v2640 = vsub.f32 %v2364, 3.0
  %v2641 = vand.u32 2147483647, %v2640
  %v2642 = vsub.f32 1.0, %v2641
  %v2643 = vmax.f32 %v2642, 0.0
  %v2645 = vrot.slane %v2643, 1
  %v2646 = vrot.slane %v2643, 2
  %v2647 = vrot.slane %v2643, 3
  %v2648 = vrot.slane %v2643, 4
  %v2649 = vrot.slane %v2643, 5
  %v2650 = vrot.slane %v2643, 6
  %v2651 = vrot.slane %v2643, 7
  %v2652 = vperm.slane %v2643, 0
  %v2653 = vperm.slane %v2645, 0
  %v2654 = vperm.slane %v2646, 0
  %v2655 = vperm.slane %v2647, 0
  %v2656 = vperm.slane %v2648, 0
  %v2657 = vperm.slane %v2649, 0
  %v2658 = vperm.slane %v2650, 0
  %v2659 = vperm.slane %v2651, 0
  %v2668 = vmul.f32 %v2652, %v1731
  %v2669 = vmul.f32 %v2653, %v1731
  %v2670 = vmul.f32 %v2654, %v1731
  %v2671 = vmul.f32 %v2655, %v1731
  %v2672 = vmul.f32 %v2656, %v1731
  %v2673 = vmul.f32 %v2657, %v1731
  %v2674 = vmul.f32 %v2658, %v1731
  %v2675 = vmul.f32 %v2659, %v1731
  %v2676 = vmul.f32 %v2652, %v1733
  %v2677 = vmul.f32 %v2653, %v1733
  %v2678 = vmul.f32 %v2654, %v1733
  %v2679 = vmul.f32 %v2655, %v1733
  %v2680 = vmul.f32 %v2656, %v1733
  %v2681 = vmul.f32 %v2657, %v1733
  %v2682 = vmul.f32 %v2658, %v1733
  %v2683 = vmul.f32 %v2659, %v1733
  %v2684 = vmul.f32 %v2652, %v1735
  %v2685 = vmul.f32 %v2653, %v1735
  %v2686 = vmul.f32 %v2654, %v1735
  %v2687 = vmul.f32 %v2655, %v1735
  %v2688 = vmul.f32 %v2656, %v1735
  %v2689 = vmul.f32 %v2657, %v1735
  %v2690 = vmul.f32 %v2658, %v1735
  %v2691 = vmul.f32 %v2659, %v1735
  %v2692 = vmul.f32 %v2652, %v1737
  %v2693 = vmul.f32 %v2653, %v1737
  %v2694 = vmul.f32 %v2654, %v1737
  %v2695 = vmul.f32 %v2655, %v1737
  %v2696 = vmul.f32 %v2656, %v1737
  %v2697 = vmul.f32 %v2657, %v1737
  %v2698 = vmul.f32 %v2658, %v1737
  %v2699 = vmul.f32 %v2659, %v1737
  %v2700 = vadd.f32 %v2608, %v2668
  %v2701 = vadd.f32 %v2609, %v2669
  %v2702 = vadd.f32 %v2610, %v2670
  %v2703 = vadd.f32 %v2611, %v2671
  %v2704 = vadd.f32 %v2612, %v2672
  %v2705 = vadd.f32 %v2613, %v2673
  %v2706 = vadd.f32 %v2614, %v2674
  %v2707 = vadd.f32 %v2615, %v2675
  %v2708 = vadd.f32 %v2616, %v2676
  %v2709 = vadd.f32 %v2617, %v2677
  %v2710 = vadd.f32 %v2618, %v2678
  %v2711 = vadd.f32 %v2619, %v2679
  %v2712 = vadd.f32 %v2620, %v2680
  %v2713 = vadd.f32 %v2621, %v2681
  %v2714 = vadd.f32 %v2622, %v2682
  %v2715 = vadd.f32 %v2623, %v2683
  %v2716 = vadd.f32 %v2624, %v2684
  %v2717 = vadd.f32 %v2625, %v2685
  %v2718 = vadd.f32 %v2626, %v2686
  %v2719 = vadd.f32 %v2627, %v2687
  %v2720 = vadd.f32 %v2628, %v2688
  %v2721 = vadd.f32 %v2629, %v2689
  %v2722 = vadd.f32 %v2630, %v2690
  %v2723 = vadd.f32 %v2631, %v2691
  %v2724 = vadd.f32 %v2632, %v2692
  %v2725 = vadd.f32 %v2633, %v2693
  %v2726 = vadd.f32 %v2634, %v2694
  %v2727 = vadd.f32 %v2635, %v2695
  %v2728 = vadd.f32 %v2636, %v2696
  %v2729 = vadd.f32 %v2637, %v2697
  %v2730 = vadd.f32 %v2638, %v2698
  %v2731 = vadd.f32 %v2639, %v2699
  %v2732 = vsub.f32 %v2364, 4.0
  %v2733 = vand.u32 2147483647, %v2732
  %v2734 = vsub.f32 1.0, %v2733
  %v2735 = vmax.f32 %v2734, 0.0
  %v2737 = vrot.slane %v2735, 1
  %v2738 = vrot.slane %v2735, 2
  %v2739 = vrot.slane %v2735, 3
  %v2740 = vrot.slane %v2735, 4
  %v2741 = vrot.slane %v2735, 5
  %v2742 = vrot.slane %v2735, 6
  %v2743 = vrot.slane %v2735, 7
  %v2744 = vperm.slane %v2735, 0
  %v2745 = vperm.slane %v2737, 0
  %v2746 = vperm.slane %v2738, 0
  %v2747 = vperm.slane %v2739, 0
  %v2748 = vperm.slane %v2740, 0
  %v2749 = vperm.slane %v2741, 0
  %v2750 = vperm.slane %v2742, 0
  %v2751 = vperm.slane %v2743, 0
  %v2760 = vmul.f32 %v2744, %v1835
  %v2761 = vmul.f32 %v2745, %v1835
  %v2762 = vmul.f32 %v2746, %v1835
  %v2763 = vmul.f32 %v2747, %v1835
  %v2764 = vmul.f32 %v2748, %v1835
  %v2765 = vmul.f32 %v2749, %v1835
  %v2766 = vmul.f32 %v2750, %v1835
  %v2767 = vmul.f32 %v2751, %v1835
  %v2768 = vmul.f32 %v2744, %v1837
  %v2769 = vmul.f32 %v2745, %v1837
  %v2770 = vmul.f32 %v2746, %v1837
  %v2771 = vmul.f32 %v2747, %v1837
  %v2772 = vmul.f32 %v2748, %v1837
  %v2773 = vmul.f32 %v2749, %v1837
  %v2774 = vmul.f32 %v2750, %v1837
  %v2775 = vmul.f32 %v2751, %v1837
  %v2776 = vmul.f32 %v2744, %v1839
  %v2777 = vmul.f32 %v2745, %v1839
  %v2778 = vmul.f32 %v2746, %v1839
  %v2779 = vmul.f32 %v2747, %v1839
  %v2780 = vmul.f32 %v2748, %v1839
  %v2781 = vmul.f32 %v2749, %v1839
  %v2782 = vmul.f32 %v2750, %v1839
  %v2783 = vmul.f32 %v2751, %v1839
  %v2784 = vmul.f32 %v2744, %v1841
  %v2785 = vmul.f32 %v2745, %v1841
  %v2786 = vmul.f32 %v2746, %v1841
  %v2787 = vmul.f32 %v2747, %v1841
  %v2788 = vmul.f32 %v2748, %v1841
  %v2789 = vmul.f32 %v2749, %v1841
  %v2790 = vmul.f32 %v2750, %v1841
  %v2791 = vmul.f32 %v2751, %v1841
  %v2792 = vadd.f32 %v2700, %v2760
  %v2793 = vadd.f32 %v2701, %v2761
  %v2794 = vadd.f32 %v2702, %v2762
  %v2795 = vadd.f32 %v2703, %v2763
  %v2796 = vadd.f32 %v2704, %v2764
  %v2797 = vadd.f32 %v2705, %v2765
  %v2798 = vadd.f32 %v2706, %v2766
  %v2799 = vadd.f32 %v2707, %v2767
  %v2800 = vadd.f32 %v2708, %v2768
  %v2801 = vadd.f32 %v2709, %v2769
  %v2802 = vadd.f32 %v2710, %v2770
  %v2803 = vadd.f32 %v2711, %v2771
  %v2804 = vadd.f32 %v2712, %v2772
  %v2805 = vadd.f32 %v2713, %v2773
  %v2806 = vadd.f32 %v2714, %v2774
  %v2807 = vadd.f32 %v2715, %v2775
  %v2808 = vadd.f32 %v2716, %v2776
  %v2809 = vadd.f32 %v2717, %v2777
  %v2810 = vadd.f32 %v2718, %v2778
  %v2811 = vadd.f32 %v2719, %v2779
  %v2812 = vadd.f32 %v2720, %v2780
  %v2813 = vadd.f32 %v2721, %v2781
  %v2814 = vadd.f32 %v2722, %v2782
  %v2815 = vadd.f32 %v2723, %v2783
  %v2816 = vadd.f32 %v2724, %v2784
  %v2817 = vadd.f32 %v2725, %v2785
  %v2818 = vadd.f32 %v2726, %v2786
  %v2819 = vadd.f32 %v2727, %v2787
  %v2820 = vadd.f32 %v2728, %v2788
  %v2821 = vadd.f32 %v2729, %v2789
  %v2822 = vadd.f32 %v2730, %v2790
  %v2823 = vadd.f32 %v2731, %v2791
  %v2824 = vsub.f32 %v2364, 5.0
  %v2825 = vand.u32 2147483647, %v2824
  %v2826 = vsub.f32 1.0, %v2825
  %v2827 = vmax.f32 %v2826, 0.0
  %v2829 = vrot.slane %v2827, 1
  %v2830 = vrot.slane %v2827, 2
  %v2831 = vrot.slane %v2827, 3
  %v2832 = vrot.slane %v2827, 4
  %v2833 = vrot.slane %v2827, 5
  %v2834 = vrot.slane %v2827, 6
  %v2835 = vrot.slane %v2827, 7
  %v2836 = vperm.slane %v2827, 0
  %v2837 = vperm.slane %v2829, 0
  %v2838 = vperm.slane %v2830, 0
  %v2839 = vperm.slane %v2831, 0
  %v2840 = vperm.slane %v2832, 0
  %v2841 = vperm.slane %v2833, 0
  %v2842 = vperm.slane %v2834, 0
  %v2843 = vperm.slane %v2835, 0
  %v2852 = vmul.f32 %v2836, %v1843
  %v2853 = vmul.f32 %v2837, %v1843
  %v2854 = vmul.f32 %v2838, %v1843
  %v2855 = vmul.f32 %v2839, %v1843
  %v2856 = vmul.f32 %v2840, %v1843
  %v2857 = vmul.f32 %v2841, %v1843
  %v2858 = vmul.f32 %v2842, %v1843
  %v2859 = vmul.f32 %v2843, %v1843
  %v2860 = vmul.f32 %v2836, %v1845
  %v2861 = vmul.f32 %v2837, %v1845
  %v2862 = vmul.f32 %v2838, %v1845
  %v2863 = vmul.f32 %v2839, %v1845
  %v2864 = vmul.f32 %v2840, %v1845
  %v2865 = vmul.f32 %v2841, %v1845
  %v2866 = vmul.f32 %v2842, %v1845
  %v2867 = vmul.f32 %v2843, %v1845
  %v2868 = vmul.f32 %v2836, %v1847
  %v2869 = vmul.f32 %v2837, %v1847
  %v2870 = vmul.f32 %v2838, %v1847
  %v2871 = vmul.f32 %v2839, %v1847
  %v2872 = vmul.f32 %v2840, %v1847
  %v2873 = vmul.f32 %v2841, %v1847
  %v2874 = vmul.f32 %v2842, %v1847
  %v2875 = vmul.f32 %v2843, %v1847
  %v2876 = vmul.f32 %v2836, %v1849
  %v2877 = vmul.f32 %v2837, %v1849
  %v2878 = vmul.f32 %v2838, %v1849
  %v2879 = vmul.f32 %v2839, %v1849
  %v2880 = vmul.f32 %v2840, %v1849
  %v2881 = vmul.f32 %v2841, %v1849
  %v2882 = vmul.f32 %v2842, %v1849
  %v2883 = vmul.f32 %v2843, %v1849
  %v2884 = vadd.f32 %v2792, %v2852
  %v2885 = vadd.f32 %v2793, %v2853
  %v2886 = vadd.f32 %v2794, %v2854
  %v2887 = vadd.f32 %v2795, %v2855
  %v2888 = vadd.f32 %v2796, %v2856
  %v2889 = vadd.f32 %v2797, %v2857
  %v2890 = vadd.f32 %v2798, %v2858
  %v2891 = vadd.f32 %v2799, %v2859
  %v2892 = vadd.f32 %v2800, %v2860
  %v2893 = vadd.f32 %v2801, %v2861
  %v2894 = vadd.f32 %v2802, %v2862
  %v2895 = vadd.f32 %v2803, %v2863
  %v2896 = vadd.f32 %v2804, %v2864
  %v2897 = vadd.f32 %v2805, %v2865
  %v2898 = vadd.f32 %v2806, %v2866
  %v2899 = vadd.f32 %v2807, %v2867
  %v2900 = vadd.f32 %v2808, %v2868
  %v2901 = vadd.f32 %v2809, %v2869
  %v2902 = vadd.f32 %v2810, %v2870
  %v2903 = vadd.f32 %v2811, %v2871
  %v2904 = vadd.f32 %v2812, %v2872
  %v2905 = vadd.f32 %v2813, %v2873
  %v2906 = vadd.f32 %v2814, %v2874
  %v2907 = vadd.f32 %v2815, %v2875
  %v2908 = vadd.f32 %v2816, %v2876
  %v2909 = vadd.f32 %v2817, %v2877
  %v2910 = vadd.f32 %v2818, %v2878
  %v2911 = vadd.f32 %v2819, %v2879
  %v2912 = vadd.f32 %v2820, %v2880
  %v2913 = vadd.f32 %v2821, %v2881
  %v2914 = vadd.f32 %v2822, %v2882
  %v2915 = vadd.f32 %v2823, %v2883
  %v2916 = vsub.f32 %v2364, 6.0
  %v2917 = vand.u32 2147483647, %v2916
  %v2918 = vsub.f32 1.0, %v2917
  %v2919 = vmax.f32 %v2918, 0.0
  %v2921 = vrot.slane %v2919, 1
  %v2922 = vrot.slane %v2919, 2
  %v2923 = vrot.slane %v2919, 3
  %v2924 = vrot.slane %v2919, 4
  %v2925 = vrot.slane %v2919, 5
  %v2926 = vrot.slane %v2919, 6
  %v2927 = vrot.slane %v2919, 7
  %v2928 = vperm.slane %v2919, 0
  %v2929 = vperm.slane %v2921, 0
  %v2930 = vperm.slane %v2922, 0
  %v2931 = vperm.slane %v2923, 0
  %v2932 = vperm.slane %v2924, 0
  %v2933 = vperm.slane %v2925, 0
  %v2934 = vperm.slane %v2926, 0
  %v2935 = vperm.slane %v2927, 0
  %v2944 = vmul.f32 %v2928, %v1947
  %v2945 = vmul.f32 %v2929, %v1947
  %v2946 = vmul.f32 %v2930, %v1947
  %v2947 = vmul.f32 %v2931, %v1947
  %v2948 = vmul.f32 %v2932, %v1947
  %v2949 = vmul.f32 %v2933, %v1947
  %v2950 = vmul.f32 %v2934, %v1947
  %v2951 = vmul.f32 %v2935, %v1947
  %v2952 = vmul.f32 %v2928, %v1949
  %v2953 = vmul.f32 %v2929, %v1949
  %v2954 = vmul.f32 %v2930, %v1949
  %v2955 = vmul.f32 %v2931, %v1949
  %v2956 = vmul.f32 %v2932, %v1949
  %v2957 = vmul.f32 %v2933, %v1949
  %v2958 = vmul.f32 %v2934, %v1949
  %v2959 = vmul.f32 %v2935, %v1949
  %v2960 = vmul.f32 %v2928, %v1951
  %v2961 = vmul.f32 %v2929, %v1951
  %v2962 = vmul.f32 %v2930, %v1951
  %v2963 = vmul.f32 %v2931, %v1951
  %v2964 = vmul.f32 %v2932, %v1951
  %v2965 = vmul.f32 %v2933, %v1951
  %v2966 = vmul.f32 %v2934, %v1951
  %v2967 = vmul.f32 %v2935, %v1951
  %v2968 = vmul.f32 %v2928, %v1953
  %v2969 = vmul.f32 %v2929, %v1953
  %v2970 = vmul.f32 %v2930, %v1953
  %v2971 = vmul.f32 %v2931, %v1953
  %v2972 = vmul.f32 %v2932, %v1953
  %v2973 = vmul.f32 %v2933, %v1953
  %v2974 = vmul.f32 %v2934, %v1953
  %v2975 = vmul.f32 %v2935, %v1953
  %v2976 = vadd.f32 %v2884, %v2944
  %v2977 = vadd.f32 %v2885, %v2945
  %v2978 = vadd.f32 %v2886, %v2946
  %v2979 = vadd.f32 %v2887, %v2947
  %v2980 = vadd.f32 %v2888, %v2948
  %v2981 = vadd.f32 %v2889, %v2949
  %v2982 = vadd.f32 %v2890, %v2950
  %v2983 = vadd.f32 %v2891, %v2951
  %v2984 = vadd.f32 %v2892, %v2952
  %v2985 = vadd.f32 %v2893, %v2953
  %v2986 = vadd.f32 %v2894, %v2954
  %v2987 = vadd.f32 %v2895, %v2955
  %v2988 = vadd.f32 %v2896, %v2956
  %v2989 = vadd.f32 %v2897, %v2957
  %v2990 = vadd.f32 %v2898, %v2958
  %v2991 = vadd.f32 %v2899, %v2959
  %v2992 = vadd.f32 %v2900, %v2960
  %v2993 = vadd.f32 %v2901, %v2961
  %v2994 = vadd.f32 %v2902, %v2962
  %v2995 = vadd.f32 %v2903, %v2963
  %v2996 = vadd.f32 %v2904, %v2964
  %v2997 = vadd.f32 %v2905, %v2965
  %v2998 = vadd.f32 %v2906, %v2966
  %v2999 = vadd.f32 %v2907, %v2967
  %v3000 = vadd.f32 %v2908, %v2968
  %v3001 = vadd.f32 %v2909, %v2969
  %v3002 = vadd.f32 %v2910, %v2970
  %v3003 = vadd.f32 %v2911, %v2971
  %v3004 = vadd.f32 %v2912, %v2972
  %v3005 = vadd.f32 %v2913, %v2973
  %v3006 = vadd.f32 %v2914, %v2974
  %v3007 = vadd.f32 %v2915, %v2975
  %v3008 = vsub.f32 %v2364, 7.0
  %v3009 = vand.u32 2147483647, %v3008
  %v3010 = vsub.f32 1.0, %v3009
  %v3011 = vmax.f32 %v3010, 0.0
  %v3013 = vrot.slane %v3011, 1
  %v3014 = vrot.slane %v3011, 2
  %v3015 = vrot.slane %v3011, 3
  %v3016 = vrot.slane %v3011, 4
  %v3017 = vrot.slane %v3011, 5
  %v3018 = vrot.slane %v3011, 6
  %v3019 = vrot.slane %v3011, 7
  %v3020 = vperm.slane %v3011, 0
  %v3021 = vperm.slane %v3013, 0
  %v3022 = vperm.slane %v3014, 0
  %v3023 = vperm.slane %v3015, 0
  %v3024 = vperm.slane %v3016, 0
  %v3025 = vperm.slane %v3017, 0
  %v3026 = vperm.slane %v3018, 0
  %v3027 = vperm.slane %v3019, 0
  %v3036 = vmul.f32 %v3020, %v1955
  %v3037 = vmul.f32 %v3021, %v1955
  %v3038 = vmul.f32 %v3022, %v1955
  %v3039 = vmul.f32 %v3023, %v1955
  %v3040 = vmul.f32 %v3024, %v1955
  %v3041 = vmul.f32 %v3025, %v1955
  %v3042 = vmul.f32 %v3026, %v1955
  %v3043 = vmul.f32 %v3027, %v1955
  %v3044 = vmul.f32 %v3020, %v1957
  %v3045 = vmul.f32 %v3021, %v1957
  %v3046 = vmul.f32 %v3022, %v1957
  %v3047 = vmul.f32 %v3023, %v1957
  %v3048 = vmul.f32 %v3024, %v1957
  %v3049 = vmul.f32 %v3025, %v1957
  %v3050 = vmul.f32 %v3026, %v1957
  %v3051 = vmul.f32 %v3027, %v1957
  %v3052 = vmul.f32 %v3020, %v1959
  %v3053 = vmul.f32 %v3021, %v1959
  %v3054 = vmul.f32 %v3022, %v1959
  %v3055 = vmul.f32 %v3023, %v1959
  %v3056 = vmul.f32 %v3024, %v1959
  %v3057 = vmul.f32 %v3025, %v1959
  %v3058 = vmul.f32 %v3026, %v1959
  %v3059 = vmul.f32 %v3027, %v1959
  %v3060 = vmul.f32 %v3020, %v1961
  %v3061 = vmul.f32 %v3021, %v1961
  %v3062 = vmul.f32 %v3022, %v1961
  %v3063 = vmul.f32 %v3023, %v1961
  %v3064 = vmul.f32 %v3024, %v1961
  %v3065 = vmul.f32 %v3025, %v1961
  %v3066 = vmul.f32 %v3026, %v1961
  %v3067 = vmul.f32 %v3027, %v1961
  %v3068 = vadd.f32 %v2976, %v3036
  %v3069 = vadd.f32 %v2977, %v3037
  %v3070 = vadd.f32 %v2978, %v3038
  %v3071 = vadd.f32 %v2979, %v3039
  %v3072 = vadd.f32 %v2980, %v3040
  %v3073 = vadd.f32 %v2981, %v3041
  %v3074 = vadd.f32 %v2982, %v3042
  %v3075 = vadd.f32 %v2983, %v3043
  %v3076 = vadd.f32 %v2984, %v3044
  %v3077 = vadd.f32 %v2985, %v3045
  %v3078 = vadd.f32 %v2986, %v3046
  %v3079 = vadd.f32 %v2987, %v3047
  %v3080 = vadd.f32 %v2988, %v3048
  %v3081 = vadd.f32 %v2989, %v3049
  %v3082 = vadd.f32 %v2990, %v3050
  %v3083 = vadd.f32 %v2991, %v3051
  %v3084 = vadd.f32 %v2992, %v3052
  %v3085 = vadd.f32 %v2993, %v3053
  %v3086 = vadd.f32 %v2994, %v3054
  %v3087 = vadd.f32 %v2995, %v3055
  %v3088 = vadd.f32 %v2996, %v3056
  %v3089 = vadd.f32 %v2997, %v3057
  %v3090 = vadd.f32 %v2998, %v3058
  %v3091 = vadd.f32 %v2999, %v3059
  %v3092 = vadd.f32 %v3000, %v3060
  %v3093 = vadd.f32 %v3001, %v3061
  %v3094 = vadd.f32 %v3002, %v3062
  %v3095 = vadd.f32 %v3003, %v3063
  %v3096 = vadd.f32 %v3004, %v3064
  %v3097 = vadd.f32 %v3005, %v3065
  %v3098 = vadd.f32 %v3006, %v3066
  %v3099 = vadd.f32 %v3007, %v3067
  %v3100 = vsub.f32 %v2364, 8.0
  %v3101 = vand.u32 2147483647, %v3100
  %v3102 = vsub.f32 1.0, %v3101
  %v3103 = vmax.f32 %v3102, 0.0
  %v3105 = vrot.slane %v3103, 1
  %v3106 = vrot.slane %v3103, 2
  %v3107 = vrot.slane %v3103, 3
  %v3108 = vrot.slane %v3103, 4
  %v3109 = vrot.slane %v3103, 5
  %v3110 = vrot.slane %v3103, 6
  %v3111 = vrot.slane %v3103, 7
  %v3112 = vperm.slane %v3103, 0
  %v3113 = vperm.slane %v3105, 0
  %v3114 = vperm.slane %v3106, 0
  %v3115 = vperm.slane %v3107, 0
  %v3116 = vperm.slane %v3108, 0
  %v3117 = vperm.slane %v3109, 0
  %v3118 = vperm.slane %v3110, 0
  %v3119 = vperm.slane %v3111, 0
  %v3128 = vmul.f32 %v3112, %v2059
  %v3129 = vmul.f32 %v3113, %v2059
  %v3130 = vmul.f32 %v3114, %v2059
  %v3131 = vmul.f32 %v3115, %v2059
  %v3132 = vmul.f32 %v3116, %v2059
  %v3133 = vmul.f32 %v3117, %v2059
  %v3134 = vmul.f32 %v3118, %v2059
  %v3135 = vmul.f32 %v3119, %v2059
  %v3136 = vmul.f32 %v3112, %v2061
  %v3137 = vmul.f32 %v3113, %v2061
  %v3138 = vmul.f32 %v3114, %v2061
  %v3139 = vmul.f32 %v3115, %v2061
  %v3140 = vmul.f32 %v3116, %v2061
  %v3141 = vmul.f32 %v3117, %v2061
  %v3142 = vmul.f32 %v3118, %v2061
  %v3143 = vmul.f32 %v3119, %v2061
  %v3144 = vmul.f32 %v3112, %v2063
  %v3145 = vmul.f32 %v3113, %v2063
  %v3146 = vmul.f32 %v3114, %v2063
  %v3147 = vmul.f32 %v3115, %v2063
  %v3148 = vmul.f32 %v3116, %v2063
  %v3149 = vmul.f32 %v3117, %v2063
  %v3150 = vmul.f32 %v3118, %v2063
  %v3151 = vmul.f32 %v3119, %v2063
  %v3152 = vmul.f32 %v3112, %v2065
  %v3153 = vmul.f32 %v3113, %v2065
  %v3154 = vmul.f32 %v3114, %v2065
  %v3155 = vmul.f32 %v3115, %v2065
  %v3156 = vmul.f32 %v3116, %v2065
  %v3157 = vmul.f32 %v3117, %v2065
  %v3158 = vmul.f32 %v3118, %v2065
  %v3159 = vmul.f32 %v3119, %v2065
  %v3160 = vadd.f32 %v3068, %v3128
  %v3161 = vadd.f32 %v3069, %v3129
  %v3162 = vadd.f32 %v3070, %v3130
  %v3163 = vadd.f32 %v3071, %v3131
  %v3164 = vadd.f32 %v3072, %v3132
  %v3165 = vadd.f32 %v3073, %v3133
  %v3166 = vadd.f32 %v3074, %v3134
  %v3167 = vadd.f32 %v3075, %v3135
  %v3168 = vadd.f32 %v3076, %v3136
  %v3169 = vadd.f32 %v3077, %v3137
  %v3170 = vadd.f32 %v3078, %v3138
  %v3171 = vadd.f32 %v3079, %v3139
  %v3172 = vadd.f32 %v3080, %v3140
  %v3173 = vadd.f32 %v3081, %v3141
  %v3174 = vadd.f32 %v3082, %v3142
  %v3175 = vadd.f32 %v3083, %v3143
  %v3176 = vadd.f32 %v3084, %v3144
  %v3177 = vadd.f32 %v3085, %v3145
  %v3178 = vadd.f32 %v3086, %v3146
  %v3179 = vadd.f32 %v3087, %v3147
  %v3180 = vadd.f32 %v3088, %v3148
  %v3181 = vadd.f32 %v3089, %v3149
  %v3182 = vadd.f32 %v3090, %v3150
  %v3183 = vadd.f32 %v3091, %v3151
  %v3184 = vadd.f32 %v3092, %v3152
  %v3185 = vadd.f32 %v3093, %v3153
  %v3186 = vadd.f32 %v3094, %v3154
  %v3187 = vadd.f32 %v3095, %v3155
  %v3188 = vadd.f32 %v3096, %v3156
  %v3189 = vadd.f32 %v3097, %v3157
  %v3190 = vadd.f32 %v3098, %v3158
  %v3191 = vadd.f32 %v3099, %v3159
  %v3192 = vsub.f32 %v2364, 9.0
  %v3193 = vand.u32 2147483647, %v3192
  %v3194 = vsub.f32 1.0, %v3193
  %v3195 = vmax.f32 %v3194, 0.0
  %v3197 = vrot.slane %v3195, 1
  %v3198 = vrot.slane %v3195, 2
  %v3199 = vrot.slane %v3195, 3
  %v3200 = vrot.slane %v3195, 4
  %v3201 = vrot.slane %v3195, 5
  %v3202 = vrot.slane %v3195, 6
  %v3203 = vrot.slane %v3195, 7
  %v3204 = vperm.slane %v3195, 0
  %v3205 = vperm.slane %v3197, 0
  %v3206 = vperm.slane %v3198, 0
  %v3207 = vperm.slane %v3199, 0
  %v3208 = vperm.slane %v3200, 0
  %v3209 = vperm.slane %v3201, 0
  %v3210 = vperm.slane %v3202, 0
  %v3211 = vperm.slane %v3203, 0
  %v3220 = vmul.f32 %v3204, %v2067
  %v3221 = vmul.f32 %v3205, %v2067
  %v3222 = vmul.f32 %v3206, %v2067
  %v3223 = vmul.f32 %v3207, %v2067
  %v3224 = vmul.f32 %v3208, %v2067
  %v3225 = vmul.f32 %v3209, %v2067
  %v3226 = vmul.f32 %v3210, %v2067
  %v3227 = vmul.f32 %v3211, %v2067
  %v3228 = vmul.f32 %v3204, %v2069
  %v3229 = vmul.f32 %v3205, %v2069
  %v3230 = vmul.f32 %v3206, %v2069
  %v3231 = vmul.f32 %v3207, %v2069
  %v3232 = vmul.f32 %v3208, %v2069
  %v3233 = vmul.f32 %v3209, %v2069
  %v3234 = vmul.f32 %v3210, %v2069
  %v3235 = vmul.f32 %v3211, %v2069
  %v3236 = vmul.f32 %v3204, %v2071
  %v3237 = vmul.f32 %v3205, %v2071
  %v3238 = vmul.f32 %v3206, %v2071
  %v3239 = vmul.f32 %v3207, %v2071
  %v3240 = vmul.f32 %v3208, %v2071
  %v3241 = vmul.f32 %v3209, %v2071
  %v3242 = vmul.f32 %v3210, %v2071
  %v3243 = vmul.f32 %v3211, %v2071
  %v3244 = vmul.f32 %v3204, %v2073
  %v3245 = vmul.f32 %v3205, %v2073
  %v3246 = vmul.f32 %v3206, %v2073
  %v3247 = vmul.f32 %v3207, %v2073
  %v3248 = vmul.f32 %v3208, %v2073
  %v3249 = vmul.f32 %v3209, %v2073
  %v3250 = vmul.f32 %v3210, %v2073
  %v3251 = vmul.f32 %v3211, %v2073
  %v3252 = vadd.f32 %v3160, %v3220
  %v3253 = vadd.f32 %v3161, %v3221
  %v3254 = vadd.f32 %v3162, %v3222
  %v3255 = vadd.f32 %v3163, %v3223
  %v3256 = vadd.f32 %v3164, %v3224
  %v3257 = vadd.f32 %v3165, %v3225
  %v3258 = vadd.f32 %v3166, %v3226
  %v3259 = vadd.f32 %v3167, %v3227
  %v3260 = vadd.f32 %v3168, %v3228
  %v3261 = vadd.f32 %v3169, %v3229
  %v3262 = vadd.f32 %v3170, %v3230
  %v3263 = vadd.f32 %v3171, %v3231
  %v3264 = vadd.f32 %v3172, %v3232
  %v3265 = vadd.f32 %v3173, %v3233
  %v3266 = vadd.f32 %v3174, %v3234
  %v3267 = vadd.f32 %v3175, %v3235
  %v3268 = vadd.f32 %v3176, %v3236
  %v3269 = vadd.f32 %v3177, %v3237
  %v3270 = vadd.f32 %v3178, %v3238
  %v3271 = vadd.f32 %v3179, %v3239
  %v3272 = vadd.f32 %v3180, %v3240
  %v3273 = vadd.f32 %v3181, %v3241
  %v3274 = vadd.f32 %v3182, %v3242
  %v3275 = vadd.f32 %v3183, %v3243
  %v3276 = vadd.f32 %v3184, %v3244
  %v3277 = vadd.f32 %v3185, %v3245
  %v3278 = vadd.f32 %v3186, %v3246
  %v3279 = vadd.f32 %v3187, %v3247
  %v3280 = vadd.f32 %v3188, %v3248
  %v3281 = vadd.f32 %v3189, %v3249
  %v3282 = vadd.f32 %v3190, %v3250
  %v3283 = vadd.f32 %v3191, %v3251
  %v3284 = vsub.f32 %v2364, 10.0
  %v3285 = vand.u32 2147483647, %v3284
  %v3286 = vsub.f32 1.0, %v3285
  %v3287 = vmax.f32 %v3286, 0.0
  %v3289 = vrot.slane %v3287, 1
  %v3290 = vrot.slane %v3287, 2
  %v3291 = vrot.slane %v3287, 3
  %v3292 = vrot.slane %v3287, 4
  %v3293 = vrot.slane %v3287, 5
  %v3294 = vrot.slane %v3287, 6
  %v3295 = vrot.slane %v3287, 7
  %v3296 = vperm.slane %v3287, 0
  %v3297 = vperm.slane %v3289, 0
  %v3298 = vperm.slane %v3290, 0
  %v3299 = vperm.slane %v3291, 0
  %v3300 = vperm.slane %v3292, 0
  %v3301 = vperm.slane %v3293, 0
  %v3302 = vperm.slane %v3294, 0
  %v3303 = vperm.slane %v3295, 0
  %v3312 = vmul.f32 %v3296, %v2171
  %v3313 = vmul.f32 %v3297, %v2171
  %v3314 = vmul.f32 %v3298, %v2171
  %v3315 = vmul.f32 %v3299, %v2171
  %v3316 = vmul.f32 %v3300, %v2171
  %v3317 = vmul.f32 %v3301, %v2171
  %v3318 = vmul.f32 %v3302, %v2171
  %v3319 = vmul.f32 %v3303, %v2171
  %v3320 = vmul.f32 %v3296, %v2173
  %v3321 = vmul.f32 %v3297, %v2173
  %v3322 = vmul.f32 %v3298, %v2173
  %v3323 = vmul.f32 %v3299, %v2173
  %v3324 = vmul.f32 %v3300, %v2173
  %v3325 = vmul.f32 %v3301, %v2173
  %v3326 = vmul.f32 %v3302, %v2173
  %v3327 = vmul.f32 %v3303, %v2173
  %v3328 = vmul.f32 %v3296, %v2175
  %v3329 = vmul.f32 %v3297, %v2175
  %v3330 = vmul.f32 %v3298, %v2175
  %v3331 = vmul.f32 %v3299, %v2175
  %v3332 = vmul.f32 %v3300, %v2175
  %v3333 = vmul.f32 %v3301, %v2175
  %v3334 = vmul.f32 %v3302, %v2175
  %v3335 = vmul.f32 %v3303, %v2175
  %v3336 = vmul.f32 %v3296, %v2177
  %v3337 = vmul.f32 %v3297, %v2177
  %v3338 = vmul.f32 %v3298, %v2177
  %v3339 = vmul.f32 %v3299, %v2177
  %v3340 = vmul.f32 %v3300, %v2177
  %v3341 = vmul.f32 %v3301, %v2177
  %v3342 = vmul.f32 %v3302, %v2177
  %v3343 = vmul.f32 %v3303, %v2177
  %v3344 = vadd.f32 %v3252, %v3312
  %v3345 = vadd.f32 %v3253, %v3313
  %v3346 = vadd.f32 %v3254, %v3314
  %v3347 = vadd.f32 %v3255, %v3315
  %v3348 = vadd.f32 %v3256, %v3316
  %v3349 = vadd.f32 %v3257, %v3317
  %v3350 = vadd.f32 %v3258, %v3318
  %v3351 = vadd.f32 %v3259, %v3319
  %v3352 = vadd.f32 %v3260, %v3320
  %v3353 = vadd.f32 %v3261, %v3321
  %v3354 = vadd.f32 %v3262, %v3322
  %v3355 = vadd.f32 %v3263, %v3323
  %v3356 = vadd.f32 %v3264, %v3324
  %v3357 = vadd.f32 %v3265, %v3325
  %v3358 = vadd.f32 %v3266, %v3326
  %v3359 = vadd.f32 %v3267, %v3327
  %v3360 = vadd.f32 %v3268, %v3328
  %v3361 = vadd.f32 %v3269, %v3329
  %v3362 = vadd.f32 %v3270, %v3330
  %v3363 = vadd.f32 %v3271, %v3331
  %v3364 = vadd.f32 %v3272, %v3332
  %v3365 = vadd.f32 %v3273, %v3333
  %v3366 = vadd.f32 %v3274, %v3334
  %v3367 = vadd.f32 %v3275, %v3335
  %v3368 = vadd.f32 %v3276, %v3336
  %v3369 = vadd.f32 %v3277, %v3337
  %v3370 = vadd.f32 %v3278, %v3338
  %v3371 = vadd.f32 %v3279, %v3339
  %v3372 = vadd.f32 %v3280, %v3340
  %v3373 = vadd.f32 %v3281, %v3341
  %v3374 = vadd.f32 %v3282, %v3342
  %v3375 = vadd.f32 %v3283, %v3343
  %v3376 = vsub.f32 %v2364, 11.0
  %v3377 = vand.u32 2147483647, %v3376
  %v3378 = vsub.f32 1.0, %v3377
  %v3379 = vmax.f32 %v3378, 0.0
  %v3381 = vrot.slane %v3379, 1
  %v3382 = vrot.slane %v3379, 2
  %v3383 = vrot.slane %v3379, 3
  %v3384 = vrot.slane %v3379, 4
  %v3385 = vrot.slane %v3379, 5
  %v3386 = vrot.slane %v3379, 6
  %v3387 = vrot.slane %v3379, 7
  %v3388 = vperm.slane %v3379, 0
  %v3389 = vperm.slane %v3381, 0
  %v3390 = vperm.slane %v3382, 0
  %v3391 = vperm.slane %v3383, 0
  %v3392 = vperm.slane %v3384, 0
  %v3393 = vperm.slane %v3385, 0
  %v3394 = vperm.slane %v3386, 0
  %v3395 = vperm.slane %v3387, 0
  %v3404 = vmul.f32 %v3388, %v2179
  %v3405 = vmul.f32 %v3389, %v2179
  %v3406 = vmul.f32 %v3390, %v2179
  %v3407 = vmul.f32 %v3391, %v2179
  %v3408 = vmul.f32 %v3392, %v2179
  %v3409 = vmul.f32 %v3393, %v2179
  %v3410 = vmul.f32 %v3394, %v2179
  %v3411 = vmul.f32 %v3395, %v2179
  %v3412 = vmul.f32 %v3388, %v2181
  %v3413 = vmul.f32 %v3389, %v2181
  %v3414 = vmul.f32 %v3390, %v2181
  %v3415 = vmul.f32 %v3391, %v2181
  %v3416 = vmul.f32 %v3392, %v2181
  %v3417 = vmul.f32 %v3393, %v2181
  %v3418 = vmul.f32 %v3394, %v2181
  %v3419 = vmul.f32 %v3395, %v2181
  %v3420 = vmul.f32 %v3388, %v2183
  %v3421 = vmul.f32 %v3389, %v2183
  %v3422 = vmul.f32 %v3390, %v2183
  %v3423 = vmul.f32 %v3391, %v2183
  %v3424 = vmul.f32 %v3392, %v2183
  %v3425 = vmul.f32 %v3393, %v2183
  %v3426 = vmul.f32 %v3394, %v2183
  %v3427 = vmul.f32 %v3395, %v2183
  %v3428 = vmul.f32 %v3388, %v2185
  %v3429 = vmul.f32 %v3389, %v2185
  %v3430 = vmul.f32 %v3390, %v2185
  %v3431 = vmul.f32 %v3391, %v2185
  %v3432 = vmul.f32 %v3392, %v2185
  %v3433 = vmul.f32 %v3393, %v2185
  %v3434 = vmul.f32 %v3394, %v2185
  %v3435 = vmul.f32 %v3395, %v2185
  %v3436 = vadd.f32 %v3344, %v3404
  %v3437 = vadd.f32 %v3345, %v3405
  %v3438 = vadd.f32 %v3346, %v3406
  %v3439 = vadd.f32 %v3347, %v3407
  %v3440 = vadd.f32 %v3348, %v3408
  %v3441 = vadd.f32 %v3349, %v3409
  %v3442 = vadd.f32 %v3350, %v3410
  %v3443 = vadd.f32 %v3351, %v3411
  %v3444 = vadd.f32 %v3352, %v3412
  %v3445 = vadd.f32 %v3353, %v3413
  %v3446 = vadd.f32 %v3354, %v3414
  %v3447 = vadd.f32 %v3355, %v3415
  %v3448 = vadd.f32 %v3356, %v3416
  %v3449 = vadd.f32 %v3357, %v3417
  %v3450 = vadd.f32 %v3358, %v3418
  %v3451 = vadd.f32 %v3359, %v3419
  %v3452 = vadd.f32 %v3360, %v3420
  %v3453 = vadd.f32 %v3361, %v3421
  %v3454 = vadd.f32 %v3362, %v3422
  %v3455 = vadd.f32 %v3363, %v3423
  %v3456 = vadd.f32 %v3364, %v3424
  %v3457 = vadd.f32 %v3365, %v3425
  %v3458 = vadd.f32 %v3366, %v3426
  %v3459 = vadd.f32 %v3367, %v3427
  %v3460 = vadd.f32 %v3368, %v3428
  %v3461 = vadd.f32 %v3369, %v3429
  %v3462 = vadd.f32 %v3370, %v3430
  %v3463 = vadd.f32 %v3371, %v3431
  %v3464 = vadd.f32 %v3372, %v3432
  %v3465 = vadd.f32 %v3373, %v3433
  %v3466 = vadd.f32 %v3374, %v3434
  %v3467 = vadd.f32 %v3375, %v3435
  %v3468 = vsub.f32 %v2364, 12.0
  %v3469 = vand.u32 2147483647, %v3468
  %v3470 = vsub.f32 1.0, %v3469
  %v3471 = vmax.f32 %v3470, 0.0
  %v3473 = vrot.slane %v3471, 1
  %v3474 = vrot.slane %v3471, 2
  %v3475 = vrot.slane %v3471, 3
  %v3476 = vrot.slane %v3471, 4
  %v3477 = vrot.slane %v3471, 5
  %v3478 = vrot.slane %v3471, 6
  %v3479 = vrot.slane %v3471, 7
  %v3480 = vperm.slane %v3471, 0
  %v3481 = vperm.slane %v3473, 0
  %v3482 = vperm.slane %v3474, 0
  %v3483 = vperm.slane %v3475, 0
  %v3484 = vperm.slane %v3476, 0
  %v3485 = vperm.slane %v3477, 0
  %v3486 = vperm.slane %v3478, 0
  %v3487 = vperm.slane %v3479, 0
  %v3496 = vmul.f32 %v3480, %v2283
  %v3497 = vmul.f32 %v3481, %v2283
  %v3498 = vmul.f32 %v3482, %v2283
  %v3499 = vmul.f32 %v3483, %v2283
  %v3500 = vmul.f32 %v3484, %v2283
  %v3501 = vmul.f32 %v3485, %v2283
  %v3502 = vmul.f32 %v3486, %v2283
  %v3503 = vmul.f32 %v3487, %v2283
  %v3504 = vmul.f32 %v3480, %v2285
  %v3505 = vmul.f32 %v3481, %v2285
  %v3506 = vmul.f32 %v3482, %v2285
  %v3507 = vmul.f32 %v3483, %v2285
  %v3508 = vmul.f32 %v3484, %v2285
  %v3509 = vmul.f32 %v3485, %v2285
  %v3510 = vmul.f32 %v3486, %v2285
  %v3511 = vmul.f32 %v3487, %v2285
  %v3512 = vmul.f32 %v3480, %v2287
  %v3513 = vmul.f32 %v3481, %v2287
  %v3514 = vmul.f32 %v3482, %v2287
  %v3515 = vmul.f32 %v3483, %v2287
  %v3516 = vmul.f32 %v3484, %v2287
  %v3517 = vmul.f32 %v3485, %v2287
  %v3518 = vmul.f32 %v3486, %v2287
  %v3519 = vmul.f32 %v3487, %v2287
  %v3520 = vmul.f32 %v3480, %v2289
  %v3521 = vmul.f32 %v3481, %v2289
  %v3522 = vmul.f32 %v3482, %v2289
  %v3523 = vmul.f32 %v3483, %v2289
  %v3524 = vmul.f32 %v3484, %v2289
  %v3525 = vmul.f32 %v3485, %v2289
  %v3526 = vmul.f32 %v3486, %v2289
  %v3527 = vmul.f32 %v3487, %v2289
  %v3528 = vadd.f32 %v3436, %v3496
  %v3529 = vadd.f32 %v3437, %v3497
  %v3530 = vadd.f32 %v3438, %v3498
  %v3531 = vadd.f32 %v3439, %v3499
  %v3532 = vadd.f32 %v3440, %v3500
  %v3533 = vadd.f32 %v3441, %v3501
  %v3534 = vadd.f32 %v3442, %v3502
  %v3535 = vadd.f32 %v3443, %v3503
  %v3536 = vadd.f32 %v3444, %v3504
  %v3537 = vadd.f32 %v3445, %v3505
  %v3538 = vadd.f32 %v3446, %v3506
  %v3539 = vadd.f32 %v3447, %v3507
  %v3540 = vadd.f32 %v3448, %v3508
  %v3541 = vadd.f32 %v3449, %v3509
  %v3542 = vadd.f32 %v3450, %v3510
  %v3543 = vadd.f32 %v3451, %v3511
  %v3544 = vadd.f32 %v3452, %v3512
  %v3545 = vadd.f32 %v3453, %v3513
  %v3546 = vadd.f32 %v3454, %v3514
  %v3547 = vadd.f32 %v3455, %v3515
  %v3548 = vadd.f32 %v3456, %v3516
  %v3549 = vadd.f32 %v3457, %v3517
  %v3550 = vadd.f32 %v3458, %v3518
  %v3551 = vadd.f32 %v3459, %v3519
  %v3552 = vadd.f32 %v3460, %v3520
  %v3553 = vadd.f32 %v3461, %v3521
  %v3554 = vadd.f32 %v3462, %v3522
  %v3555 = vadd.f32 %v3463, %v3523
  %v3556 = vadd.f32 %v3464, %v3524
  %v3557 = vadd.f32 %v3465, %v3525
  %v3558 = vadd.f32 %v3466, %v3526
  %v3559 = vadd.f32 %v3467, %v3527
  %v3560 = vsub.f32 %v2364, 13.0
  %v3561 = vand.u32 2147483647, %v3560
  %v3562 = vsub.f32 1.0, %v3561
  %v3563 = vmax.f32 %v3562, 0.0
  %v3565 = vrot.slane %v3563, 1
  %v3566 = vrot.slane %v3563, 2
  %v3567 = vrot.slane %v3563, 3
  %v3568 = vrot.slane %v3563, 4
  %v3569 = vrot.slane %v3563, 5
  %v3570 = vrot.slane %v3563, 6
  %v3571 = vrot.slane %v3563, 7
  %v3572 = vperm.slane %v3563, 0
  %v3573 = vperm.slane %v3565, 0
  %v3574 = vperm.slane %v3566, 0
  %v3575 = vperm.slane %v3567, 0
  %v3576 = vperm.slane %v3568, 0
  %v3577 = vperm.slane %v3569, 0
  %v3578 = vperm.slane %v3570, 0
  %v3579 = vperm.slane %v3571, 0
  %v3588 = vmul.f32 %v3572, %v2291
  %v3589 = vmul.f32 %v3573, %v2291
  %v3590 = vmul.f32 %v3574, %v2291
  %v3591 = vmul.f32 %v3575, %v2291
  %v3592 = vmul.f32 %v3576, %v2291
  %v3593 = vmul.f32 %v3577, %v2291
  %v3594 = vmul.f32 %v3578, %v2291
  %v3595 = vmul.f32 %v3579, %v2291
  %v3596 = vmul.f32 %v3572, %v2293
  %v3597 = vmul.f32 %v3573, %v2293
  %v3598 = vmul.f32 %v3574, %v2293
  %v3599 = vmul.f32 %v3575, %v2293
  %v3600 = vmul.f32 %v3576, %v2293
  %v3601 = vmul.f32 %v3577, %v2293
  %v3602 = vmul.f32 %v3578, %v2293
  %v3603 = vmul.f32 %v3579, %v2293
  %v3604 = vmul.f32 %v3572, %v2295
  %v3605 = vmul.f32 %v3573, %v2295
  %v3606 = vmul.f32 %v3574, %v2295
  %v3607 = vmul.f32 %v3575, %v2295
  %v3608 = vmul.f32 %v3576, %v2295
  %v3609 = vmul.f32 %v3577, %v2295
  %v3610 = vmul.f32 %v3578, %v2295
  %v3611 = vmul.f32 %v3579, %v2295
  %v3612 = vmul.f32 %v3572, %v2297
  %v3613 = vmul.f32 %v3573, %v2297
  %v3614 = vmul.f32 %v3574, %v2297
  %v3615 = vmul.f32 %v3575, %v2297
  %v3616 = vmul.f32 %v3576, %v2297
  %v3617 = vmul.f32 %v3577, %v2297
  %v3618 = vmul.f32 %v3578, %v2297
  %v3619 = vmul.f32 %v3579, %v2297
  %v3620 = vadd.f32 %v3528, %v3588
  %v3621 = vadd.f32 %v3529, %v3589
  %v3622 = vadd.f32 %v3530, %v3590
  %v3623 = vadd.f32 %v3531, %v3591
  %v3624 = vadd.f32 %v3532, %v3592
  %v3625 = vadd.f32 %v3533, %v3593
  %v3626 = vadd.f32 %v3534, %v3594
  %v3627 = vadd.f32 %v3535, %v3595
  %v3628 = vadd.f32 %v3536, %v3596
  %v3629 = vadd.f32 %v3537, %v3597
  %v3630 = vadd.f32 %v3538, %v3598
  %v3631 = vadd.f32 %v3539, %v3599
  %v3632 = vadd.f32 %v3540, %v3600
  %v3633 = vadd.f32 %v3541, %v3601
  %v3634 = vadd.f32 %v3542, %v3602
  %v3635 = vadd.f32 %v3543, %v3603
  %v3636 = vadd.f32 %v3544, %v3604
  %v3637 = vadd.f32 %v3545, %v3605
  %v3638 = vadd.f32 %v3546, %v3606
  %v3639 = vadd.f32 %v3547, %v3607
  %v3640 = vadd.f32 %v3548, %v3608
  %v3641 = vadd.f32 %v3549, %v3609
  %v3642 = vadd.f32 %v3550, %v3610
  %v3643 = vadd.f32 %v3551, %v3611
  %v3644 = vadd.f32 %v3552, %v3612
  %v3645 = vadd.f32 %v3553, %v3613
  %v3646 = vadd.f32 %v3554, %v3614
  %v3647 = vadd.f32 %v3555, %v3615
  %v3648 = vadd.f32 %v3556, %v3616
  %v3649 = vadd.f32 %v3557, %v3617
  %v3650 = vadd.f32 %v3558, %v3618
  %v3651 = vadd.f32 %v3559, %v3619
  %v3652 = vsub.f32 %v2364, 14.0
  %v3653 = vand.u32 2147483647, %v3652
  %v3654 = vsub.f32 1.0, %v3653
  %v3655 = vmax.f32 %v3654, 0.0
  %v3657 = vrot.slane %v3655, 1
  %v3658 = vrot.slane %v3655, 2
  %v3659 = vrot.slane %v3655, 3
  %v3660 = vrot.slane %v3655, 4
  %v3661 = vrot.slane %v3655, 5
  %v3662 = vrot.slane %v3655, 6
  %v3663 = vrot.slane %v3655, 7
  %v3664 = vperm.slane %v3655, 0
  %v3665 = vperm.slane %v3657, 0
  %v3666 = vperm.slane %v3658, 0
  %v3667 = vperm.slane %v3659, 0
  %v3668 = vperm.slane %v3660, 0
  %v3669 = vperm.slane %v3661, 0
  %v3670 = vperm.slane %v3662, 0
  %v3671 = vperm.slane %v3663, 0
  %v3680 = vmul.f32 %v3664, %v2347
  %v3681 = vmul.f32 %v3665, %v2347
  %v3682 = vmul.f32 %v3666, %v2347
  %v3683 = vmul.f32 %v3667, %v2347
  %v3684 = vmul.f32 %v3668, %v2347
  %v3685 = vmul.f32 %v3669, %v2347
  %v3686 = vmul.f32 %v3670, %v2347
  %v3687 = vmul.f32 %v3671, %v2347
  %v3688 = vmul.f32 %v3664, %v2349
  %v3689 = vmul.f32 %v3665, %v2349
  %v3690 = vmul.f32 %v3666, %v2349
  %v3691 = vmul.f32 %v3667, %v2349
  %v3692 = vmul.f32 %v3668, %v2349
  %v3693 = vmul.f32 %v3669, %v2349
  %v3694 = vmul.f32 %v3670, %v2349
  %v3695 = vmul.f32 %v3671, %v2349
  %v3696 = vmul.f32 %v3664, %v2351
  %v3697 = vmul.f32 %v3665, %v2351
  %v3698 = vmul.f32 %v3666, %v2351
  %v3699 = vmul.f32 %v3667, %v2351
  %v3700 = vmul.f32 %v3668, %v2351
  %v3701 = vmul.f32 %v3669, %v2351
  %v3702 = vmul.f32 %v3670, %v2351
  %v3703 = vmul.f32 %v3671, %v2351
  %v3704 = vmul.f32 %v3664, %v2353
  %v3705 = vmul.f32 %v3665, %v2353
  %v3706 = vmul.f32 %v3666, %v2353
  %v3707 = vmul.f32 %v3667, %v2353
  %v3708 = vmul.f32 %v3668, %v2353
  %v3709 = vmul.f32 %v3669, %v2353
  %v3710 = vmul.f32 %v3670, %v2353
  %v3711 = vmul.f32 %v3671, %v2353
  %v3712 = vadd.f32 %v3620, %v3680
  %v3713 = vadd.f32 %v3621, %v3681
  %v3714 = vadd.f32 %v3622, %v3682
  %v3715 = vadd.f32 %v3623, %v3683
  %v3716 = vadd.f32 %v3624, %v3684
  %v3717 = vadd.f32 %v3625, %v3685
  %v3718 = vadd.f32 %v3626, %v3686
  %v3719 = vadd.f32 %v3627, %v3687
  %v3720 = vadd.f32 %v3628, %v3688
  %v3721 = vadd.f32 %v3629, %v3689
  %v3722 = vadd.f32 %v3630, %v3690
  %v3723 = vadd.f32 %v3631, %v3691
  %v3724 = vadd.f32 %v3632, %v3692
  %v3725 = vadd.f32 %v3633, %v3693
  %v3726 = vadd.f32 %v3634, %v3694
  %v3727 = vadd.f32 %v3635, %v3695
  %v3728 = vadd.f32 %v3636, %v3696
  %v3729 = vadd.f32 %v3637, %v3697
  %v3730 = vadd.f32 %v3638, %v3698
  %v3731 = vadd.f32 %v3639, %v3699
  %v3732 = vadd.f32 %v3640, %v3700
  %v3733 = vadd.f32 %v3641, %v3701
  %v3734 = vadd.f32 %v3642, %v3702
  %v3735 = vadd.f32 %v3643, %v3703
  %v3736 = vadd.f32 %v3644, %v3704
  %v3737 = vadd.f32 %v3645, %v3705
  %v3738 = vadd.f32 %v3646, %v3706
  %v3739 = vadd.f32 %v3647, %v3707
  %v3740 = vadd.f32 %v3648, %v3708
  %v3741 = vadd.f32 %v3649, %v3709
  %v3742 = vadd.f32 %v3650, %v3710
  %v3743 = vadd.f32 %v3651, %v3711
  %3744 = vmax.xlane.f32.xlu0 %v3712
  %v3745 = vpop.xlane.xlu0 %3744
  %3746 = vmax.xlane.f32.xlu0 %v3713
  %v3747 = vpop.xlane.xlu0 %3746
  %3748 = vmax.xlane.f32.xlu0 %v3714
  %v3749 = vpop.xlane.xlu0 %3748
  %3750 = vmax.xlane.f32.xlu0 %v3715
  %v3751 = vpop.xlane.xlu0 %3750
  %3752 = vmax.xlane.f32.xlu0 %v3716
  %v3753 = vpop.xlane.xlu0 %3752
  %3754 = vmax.xlane.f32.xlu0 %v3717
  %v3755 = vpop.xlane.xlu0 %3754
  %3756 = vmax.xlane.f32.xlu0 %v3718
  %v3757 = vpop.xlane.xlu0 %3756
  %3758 = vmax.xlane.f32.xlu0 %v3719
  %v3759 = vpop.xlane.xlu0 %3758
  %3760 = vmax.xlane.f32.xlu0 %v3720
  %v3761 = vpop.xlane.xlu0 %3760
  %3762 = vmax.xlane.f32.xlu0 %v3721
  %v3763 = vpop.xlane.xlu0 %3762
  %3764 = vmax.xlane.f32.xlu0 %v3722
  %v3765 = vpop.xlane.xlu0 %3764
  %3766 = vmax.xlane.f32.xlu0 %v3723
  %v3767 = vpop.xlane.xlu0 %3766
  %3768 = vmax.xlane.f32.xlu0 %v3724
  %v3769 = vpop.xlane.xlu0 %3768
  %3770 = vmax.xlane.f32.xlu0 %v3725
  %v3771 = vpop.xlane.xlu0 %3770
  %3772 = vmax.xlane.f32.xlu0 %v3726
  %v3773 = vpop.xlane.xlu0 %3772
  %3774 = vmax.xlane.f32.xlu0 %v3727
  %v3775 = vpop.xlane.xlu0 %3774
  %3776 = vmax.xlane.f32.xlu0 %v3728
  %v3777 = vpop.xlane.xlu0 %3776
  %3778 = vmax.xlane.f32.xlu0 %v3729
  %v3779 = vpop.xlane.xlu0 %3778
  %3780 = vmax.xlane.f32.xlu0 %v3730
  %v3781 = vpop.xlane.xlu0 %3780
  %3782 = vmax.xlane.f32.xlu0 %v3731
  %v3783 = vpop.xlane.xlu0 %3782
  %3784 = vmax.xlane.f32.xlu0 %v3732
  %v3785 = vpop.xlane.xlu0 %3784
  %3786 = vmax.xlane.f32.xlu0 %v3733
  %v3787 = vpop.xlane.xlu0 %3786
  %3788 = vmax.xlane.f32.xlu0 %v3734
  %v3789 = vpop.xlane.xlu0 %3788
  %3790 = vmax.xlane.f32.xlu0 %v3735
  %v3791 = vpop.xlane.xlu0 %3790
  %3792 = vmax.xlane.f32.xlu0 %v3736
  %v3793 = vpop.xlane.xlu0 %3792
  %3794 = vmax.xlane.f32.xlu0 %v3737
  %v3795 = vpop.xlane.xlu0 %3794
  %3796 = vmax.xlane.f32.xlu0 %v3738
  %v3797 = vpop.xlane.xlu0 %3796
  %3798 = vmax.xlane.f32.xlu0 %v3739
  %v3799 = vpop.xlane.xlu0 %3798
  %3800 = vmax.xlane.f32.xlu0 %v3740
  %v3801 = vpop.xlane.xlu0 %3800
  %3802 = vmax.xlane.f32.xlu0 %v3741
  %v3803 = vpop.xlane.xlu0 %3802
  %3804 = vmax.xlane.f32.xlu0 %v3742
  %v3805 = vpop.xlane.xlu0 %3804
  %3806 = vmax.xlane.f32.xlu0 %v3743
  %v3807 = vpop.xlane.xlu0 %3806
  %v3808 = vsub.f32 %v3712, %v3745
  %v3809 = vsub.f32 %v3713, %v3747
  %v3810 = vsub.f32 %v3714, %v3749
  %v3811 = vsub.f32 %v3715, %v3751
  %v3812 = vsub.f32 %v3716, %v3753
  %v3813 = vsub.f32 %v3717, %v3755
  %v3814 = vsub.f32 %v3718, %v3757
  %v3815 = vsub.f32 %v3719, %v3759
  %v3816 = vsub.f32 %v3720, %v3761
  %v3817 = vsub.f32 %v3721, %v3763
  %v3818 = vsub.f32 %v3722, %v3765
  %v3819 = vsub.f32 %v3723, %v3767
  %v3820 = vsub.f32 %v3724, %v3769
  %v3821 = vsub.f32 %v3725, %v3771
  %v3822 = vsub.f32 %v3726, %v3773
  %v3823 = vsub.f32 %v3727, %v3775
  %v3824 = vsub.f32 %v3728, %v3777
  %v3825 = vsub.f32 %v3729, %v3779
  %v3826 = vsub.f32 %v3730, %v3781
  %v3827 = vsub.f32 %v3731, %v3783
  %v3828 = vsub.f32 %v3732, %v3785
  %v3829 = vsub.f32 %v3733, %v3787
  %v3830 = vsub.f32 %v3734, %v3789
  %v3831 = vsub.f32 %v3735, %v3791
  %v3832 = vsub.f32 %v3736, %v3793
  %v3833 = vsub.f32 %v3737, %v3795
  %v3834 = vsub.f32 %v3738, %v3797
  %v3835 = vsub.f32 %v3739, %v3799
  %v3836 = vsub.f32 %v3740, %v3801
  %v3837 = vsub.f32 %v3741, %v3803
  %v3838 = vsub.f32 %v3742, %v3805
  %v3839 = vsub.f32 %v3743, %v3807
  %v3840 = vmul.f32 %v3808, 1.442695
  %v3841 = vpow.pop %v3840
  %v3842 = vmul.f32 %v3809, 1.442695
  %v3843 = vpow.pop %v3842
  %v3844 = vmul.f32 %v3810, 1.442695
  %v3845 = vpow.pop %v3844
  %v3846 = vmul.f32 %v3811, 1.442695
  %v3847 = vpow.pop %v3846
  %v3848 = vmul.f32 %v3812, 1.442695
  %v3849 = vpow.pop %v3848
  %v3850 = vmul.f32 %v3813, 1.442695
  %v3851 = vpow.pop %v3850
  %v3852 = vmul.f32 %v3814, 1.442695
  %v3853 = vpow.pop %v3852
  %v3854 = vmul.f32 %v3815, 1.442695
  %v3855 = vpow.pop %v3854
  %v3856 = vmul.f32 %v3816, 1.442695
  %v3857 = vpow.pop %v3856
  %v3858 = vmul.f32 %v3817, 1.442695
  %v3859 = vpow.pop %v3858
  %v3860 = vmul.f32 %v3818, 1.442695
  %v3861 = vpow.pop %v3860
  %v3862 = vmul.f32 %v3819, 1.442695
  %v3863 = vpow.pop %v3862
  %v3864 = vmul.f32 %v3820, 1.442695
  %v3865 = vpow.pop %v3864
  %v3866 = vmul.f32 %v3821, 1.442695
  %v3867 = vpow.pop %v3866
  %v3868 = vmul.f32 %v3822, 1.442695
  %v3869 = vpow.pop %v3868
  %v3870 = vmul.f32 %v3823, 1.442695
  %v3871 = vpow.pop %v3870
  %v3872 = vmul.f32 %v3824, 1.442695
  %v3873 = vpow.pop %v3872
  %v3874 = vmul.f32 %v3825, 1.442695
  %v3875 = vpow.pop %v3874
  %v3876 = vmul.f32 %v3826, 1.442695
  %v3877 = vpow.pop %v3876
  %v3878 = vmul.f32 %v3827, 1.442695
  %v3879 = vpow.pop %v3878
  %v3880 = vmul.f32 %v3828, 1.442695
  %v3881 = vpow.pop %v3880
  %v3882 = vmul.f32 %v3829, 1.442695
  %v3883 = vpow.pop %v3882
  %v3884 = vmul.f32 %v3830, 1.442695
  %v3885 = vpow.pop %v3884
  %v3886 = vmul.f32 %v3831, 1.442695
  %v3887 = vpow.pop %v3886
  %v3888 = vmul.f32 %v3832, 1.442695
  %v3889 = vpow.pop %v3888
  %v3890 = vmul.f32 %v3833, 1.442695
  %v3891 = vpow.pop %v3890
  %v3892 = vmul.f32 %v3834, 1.442695
  %v3893 = vpow.pop %v3892
  %v3894 = vmul.f32 %v3835, 1.442695
  %v3895 = vpow.pop %v3894
  %v3896 = vmul.f32 %v3836, 1.442695
  %v3897 = vpow.pop %v3896
  %v3898 = vmul.f32 %v3837, 1.442695
  %v3899 = vpow.pop %v3898
  %v3900 = vmul.f32 %v3838, 1.442695
  %v3901 = vpow.pop %v3900
  %v3902 = vmul.f32 %v3839, 1.442695
  %v3903 = vpow.pop %v3902
  %v3904 = vmul.f32 %v3841, %v581
  %v3905 = vmul.f32 %v3843, %v581
  %v3906 = vmul.f32 %v3845, %v581
  %v3907 = vmul.f32 %v3847, %v581
  %v3908 = vmul.f32 %v3849, %v581
  %v3909 = vmul.f32 %v3851, %v581
  %v3910 = vmul.f32 %v3853, %v581
  %v3911 = vmul.f32 %v3855, %v581
  %v3912 = vmul.f32 %v3857, %v581
  %v3913 = vmul.f32 %v3859, %v581
  %v3914 = vmul.f32 %v3861, %v581
  %v3915 = vmul.f32 %v3863, %v581
  %v3916 = vmul.f32 %v3865, %v581
  %v3917 = vmul.f32 %v3867, %v581
  %v3918 = vmul.f32 %v3869, %v581
  %v3919 = vmul.f32 %v3871, %v581
  %v3920 = vmul.f32 %v3873, %v581
  %v3921 = vmul.f32 %v3875, %v581
  %v3922 = vmul.f32 %v3877, %v581
  %v3923 = vmul.f32 %v3879, %v581
  %v3924 = vmul.f32 %v3881, %v581
  %v3925 = vmul.f32 %v3883, %v581
  %v3926 = vmul.f32 %v3885, %v581
  %v3927 = vmul.f32 %v3887, %v581
  %v3928 = vmul.f32 %v3889, %v581
  %v3929 = vmul.f32 %v3891, %v581
  %v3930 = vmul.f32 %v3893, %v581
  %v3931 = vmul.f32 %v3895, %v581
  %v3932 = vmul.f32 %v3897, %v581
  %v3933 = vmul.f32 %v3899, %v581
  %v3934 = vmul.f32 %v3901, %v581
  %v3935 = vmul.f32 %v3903, %v581
  %3936 = vadd.xlane.f32.xlu0 %v3904
  %v3937 = vpop.xlane.xlu0 %3936
  %3938 = vadd.xlane.f32.xlu0 %v3905
  %v3939 = vpop.xlane.xlu0 %3938
  %3940 = vadd.xlane.f32.xlu0 %v3906
  %v3941 = vpop.xlane.xlu0 %3940
  %3942 = vadd.xlane.f32.xlu0 %v3907
  %v3943 = vpop.xlane.xlu0 %3942
  %3944 = vadd.xlane.f32.xlu0 %v3908
  %v3945 = vpop.xlane.xlu0 %3944
  %3946 = vadd.xlane.f32.xlu0 %v3909
  %v3947 = vpop.xlane.xlu0 %3946
  %3948 = vadd.xlane.f32.xlu0 %v3910
  %v3949 = vpop.xlane.xlu0 %3948
  %3950 = vadd.xlane.f32.xlu0 %v3911
  %v3951 = vpop.xlane.xlu0 %3950
  %3952 = vadd.xlane.f32.xlu0 %v3912
  %v3953 = vpop.xlane.xlu0 %3952
  %3954 = vadd.xlane.f32.xlu0 %v3913
  %v3955 = vpop.xlane.xlu0 %3954
  %3956 = vadd.xlane.f32.xlu0 %v3914
  %v3957 = vpop.xlane.xlu0 %3956
  %3958 = vadd.xlane.f32.xlu0 %v3915
  %v3959 = vpop.xlane.xlu0 %3958
  %3960 = vadd.xlane.f32.xlu0 %v3916
  %v3961 = vpop.xlane.xlu0 %3960
  %3962 = vadd.xlane.f32.xlu0 %v3917
  %v3963 = vpop.xlane.xlu0 %3962
  %3964 = vadd.xlane.f32.xlu0 %v3918
  %v3965 = vpop.xlane.xlu0 %3964
  %3966 = vadd.xlane.f32.xlu0 %v3919
  %v3967 = vpop.xlane.xlu0 %3966
  %3968 = vadd.xlane.f32.xlu0 %v3920
  %v3969 = vpop.xlane.xlu0 %3968
  %3970 = vadd.xlane.f32.xlu0 %v3921
  %v3971 = vpop.xlane.xlu0 %3970
  %3972 = vadd.xlane.f32.xlu0 %v3922
  %v3973 = vpop.xlane.xlu0 %3972
  %3974 = vadd.xlane.f32.xlu0 %v3923
  %v3975 = vpop.xlane.xlu0 %3974
  %3976 = vadd.xlane.f32.xlu0 %v3924
  %v3977 = vpop.xlane.xlu0 %3976
  %3978 = vadd.xlane.f32.xlu0 %v3925
  %v3979 = vpop.xlane.xlu0 %3978
  %3980 = vadd.xlane.f32.xlu0 %v3926
  %v3981 = vpop.xlane.xlu0 %3980
  %3982 = vadd.xlane.f32.xlu0 %v3927
  %v3983 = vpop.xlane.xlu0 %3982
  %3984 = vadd.xlane.f32.xlu0 %v3928
  %v3985 = vpop.xlane.xlu0 %3984
  %3986 = vadd.xlane.f32.xlu0 %v3929
  %v3987 = vpop.xlane.xlu0 %3986
  %3988 = vadd.xlane.f32.xlu0 %v3930
  %v3989 = vpop.xlane.xlu0 %3988
  %3990 = vadd.xlane.f32.xlu0 %v3931
  %v3991 = vpop.xlane.xlu0 %3990
  %3992 = vadd.xlane.f32.xlu0 %v3932
  %v3993 = vpop.xlane.xlu0 %3992
  %3994 = vadd.xlane.f32.xlu0 %v3933
  %v3995 = vpop.xlane.xlu0 %3994
  %3996 = vadd.xlane.f32.xlu0 %v3934
  %v3997 = vpop.xlane.xlu0 %3996
  %3998 = vadd.xlane.f32.xlu0 %v3935
  %v3999 = vpop.xlane.xlu0 %3998
  %v4000 = vmul.f32 %v3841, %v588
  %v4001 = vmul.f32 %v3843, %v588
  %v4002 = vmul.f32 %v3845, %v588
  %v4003 = vmul.f32 %v3847, %v588
  %v4004 = vmul.f32 %v3849, %v588
  %v4005 = vmul.f32 %v3851, %v588
  %v4006 = vmul.f32 %v3853, %v588
  %v4007 = vmul.f32 %v3855, %v588
  %v4008 = vmul.f32 %v3857, %v588
  %v4009 = vmul.f32 %v3859, %v588
  %v4010 = vmul.f32 %v3861, %v588
  %v4011 = vmul.f32 %v3863, %v588
  %v4012 = vmul.f32 %v3865, %v588
  %v4013 = vmul.f32 %v3867, %v588
  %v4014 = vmul.f32 %v3869, %v588
  %v4015 = vmul.f32 %v3871, %v588
  %v4016 = vmul.f32 %v3873, %v588
  %v4017 = vmul.f32 %v3875, %v588
  %v4018 = vmul.f32 %v3877, %v588
  %v4019 = vmul.f32 %v3879, %v588
  %v4020 = vmul.f32 %v3881, %v588
  %v4021 = vmul.f32 %v3883, %v588
  %v4022 = vmul.f32 %v3885, %v588
  %v4023 = vmul.f32 %v3887, %v588
  %v4024 = vmul.f32 %v3889, %v588
  %v4025 = vmul.f32 %v3891, %v588
  %v4026 = vmul.f32 %v3893, %v588
  %v4027 = vmul.f32 %v3895, %v588
  %v4028 = vmul.f32 %v3897, %v588
  %v4029 = vmul.f32 %v3899, %v588
  %v4030 = vmul.f32 %v3901, %v588
  %v4031 = vmul.f32 %v3903, %v588
  %4032 = vadd.xlane.f32.xlu0 %v4000
  %v4033 = vpop.xlane.xlu0 %4032
  %4034 = vadd.xlane.f32.xlu0 %v4001
  %v4035 = vpop.xlane.xlu0 %4034
  %4036 = vadd.xlane.f32.xlu0 %v4002
  %v4037 = vpop.xlane.xlu0 %4036
  %4038 = vadd.xlane.f32.xlu0 %v4003
  %v4039 = vpop.xlane.xlu0 %4038
  %4040 = vadd.xlane.f32.xlu0 %v4004
  %v4041 = vpop.xlane.xlu0 %4040
  %4042 = vadd.xlane.f32.xlu0 %v4005
  %v4043 = vpop.xlane.xlu0 %4042
  %4044 = vadd.xlane.f32.xlu0 %v4006
  %v4045 = vpop.xlane.xlu0 %4044
  %4046 = vadd.xlane.f32.xlu0 %v4007
  %v4047 = vpop.xlane.xlu0 %4046
  %4048 = vadd.xlane.f32.xlu0 %v4008
  %v4049 = vpop.xlane.xlu0 %4048
  %4050 = vadd.xlane.f32.xlu0 %v4009
  %v4051 = vpop.xlane.xlu0 %4050
  %4052 = vadd.xlane.f32.xlu0 %v4010
  %v4053 = vpop.xlane.xlu0 %4052
  %4054 = vadd.xlane.f32.xlu0 %v4011
  %v4055 = vpop.xlane.xlu0 %4054
  %4056 = vadd.xlane.f32.xlu0 %v4012
  %v4057 = vpop.xlane.xlu0 %4056
  %4058 = vadd.xlane.f32.xlu0 %v4013
  %v4059 = vpop.xlane.xlu0 %4058
  %4060 = vadd.xlane.f32.xlu0 %v4014
  %v4061 = vpop.xlane.xlu0 %4060
  %4062 = vadd.xlane.f32.xlu0 %v4015
  %v4063 = vpop.xlane.xlu0 %4062
  %4064 = vadd.xlane.f32.xlu0 %v4016
  %v4065 = vpop.xlane.xlu0 %4064
  %4066 = vadd.xlane.f32.xlu0 %v4017
  %v4067 = vpop.xlane.xlu0 %4066
  %4068 = vadd.xlane.f32.xlu0 %v4018
  %v4069 = vpop.xlane.xlu0 %4068
  %4070 = vadd.xlane.f32.xlu0 %v4019
  %v4071 = vpop.xlane.xlu0 %4070
  %4072 = vadd.xlane.f32.xlu0 %v4020
  %v4073 = vpop.xlane.xlu0 %4072
  %4074 = vadd.xlane.f32.xlu0 %v4021
  %v4075 = vpop.xlane.xlu0 %4074
  %4076 = vadd.xlane.f32.xlu0 %v4022
  %v4077 = vpop.xlane.xlu0 %4076
  %4078 = vadd.xlane.f32.xlu0 %v4023
  %v4079 = vpop.xlane.xlu0 %4078
  %4080 = vadd.xlane.f32.xlu0 %v4024
  %v4081 = vpop.xlane.xlu0 %4080
  %4082 = vadd.xlane.f32.xlu0 %v4025
  %v4083 = vpop.xlane.xlu0 %4082
  %4084 = vadd.xlane.f32.xlu0 %v4026
  %v4085 = vpop.xlane.xlu0 %4084
  %4086 = vadd.xlane.f32.xlu0 %v4027
  %v4087 = vpop.xlane.xlu0 %4086
  %4088 = vadd.xlane.f32.xlu0 %v4028
  %v4089 = vpop.xlane.xlu0 %4088
  %4090 = vadd.xlane.f32.xlu0 %v4029
  %v4091 = vpop.xlane.xlu0 %4090
  %4092 = vadd.xlane.f32.xlu0 %v4030
  %v4093 = vpop.xlane.xlu0 %4092
  %4094 = vadd.xlane.f32.xlu0 %v4031
  %v4095 = vpop.xlane.xlu0 %4094
  %v4096 = vrcp.pop %v3937
  %v4097 = vmul.f32 %v3937, %v4096
  %v4098 = vsub.f32 1.0, %v4097
  %v4099 = vmul.f32 %v4096, %v4098
  %v4100 = vadd.f32 %v4096, %v4099
  %vm4101 = vweird.f32 %v3937
  %vm4102 = vweird.f32 %v4096
  %vm4103 = vmor %vm4101, %vm4102
  %v4104 = vsel %vm4103, %v4096, %v4100
  %v4105 = vand.u32 2147483647, %v3937
  %vm4106 = vcmp.eq.f32.partialorder %v4105, 8.507059e+37
  %v4107 = vand.u32 %v3937, 2147483648
  %v4108 = vor.u32 1.1754944e-38, %v4107
  %v4109 = vsel %vm4106, %v4108, %v4104
  %v4110 = vrcp.pop %v3939
  %v4111 = vmul.f32 %v3939, %v4110
  %v4112 = vsub.f32 1.0, %v4111
  %v4113 = vmul.f32 %v4110, %v4112
  %v4114 = vadd.f32 %v4110, %v4113
  %vm4115 = vweird.f32 %v3939
  %vm4116 = vweird.f32 %v4110
  %vm4117 = vmor %vm4115, %vm4116
  %v4118 = vsel %vm4117, %v4110, %v4114
  %v4119 = vand.u32 2147483647, %v3939
  %vm4120 = vcmp.eq.f32.partialorder %v4119, 8.507059e+37
  %v4121 = vand.u32 %v3939, 2147483648
  %v4122 = vor.u32 1.1754944e-38, %v4121
  %v4123 = vsel %vm4120, %v4122, %v4118
  %v4124 = vrcp.pop %v3941
  %v4125 = vmul.f32 %v3941, %v4124
  %v4126 = vsub.f32 1.0, %v4125
  %v4127 = vmul.f32 %v4124, %v4126
  %v4128 = vadd.f32 %v4124, %v4127
  %vm4129 = vweird.f32 %v3941
  %vm4130 = vweird.f32 %v4124
  %vm4131 = vmor %vm4129, %vm4130
  %v4132 = vsel %vm4131, %v4124, %v4128
  %v4133 = vand.u32 2147483647, %v3941
  %vm4134 = vcmp.eq.f32.partialorder %v4133, 8.507059e+37
  %v4135 = vand.u32 %v3941, 2147483648
  %v4136 = vor.u32 1.1754944e-38, %v4135
  %v4137 = vsel %vm4134, %v4136, %v4132
  %v4138 = vrcp.pop %v3943
  %v4139 = vmul.f32 %v3943, %v4138
  %v4140 = vsub.f32 1.0, %v4139
  %v4141 = vmul.f32 %v4138, %v4140
  %v4142 = vadd.f32 %v4138, %v4141
  %vm4143 = vweird.f32 %v3943
  %vm4144 = vweird.f32 %v4138
  %vm4145 = vmor %vm4143, %vm4144
  %v4146 = vsel %vm4145, %v4138, %v4142
  %v4147 = vand.u32 2147483647, %v3943
  %vm4148 = vcmp.eq.f32.partialorder %v4147, 8.507059e+37
  %v4149 = vand.u32 %v3943, 2147483648
  %v4150 = vor.u32 1.1754944e-38, %v4149
  %v4151 = vsel %vm4148, %v4150, %v4146
  %v4152 = vrcp.pop %v3945
  %v4153 = vmul.f32 %v3945, %v4152
  %v4154 = vsub.f32 1.0, %v4153
  %v4155 = vmul.f32 %v4152, %v4154
  %v4156 = vadd.f32 %v4152, %v4155
  %vm4157 = vweird.f32 %v3945
  %vm4158 = vweird.f32 %v4152
  %vm4159 = vmor %vm4157, %vm4158
  %v4160 = vsel %vm4159, %v4152, %v4156
  %v4161 = vand.u32 2147483647, %v3945
  %vm4162 = vcmp.eq.f32.partialorder %v4161, 8.507059e+37
  %v4163 = vand.u32 %v3945, 2147483648
  %v4164 = vor.u32 1.1754944e-38, %v4163
  %v4165 = vsel %vm4162, %v4164, %v4160
  %v4166 = vrcp.pop %v3947
  %v4167 = vmul.f32 %v3947, %v4166
  %v4168 = vsub.f32 1.0, %v4167
  %v4169 = vmul.f32 %v4166, %v4168
  %v4170 = vadd.f32 %v4166, %v4169
  %vm4171 = vweird.f32 %v3947
  %vm4172 = vweird.f32 %v4166
  %vm4173 = vmor %vm4171, %vm4172
  %v4174 = vsel %vm4173, %v4166, %v4170
  %v4175 = vand.u32 2147483647, %v3947
  %vm4176 = vcmp.eq.f32.partialorder %v4175, 8.507059e+37
  %v4177 = vand.u32 %v3947, 2147483648
  %v4178 = vor.u32 1.1754944e-38, %v4177
  %v4179 = vsel %vm4176, %v4178, %v4174
  %v4180 = vrcp.pop %v3949
  %v4181 = vmul.f32 %v3949, %v4180
  %v4182 = vsub.f32 1.0, %v4181
  %v4183 = vmul.f32 %v4180, %v4182
  %v4184 = vadd.f32 %v4180, %v4183
  %vm4185 = vweird.f32 %v3949
  %vm4186 = vweird.f32 %v4180
  %vm4187 = vmor %vm4185, %vm4186
  %v4188 = vsel %vm4187, %v4180, %v4184
  %v4189 = vand.u32 2147483647, %v3949
  %vm4190 = vcmp.eq.f32.partialorder %v4189, 8.507059e+37
  %v4191 = vand.u32 %v3949, 2147483648
  %v4192 = vor.u32 1.1754944e-38, %v4191
  %v4193 = vsel %vm4190, %v4192, %v4188
  %v4194 = vrcp.pop %v3951
  %v4195 = vmul.f32 %v3951, %v4194
  %v4196 = vsub.f32 1.0, %v4195
  %v4197 = vmul.f32 %v4194, %v4196
  %v4198 = vadd.f32 %v4194, %v4197
  %vm4199 = vweird.f32 %v3951
  %vm4200 = vweird.f32 %v4194
  %vm4201 = vmor %vm4199, %vm4200
  %v4202 = vsel %vm4201, %v4194, %v4198
  %v4203 = vand.u32 2147483647, %v3951
  %vm4204 = vcmp.eq.f32.partialorder %v4203, 8.507059e+37
  %v4205 = vand.u32 %v3951, 2147483648
  %v4206 = vor.u32 1.1754944e-38, %v4205
  %v4207 = vsel %vm4204, %v4206, %v4202
  %v4208 = vrcp.pop %v3953
  %v4209 = vmul.f32 %v3953, %v4208
  %v4210 = vsub.f32 1.0, %v4209
  %v4211 = vmul.f32 %v4208, %v4210
  %v4212 = vadd.f32 %v4208, %v4211
  %vm4213 = vweird.f32 %v3953
  %vm4214 = vweird.f32 %v4208
  %vm4215 = vmor %vm4213, %vm4214
  %v4216 = vsel %vm4215, %v4208, %v4212
  %v4217 = vand.u32 2147483647, %v3953
  %vm4218 = vcmp.eq.f32.partialorder %v4217, 8.507059e+37
  %v4219 = vand.u32 %v3953, 2147483648
  %v4220 = vor.u32 1.1754944e-38, %v4219
  %v4221 = vsel %vm4218, %v4220, %v4216
  %v4222 = vrcp.pop %v3955
  %v4223 = vmul.f32 %v3955, %v4222
  %v4224 = vsub.f32 1.0, %v4223
  %v4225 = vmul.f32 %v4222, %v4224
  %v4226 = vadd.f32 %v4222, %v4225
  %vm4227 = vweird.f32 %v3955
  %vm4228 = vweird.f32 %v4222
  %vm4229 = vmor %vm4227, %vm4228
  %v4230 = vsel %vm4229, %v4222, %v4226
  %v4231 = vand.u32 2147483647, %v3955
  %vm4232 = vcmp.eq.f32.partialorder %v4231, 8.507059e+37
  %v4233 = vand.u32 %v3955, 2147483648
  %v4234 = vor.u32 1.1754944e-38, %v4233
  %v4235 = vsel %vm4232, %v4234, %v4230
  %v4236 = vrcp.pop %v3957
  %v4237 = vmul.f32 %v3957, %v4236
  %v4238 = vsub.f32 1.0, %v4237
  %v4239 = vmul.f32 %v4236, %v4238
  %v4240 = vadd.f32 %v4236, %v4239
  %vm4241 = vweird.f32 %v3957
  %vm4242 = vweird.f32 %v4236
  %vm4243 = vmor %vm4241, %vm4242
  %v4244 = vsel %vm4243, %v4236, %v4240
  %v4245 = vand.u32 2147483647, %v3957
  %vm4246 = vcmp.eq.f32.partialorder %v4245, 8.507059e+37
  %v4247 = vand.u32 %v3957, 2147483648
  %v4248 = vor.u32 1.1754944e-38, %v4247
  %v4249 = vsel %vm4246, %v4248, %v4244
  %v4250 = vrcp.pop %v3959
  %v4251 = vmul.f32 %v3959, %v4250
  %v4252 = vsub.f32 1.0, %v4251
  %v4253 = vmul.f32 %v4250, %v4252
  %v4254 = vadd.f32 %v4250, %v4253
  %vm4255 = vweird.f32 %v3959
  %vm4256 = vweird.f32 %v4250
  %vm4257 = vmor %vm4255, %vm4256
  %v4258 = vsel %vm4257, %v4250, %v4254
  %v4259 = vand.u32 2147483647, %v3959
  %vm4260 = vcmp.eq.f32.partialorder %v4259, 8.507059e+37
  %v4261 = vand.u32 %v3959, 2147483648
  %v4262 = vor.u32 1.1754944e-38, %v4261
  %v4263 = vsel %vm4260, %v4262, %v4258
  %v4264 = vrcp.pop %v3961
  %v4265 = vmul.f32 %v3961, %v4264
  %v4266 = vsub.f32 1.0, %v4265
  %v4267 = vmul.f32 %v4264, %v4266
  %v4268 = vadd.f32 %v4264, %v4267
  %vm4269 = vweird.f32 %v3961
  %vm4270 = vweird.f32 %v4264
  %vm4271 = vmor %vm4269, %vm4270
  %v4272 = vsel %vm4271, %v4264, %v4268
  %v4273 = vand.u32 2147483647, %v3961
  %vm4274 = vcmp.eq.f32.partialorder %v4273, 8.507059e+37
  %v4275 = vand.u32 %v3961, 2147483648
  %v4276 = vor.u32 1.1754944e-38, %v4275
  %v4277 = vsel %vm4274, %v4276, %v4272
  %v4278 = vrcp.pop %v3963
  %v4279 = vmul.f32 %v3963, %v4278
  %v4280 = vsub.f32 1.0, %v4279
  %v4281 = vmul.f32 %v4278, %v4280
  %v4282 = vadd.f32 %v4278, %v4281
  %vm4283 = vweird.f32 %v3963
  %vm4284 = vweird.f32 %v4278
  %vm4285 = vmor %vm4283, %vm4284
  %v4286 = vsel %vm4285, %v4278, %v4282
  %v4287 = vand.u32 2147483647, %v3963
  %vm4288 = vcmp.eq.f32.partialorder %v4287, 8.507059e+37
  %v4289 = vand.u32 %v3963, 2147483648
  %v4290 = vor.u32 1.1754944e-38, %v4289
  %v4291 = vsel %vm4288, %v4290, %v4286
  %v4292 = vrcp.pop %v3965
  %v4293 = vmul.f32 %v3965, %v4292
  %v4294 = vsub.f32 1.0, %v4293
  %v4295 = vmul.f32 %v4292, %v4294
  %v4296 = vadd.f32 %v4292, %v4295
  %vm4297 = vweird.f32 %v3965
  %vm4298 = vweird.f32 %v4292
  %vm4299 = vmor %vm4297, %vm4298
  %v4300 = vsel %vm4299, %v4292, %v4296
  %v4301 = vand.u32 2147483647, %v3965
  %vm4302 = vcmp.eq.f32.partialorder %v4301, 8.507059e+37
  %v4303 = vand.u32 %v3965, 2147483648
  %v4304 = vor.u32 1.1754944e-38, %v4303
  %v4305 = vsel %vm4302, %v4304, %v4300
  %v4306 = vrcp.pop %v3967
  %v4307 = vmul.f32 %v3967, %v4306
  %v4308 = vsub.f32 1.0, %v4307
  %v4309 = vmul.f32 %v4306, %v4308
  %v4310 = vadd.f32 %v4306, %v4309
  %vm4311 = vweird.f32 %v3967
  %vm4312 = vweird.f32 %v4306
  %vm4313 = vmor %vm4311, %vm4312
  %v4314 = vsel %vm4313, %v4306, %v4310
  %v4315 = vand.u32 2147483647, %v3967
  %vm4316 = vcmp.eq.f32.partialorder %v4315, 8.507059e+37
  %v4317 = vand.u32 %v3967, 2147483648
  %v4318 = vor.u32 1.1754944e-38, %v4317
  %v4319 = vsel %vm4316, %v4318, %v4314
  %v4320 = vrcp.pop %v3969
  %v4321 = vmul.f32 %v3969, %v4320
  %v4322 = vsub.f32 1.0, %v4321
  %v4323 = vmul.f32 %v4320, %v4322
  %v4324 = vadd.f32 %v4320, %v4323
  %vm4325 = vweird.f32 %v3969
  %vm4326 = vweird.f32 %v4320
  %vm4327 = vmor %vm4325, %vm4326
  %v4328 = vsel %vm4327, %v4320, %v4324
  %v4329 = vand.u32 2147483647, %v3969
  %vm4330 = vcmp.eq.f32.partialorder %v4329, 8.507059e+37
  %v4331 = vand.u32 %v3969, 2147483648
  %v4332 = vor.u32 1.1754944e-38, %v4331
  %v4333 = vsel %vm4330, %v4332, %v4328
  %v4334 = vrcp.pop %v3971
  %v4335 = vmul.f32 %v3971, %v4334
  %v4336 = vsub.f32 1.0, %v4335
  %v4337 = vmul.f32 %v4334, %v4336
  %v4338 = vadd.f32 %v4334, %v4337
  %vm4339 = vweird.f32 %v3971
  %vm4340 = vweird.f32 %v4334
  %vm4341 = vmor %vm4339, %vm4340
  %v4342 = vsel %vm4341, %v4334, %v4338
  %v4343 = vand.u32 2147483647, %v3971
  %vm4344 = vcmp.eq.f32.partialorder %v4343, 8.507059e+37
  %v4345 = vand.u32 %v3971, 2147483648
  %v4346 = vor.u32 1.1754944e-38, %v4345
  %v4347 = vsel %vm4344, %v4346, %v4342
  %v4348 = vrcp.pop %v3973
  %v4349 = vmul.f32 %v3973, %v4348
  %v4350 = vsub.f32 1.0, %v4349
  %v4351 = vmul.f32 %v4348, %v4350
  %v4352 = vadd.f32 %v4348, %v4351
  %vm4353 = vweird.f32 %v3973
  %vm4354 = vweird.f32 %v4348
  %vm4355 = vmor %vm4353, %vm4354
  %v4356 = vsel %vm4355, %v4348, %v4352
  %v4357 = vand.u32 2147483647, %v3973
  %vm4358 = vcmp.eq.f32.partialorder %v4357, 8.507059e+37
  %v4359 = vand.u32 %v3973, 2147483648
  %v4360 = vor.u32 1.1754944e-38, %v4359
  %v4361 = vsel %vm4358, %v4360, %v4356
  %v4362 = vrcp.pop %v3975
  %v4363 = vmul.f32 %v3975, %v4362
  %v4364 = vsub.f32 1.0, %v4363
  %v4365 = vmul.f32 %v4362, %v4364
  %v4366 = vadd.f32 %v4362, %v4365
  %vm4367 = vweird.f32 %v3975
  %vm4368 = vweird.f32 %v4362
  %vm4369 = vmor %vm4367, %vm4368
  %v4370 = vsel %vm4369, %v4362, %v4366
  %v4371 = vand.u32 2147483647, %v3975
  %vm4372 = vcmp.eq.f32.partialorder %v4371, 8.507059e+37
  %v4373 = vand.u32 %v3975, 2147483648
  %v4374 = vor.u32 1.1754944e-38, %v4373
  %v4375 = vsel %vm4372, %v4374, %v4370
  %v4376 = vrcp.pop %v3977
  %v4377 = vmul.f32 %v3977, %v4376
  %v4378 = vsub.f32 1.0, %v4377
  %v4379 = vmul.f32 %v4376, %v4378
  %v4380 = vadd.f32 %v4376, %v4379
  %vm4381 = vweird.f32 %v3977
  %vm4382 = vweird.f32 %v4376
  %vm4383 = vmor %vm4381, %vm4382
  %v4384 = vsel %vm4383, %v4376, %v4380
  %v4385 = vand.u32 2147483647, %v3977
  %vm4386 = vcmp.eq.f32.partialorder %v4385, 8.507059e+37
  %v4387 = vand.u32 %v3977, 2147483648
  %v4388 = vor.u32 1.1754944e-38, %v4387
  %v4389 = vsel %vm4386, %v4388, %v4384
  %v4390 = vrcp.pop %v3979
  %v4391 = vmul.f32 %v3979, %v4390
  %v4392 = vsub.f32 1.0, %v4391
  %v4393 = vmul.f32 %v4390, %v4392
  %v4394 = vadd.f32 %v4390, %v4393
  %vm4395 = vweird.f32 %v3979
  %vm4396 = vweird.f32 %v4390
  %vm4397 = vmor %vm4395, %vm4396
  %v4398 = vsel %vm4397, %v4390, %v4394
  %v4399 = vand.u32 2147483647, %v3979
  %vm4400 = vcmp.eq.f32.partialorder %v4399, 8.507059e+37
  %v4401 = vand.u32 %v3979, 2147483648
  %v4402 = vor.u32 1.1754944e-38, %v4401
  %v4403 = vsel %vm4400, %v4402, %v4398
  %v4404 = vrcp.pop %v3981
  %v4405 = vmul.f32 %v3981, %v4404
  %v4406 = vsub.f32 1.0, %v4405
  %v4407 = vmul.f32 %v4404, %v4406
  %v4408 = vadd.f32 %v4404, %v4407
  %vm4409 = vweird.f32 %v3981
  %vm4410 = vweird.f32 %v4404
  %vm4411 = vmor %vm4409, %vm4410
  %v4412 = vsel %vm4411, %v4404, %v4408
  %v4413 = vand.u32 2147483647, %v3981
  %vm4414 = vcmp.eq.f32.partialorder %v4413, 8.507059e+37
  %v4415 = vand.u32 %v3981, 2147483648
  %v4416 = vor.u32 1.1754944e-38, %v4415
  %v4417 = vsel %vm4414, %v4416, %v4412
  %v4418 = vrcp.pop %v3983
  %v4419 = vmul.f32 %v3983, %v4418
  %v4420 = vsub.f32 1.0, %v4419
  %v4421 = vmul.f32 %v4418, %v4420
  %v4422 = vadd.f32 %v4418, %v4421
  %vm4423 = vweird.f32 %v3983
  %vm4424 = vweird.f32 %v4418
  %vm4425 = vmor %vm4423, %vm4424
  %v4426 = vsel %vm4425, %v4418, %v4422
  %v4427 = vand.u32 2147483647, %v3983
  %vm4428 = vcmp.eq.f32.partialorder %v4427, 8.507059e+37
  %v4429 = vand.u32 %v3983, 2147483648
  %v4430 = vor.u32 1.1754944e-38, %v4429
  %v4431 = vsel %vm4428, %v4430, %v4426
  %v4432 = vrcp.pop %v3985
  %v4433 = vmul.f32 %v3985, %v4432
  %v4434 = vsub.f32 1.0, %v4433
  %v4435 = vmul.f32 %v4432, %v4434
  %v4436 = vadd.f32 %v4432, %v4435
  %vm4437 = vweird.f32 %v3985
  %vm4438 = vweird.f32 %v4432
  %vm4439 = vmor %vm4437, %vm4438
  %v4440 = vsel %vm4439, %v4432, %v4436
  %v4441 = vand.u32 2147483647, %v3985
  %vm4442 = vcmp.eq.f32.partialorder %v4441, 8.507059e+37
  %v4443 = vand.u32 %v3985, 2147483648
  %v4444 = vor.u32 1.1754944e-38, %v4443
  %v4445 = vsel %vm4442, %v4444, %v4440
  %v4446 = vrcp.pop %v3987
  %v4447 = vmul.f32 %v3987, %v4446
  %v4448 = vsub.f32 1.0, %v4447
  %v4449 = vmul.f32 %v4446, %v4448
  %v4450 = vadd.f32 %v4446, %v4449
  %vm4451 = vweird.f32 %v3987
  %vm4452 = vweird.f32 %v4446
  %vm4453 = vmor %vm4451, %vm4452
  %v4454 = vsel %vm4453, %v4446, %v4450
  %v4455 = vand.u32 2147483647, %v3987
  %vm4456 = vcmp.eq.f32.partialorder %v4455, 8.507059e+37
  %v4457 = vand.u32 %v3987, 2147483648
  %v4458 = vor.u32 1.1754944e-38, %v4457
  %v4459 = vsel %vm4456, %v4458, %v4454
  %v4460 = vrcp.pop %v3989
  %v4461 = vmul.f32 %v3989, %v4460
  %v4462 = vsub.f32 1.0, %v4461
  %v4463 = vmul.f32 %v4460, %v4462
  %v4464 = vadd.f32 %v4460, %v4463
  %vm4465 = vweird.f32 %v3989
  %vm4466 = vweird.f32 %v4460
  %vm4467 = vmor %vm4465, %vm4466
  %v4468 = vsel %vm4467, %v4460, %v4464
  %v4469 = vand.u32 2147483647, %v3989
  %vm4470 = vcmp.eq.f32.partialorder %v4469, 8.507059e+37
  %v4471 = vand.u32 %v3989, 2147483648
  %v4472 = vor.u32 1.1754944e-38, %v4471
  %v4473 = vsel %vm4470, %v4472, %v4468
  %v4474 = vrcp.pop %v3991
  %v4475 = vmul.f32 %v3991, %v4474
  %v4476 = vsub.f32 1.0, %v4475
  %v4477 = vmul.f32 %v4474, %v4476
  %v4478 = vadd.f32 %v4474, %v4477
  %vm4479 = vweird.f32 %v3991
  %vm4480 = vweird.f32 %v4474
  %vm4481 = vmor %vm4479, %vm4480
  %v4482 = vsel %vm4481, %v4474, %v4478
  %v4483 = vand.u32 2147483647, %v3991
  %vm4484 = vcmp.eq.f32.partialorder %v4483, 8.507059e+37
  %v4485 = vand.u32 %v3991, 2147483648
  %v4486 = vor.u32 1.1754944e-38, %v4485
  %v4487 = vsel %vm4484, %v4486, %v4482
  %v4488 = vrcp.pop %v3993
  %v4489 = vmul.f32 %v3993, %v4488
  %v4490 = vsub.f32 1.0, %v4489
  %v4491 = vmul.f32 %v4488, %v4490
  %v4492 = vadd.f32 %v4488, %v4491
  %vm4493 = vweird.f32 %v3993
  %vm4494 = vweird.f32 %v4488
  %vm4495 = vmor %vm4493, %vm4494
  %v4496 = vsel %vm4495, %v4488, %v4492
  %v4497 = vand.u32 2147483647, %v3993
  %vm4498 = vcmp.eq.f32.partialorder %v4497, 8.507059e+37
  %v4499 = vand.u32 %v3993, 2147483648
  %v4500 = vor.u32 1.1754944e-38, %v4499
  %v4501 = vsel %vm4498, %v4500, %v4496
  %v4502 = vrcp.pop %v3995
  %v4503 = vmul.f32 %v3995, %v4502
  %v4504 = vsub.f32 1.0, %v4503
  %v4505 = vmul.f32 %v4502, %v4504
  %v4506 = vadd.f32 %v4502, %v4505
  %vm4507 = vweird.f32 %v3995
  %vm4508 = vweird.f32 %v4502
  %vm4509 = vmor %vm4507, %vm4508
  %v4510 = vsel %vm4509, %v4502, %v4506
  %v4511 = vand.u32 2147483647, %v3995
  %vm4512 = vcmp.eq.f32.partialorder %v4511, 8.507059e+37
  %v4513 = vand.u32 %v3995, 2147483648
  %v4514 = vor.u32 1.1754944e-38, %v4513
  %v4515 = vsel %vm4512, %v4514, %v4510
  %v4516 = vrcp.pop %v3997
  %v4517 = vmul.f32 %v3997, %v4516
  %v4518 = vsub.f32 1.0, %v4517
  %v4519 = vmul.f32 %v4516, %v4518
  %v4520 = vadd.f32 %v4516, %v4519
  %vm4521 = vweird.f32 %v3997
  %vm4522 = vweird.f32 %v4516
  %vm4523 = vmor %vm4521, %vm4522
  %v4524 = vsel %vm4523, %v4516, %v4520
  %v4525 = vand.u32 2147483647, %v3997
  %vm4526 = vcmp.eq.f32.partialorder %v4525, 8.507059e+37
  %v4527 = vand.u32 %v3997, 2147483648
  %v4528 = vor.u32 1.1754944e-38, %v4527
  %v4529 = vsel %vm4526, %v4528, %v4524
  %v4530 = vrcp.pop %v3999
  %v4531 = vmul.f32 %v3999, %v4530
  %v4532 = vsub.f32 1.0, %v4531
  %v4533 = vmul.f32 %v4530, %v4532
  %v4534 = vadd.f32 %v4530, %v4533
  %vm4535 = vweird.f32 %v3999
  %vm4536 = vweird.f32 %v4530
  %vm4537 = vmor %vm4535, %vm4536
  %v4538 = vsel %vm4537, %v4530, %v4534
  %v4539 = vand.u32 2147483647, %v3999
  %vm4540 = vcmp.eq.f32.partialorder %v4539, 8.507059e+37
  %v4541 = vand.u32 %v3999, 2147483648
  %v4542 = vor.u32 1.1754944e-38, %v4541
  %v4543 = vsel %vm4540, %v4542, %v4538
  %v4544 = vmul.f32 %v4109, %v581
  %v4545 = vmul.f32 %v4123, %v581
  %v4546 = vmul.f32 %v4137, %v581
  %v4547 = vmul.f32 %v4151, %v581
  %v4548 = vmul.f32 %v4165, %v581
  %v4549 = vmul.f32 %v4179, %v581
  %v4550 = vmul.f32 %v4193, %v581
  %v4551 = vmul.f32 %v4207, %v581
  %v4552 = vmul.f32 %v4221, %v581
  %v4553 = vmul.f32 %v4235, %v581
  %v4554 = vmul.f32 %v4249, %v581
  %v4555 = vmul.f32 %v4263, %v581
  %v4556 = vmul.f32 %v4277, %v581
  %v4557 = vmul.f32 %v4291, %v581
  %v4558 = vmul.f32 %v4305, %v581
  %v4559 = vmul.f32 %v4319, %v581
  %v4560 = vmul.f32 %v4333, %v581
  %v4561 = vmul.f32 %v4347, %v581
  %v4562 = vmul.f32 %v4361, %v581
  %v4563 = vmul.f32 %v4375, %v581
  %v4564 = vmul.f32 %v4389, %v581
  %v4565 = vmul.f32 %v4403, %v581
  %v4566 = vmul.f32 %v4417, %v581
  %v4567 = vmul.f32 %v4431, %v581
  %v4568 = vmul.f32 %v4445, %v581
  %v4569 = vmul.f32 %v4459, %v581
  %v4570 = vmul.f32 %v4473, %v581
  %v4571 = vmul.f32 %v4487, %v581
  %v4572 = vmul.f32 %v4501, %v581
  %v4573 = vmul.f32 %v4515, %v581
  %v4574 = vmul.f32 %v4529, %v581
  %v4575 = vmul.f32 %v4543, %v581
  %v4576 = vrcp.pop %v4033
  %v4577 = vmul.f32 %v4033, %v4576
  %v4578 = vsub.f32 1.0, %v4577
  %v4579 = vmul.f32 %v4576, %v4578
  %v4580 = vadd.f32 %v4576, %v4579
  %vm4581 = vweird.f32 %v4033
  %vm4582 = vweird.f32 %v4576
  %vm4583 = vmor %vm4581, %vm4582
  %v4584 = vsel %vm4583, %v4576, %v4580
  %v4585 = vand.u32 2147483647, %v4033
  %vm4586 = vcmp.eq.f32.partialorder %v4585, 8.507059e+37
  %v4587 = vand.u32 %v4033, 2147483648
  %v4588 = vor.u32 1.1754944e-38, %v4587
  %v4589 = vsel %vm4586, %v4588, %v4584
  %v4590 = vrcp.pop %v4035
  %v4591 = vmul.f32 %v4035, %v4590
  %v4592 = vsub.f32 1.0, %v4591
  %v4593 = vmul.f32 %v4590, %v4592
  %v4594 = vadd.f32 %v4590, %v4593
  %vm4595 = vweird.f32 %v4035
  %vm4596 = vweird.f32 %v4590
  %vm4597 = vmor %vm4595, %vm4596
  %v4598 = vsel %vm4597, %v4590, %v4594
  %v4599 = vand.u32 2147483647, %v4035
  %vm4600 = vcmp.eq.f32.partialorder %v4599, 8.507059e+37
  %v4601 = vand.u32 %v4035, 2147483648
  %v4602 = vor.u32 1.1754944e-38, %v4601
  %v4603 = vsel %vm4600, %v4602, %v4598
  %v4604 = vrcp.pop %v4037
  %v4605 = vmul.f32 %v4037, %v4604
  %v4606 = vsub.f32 1.0, %v4605
  %v4607 = vmul.f32 %v4604, %v4606
  %v4608 = vadd.f32 %v4604, %v4607
  %vm4609 = vweird.f32 %v4037
  %vm4610 = vweird.f32 %v4604
  %vm4611 = vmor %vm4609, %vm4610
  %v4612 = vsel %vm4611, %v4604, %v4608
  %v4613 = vand.u32 2147483647, %v4037
  %vm4614 = vcmp.eq.f32.partialorder %v4613, 8.507059e+37
  %v4615 = vand.u32 %v4037, 2147483648
  %v4616 = vor.u32 1.1754944e-38, %v4615
  %v4617 = vsel %vm4614, %v4616, %v4612
  %v4618 = vrcp.pop %v4039
  %v4619 = vmul.f32 %v4039, %v4618
  %v4620 = vsub.f32 1.0, %v4619
  %v4621 = vmul.f32 %v4618, %v4620
  %v4622 = vadd.f32 %v4618, %v4621
  %vm4623 = vweird.f32 %v4039
  %vm4624 = vweird.f32 %v4618
  %vm4625 = vmor %vm4623, %vm4624
  %v4626 = vsel %vm4625, %v4618, %v4622
  %v4627 = vand.u32 2147483647, %v4039
  %vm4628 = vcmp.eq.f32.partialorder %v4627, 8.507059e+37
  %v4629 = vand.u32 %v4039, 2147483648
  %v4630 = vor.u32 1.1754944e-38, %v4629
  %v4631 = vsel %vm4628, %v4630, %v4626
  %v4632 = vrcp.pop %v4041
  %v4633 = vmul.f32 %v4041, %v4632
  %v4634 = vsub.f32 1.0, %v4633
  %v4635 = vmul.f32 %v4632, %v4634
  %v4636 = vadd.f32 %v4632, %v4635
  %vm4637 = vweird.f32 %v4041
  %vm4638 = vweird.f32 %v4632
  %vm4639 = vmor %vm4637, %vm4638
  %v4640 = vsel %vm4639, %v4632, %v4636
  %v4641 = vand.u32 2147483647, %v4041
  %vm4642 = vcmp.eq.f32.partialorder %v4641, 8.507059e+37
  %v4643 = vand.u32 %v4041, 2147483648
  %v4644 = vor.u32 1.1754944e-38, %v4643
  %v4645 = vsel %vm4642, %v4644, %v4640
  %v4646 = vrcp.pop %v4043
  %v4647 = vmul.f32 %v4043, %v4646
  %v4648 = vsub.f32 1.0, %v4647
  %v4649 = vmul.f32 %v4646, %v4648
  %v4650 = vadd.f32 %v4646, %v4649
  %vm4651 = vweird.f32 %v4043
  %vm4652 = vweird.f32 %v4646
  %vm4653 = vmor %vm4651, %vm4652
  %v4654 = vsel %vm4653, %v4646, %v4650
  %v4655 = vand.u32 2147483647, %v4043
  %vm4656 = vcmp.eq.f32.partialorder %v4655, 8.507059e+37
  %v4657 = vand.u32 %v4043, 2147483648
  %v4658 = vor.u32 1.1754944e-38, %v4657
  %v4659 = vsel %vm4656, %v4658, %v4654
  %v4660 = vrcp.pop %v4045
  %v4661 = vmul.f32 %v4045, %v4660
  %v4662 = vsub.f32 1.0, %v4661
  %v4663 = vmul.f32 %v4660, %v4662
  %v4664 = vadd.f32 %v4660, %v4663
  %vm4665 = vweird.f32 %v4045
  %vm4666 = vweird.f32 %v4660
  %vm4667 = vmor %vm4665, %vm4666
  %v4668 = vsel %vm4667, %v4660, %v4664
  %v4669 = vand.u32 2147483647, %v4045
  %vm4670 = vcmp.eq.f32.partialorder %v4669, 8.507059e+37
  %v4671 = vand.u32 %v4045, 2147483648
  %v4672 = vor.u32 1.1754944e-38, %v4671
  %v4673 = vsel %vm4670, %v4672, %v4668
  %v4674 = vrcp.pop %v4047
  %v4675 = vmul.f32 %v4047, %v4674
  %v4676 = vsub.f32 1.0, %v4675
  %v4677 = vmul.f32 %v4674, %v4676
  %v4678 = vadd.f32 %v4674, %v4677
  %vm4679 = vweird.f32 %v4047
  %vm4680 = vweird.f32 %v4674
  %vm4681 = vmor %vm4679, %vm4680
  %v4682 = vsel %vm4681, %v4674, %v4678
  %v4683 = vand.u32 2147483647, %v4047
  %vm4684 = vcmp.eq.f32.partialorder %v4683, 8.507059e+37
  %v4685 = vand.u32 %v4047, 2147483648
  %v4686 = vor.u32 1.1754944e-38, %v4685
  %v4687 = vsel %vm4684, %v4686, %v4682
  %v4688 = vrcp.pop %v4049
  %v4689 = vmul.f32 %v4049, %v4688
  %v4690 = vsub.f32 1.0, %v4689
  %v4691 = vmul.f32 %v4688, %v4690
  %v4692 = vadd.f32 %v4688, %v4691
  %vm4693 = vweird.f32 %v4049
  %vm4694 = vweird.f32 %v4688
  %vm4695 = vmor %vm4693, %vm4694
  %v4696 = vsel %vm4695, %v4688, %v4692
  %v4697 = vand.u32 2147483647, %v4049
  %vm4698 = vcmp.eq.f32.partialorder %v4697, 8.507059e+37
  %v4699 = vand.u32 %v4049, 2147483648
  %v4700 = vor.u32 1.1754944e-38, %v4699
  %v4701 = vsel %vm4698, %v4700, %v4696
  %v4702 = vrcp.pop %v4051
  %v4703 = vmul.f32 %v4051, %v4702
  %v4704 = vsub.f32 1.0, %v4703
  %v4705 = vmul.f32 %v4702, %v4704
  %v4706 = vadd.f32 %v4702, %v4705
  %vm4707 = vweird.f32 %v4051
  %vm4708 = vweird.f32 %v4702
  %vm4709 = vmor %vm4707, %vm4708
  %v4710 = vsel %vm4709, %v4702, %v4706
  %v4711 = vand.u32 2147483647, %v4051
  %vm4712 = vcmp.eq.f32.partialorder %v4711, 8.507059e+37
  %v4713 = vand.u32 %v4051, 2147483648
  %v4714 = vor.u32 1.1754944e-38, %v4713
  %v4715 = vsel %vm4712, %v4714, %v4710
  %v4716 = vrcp.pop %v4053
  %v4717 = vmul.f32 %v4053, %v4716
  %v4718 = vsub.f32 1.0, %v4717
  %v4719 = vmul.f32 %v4716, %v4718
  %v4720 = vadd.f32 %v4716, %v4719
  %vm4721 = vweird.f32 %v4053
  %vm4722 = vweird.f32 %v4716
  %vm4723 = vmor %vm4721, %vm4722
  %v4724 = vsel %vm4723, %v4716, %v4720
  %v4725 = vand.u32 2147483647, %v4053
  %vm4726 = vcmp.eq.f32.partialorder %v4725, 8.507059e+37
  %v4727 = vand.u32 %v4053, 2147483648
  %v4728 = vor.u32 1.1754944e-38, %v4727
  %v4729 = vsel %vm4726, %v4728, %v4724
  %v4730 = vrcp.pop %v4055
  %v4731 = vmul.f32 %v4055, %v4730
  %v4732 = vsub.f32 1.0, %v4731
  %v4733 = vmul.f32 %v4730, %v4732
  %v4734 = vadd.f32 %v4730, %v4733
  %vm4735 = vweird.f32 %v4055
  %vm4736 = vweird.f32 %v4730
  %vm4737 = vmor %vm4735, %vm4736
  %v4738 = vsel %vm4737, %v4730, %v4734
  %v4739 = vand.u32 2147483647, %v4055
  %vm4740 = vcmp.eq.f32.partialorder %v4739, 8.507059e+37
  %v4741 = vand.u32 %v4055, 2147483648
  %v4742 = vor.u32 1.1754944e-38, %v4741
  %v4743 = vsel %vm4740, %v4742, %v4738
  %v4744 = vrcp.pop %v4057
  %v4745 = vmul.f32 %v4057, %v4744
  %v4746 = vsub.f32 1.0, %v4745
  %v4747 = vmul.f32 %v4744, %v4746
  %v4748 = vadd.f32 %v4744, %v4747
  %vm4749 = vweird.f32 %v4057
  %vm4750 = vweird.f32 %v4744
  %vm4751 = vmor %vm4749, %vm4750
  %v4752 = vsel %vm4751, %v4744, %v4748
  %v4753 = vand.u32 2147483647, %v4057
  %vm4754 = vcmp.eq.f32.partialorder %v4753, 8.507059e+37
  %v4755 = vand.u32 %v4057, 2147483648
  %v4756 = vor.u32 1.1754944e-38, %v4755
  %v4757 = vsel %vm4754, %v4756, %v4752
  %v4758 = vrcp.pop %v4059
  %v4759 = vmul.f32 %v4059, %v4758
  %v4760 = vsub.f32 1.0, %v4759
  %v4761 = vmul.f32 %v4758, %v4760
  %v4762 = vadd.f32 %v4758, %v4761
  %vm4763 = vweird.f32 %v4059
  %vm4764 = vweird.f32 %v4758
  %vm4765 = vmor %vm4763, %vm4764
  %v4766 = vsel %vm4765, %v4758, %v4762
  %v4767 = vand.u32 2147483647, %v4059
  %vm4768 = vcmp.eq.f32.partialorder %v4767, 8.507059e+37
  %v4769 = vand.u32 %v4059, 2147483648
  %v4770 = vor.u32 1.1754944e-38, %v4769
  %v4771 = vsel %vm4768, %v4770, %v4766
  %v4772 = vrcp.pop %v4061
  %v4773 = vmul.f32 %v4061, %v4772
  %v4774 = vsub.f32 1.0, %v4773
  %v4775 = vmul.f32 %v4772, %v4774
  %v4776 = vadd.f32 %v4772, %v4775
  %vm4777 = vweird.f32 %v4061
  %vm4778 = vweird.f32 %v4772
  %vm4779 = vmor %vm4777, %vm4778
  %v4780 = vsel %vm4779, %v4772, %v4776
  %v4781 = vand.u32 2147483647, %v4061
  %vm4782 = vcmp.eq.f32.partialorder %v4781, 8.507059e+37
  %v4783 = vand.u32 %v4061, 2147483648
  %v4784 = vor.u32 1.1754944e-38, %v4783
  %v4785 = vsel %vm4782, %v4784, %v4780
  %v4786 = vrcp.pop %v4063
  %v4787 = vmul.f32 %v4063, %v4786
  %v4788 = vsub.f32 1.0, %v4787
  %v4789 = vmul.f32 %v4786, %v4788
  %v4790 = vadd.f32 %v4786, %v4789
  %vm4791 = vweird.f32 %v4063
  %vm4792 = vweird.f32 %v4786
  %vm4793 = vmor %vm4791, %vm4792
  %v4794 = vsel %vm4793, %v4786, %v4790
  %v4795 = vand.u32 2147483647, %v4063
  %vm4796 = vcmp.eq.f32.partialorder %v4795, 8.507059e+37
  %v4797 = vand.u32 %v4063, 2147483648
  %v4798 = vor.u32 1.1754944e-38, %v4797
  %v4799 = vsel %vm4796, %v4798, %v4794
  %v4800 = vrcp.pop %v4065
  %v4801 = vmul.f32 %v4065, %v4800
  %v4802 = vsub.f32 1.0, %v4801
  %v4803 = vmul.f32 %v4800, %v4802
  %v4804 = vadd.f32 %v4800, %v4803
  %vm4805 = vweird.f32 %v4065
  %vm4806 = vweird.f32 %v4800
  %vm4807 = vmor %vm4805, %vm4806
  %v4808 = vsel %vm4807, %v4800, %v4804
  %v4809 = vand.u32 2147483647, %v4065
  %vm4810 = vcmp.eq.f32.partialorder %v4809, 8.507059e+37
  %v4811 = vand.u32 %v4065, 2147483648
  %v4812 = vor.u32 1.1754944e-38, %v4811
  %v4813 = vsel %vm4810, %v4812, %v4808
  %v4814 = vrcp.pop %v4067
  %v4815 = vmul.f32 %v4067, %v4814
  %v4816 = vsub.f32 1.0, %v4815
  %v4817 = vmul.f32 %v4814, %v4816
  %v4818 = vadd.f32 %v4814, %v4817
  %vm4819 = vweird.f32 %v4067
  %vm4820 = vweird.f32 %v4814
  %vm4821 = vmor %vm4819, %vm4820
  %v4822 = vsel %vm4821, %v4814, %v4818
  %v4823 = vand.u32 2147483647, %v4067
  %vm4824 = vcmp.eq.f32.partialorder %v4823, 8.507059e+37
  %v4825 = vand.u32 %v4067, 2147483648
  %v4826 = vor.u32 1.1754944e-38, %v4825
  %v4827 = vsel %vm4824, %v4826, %v4822
  %v4828 = vrcp.pop %v4069
  %v4829 = vmul.f32 %v4069, %v4828
  %v4830 = vsub.f32 1.0, %v4829
  %v4831 = vmul.f32 %v4828, %v4830
  %v4832 = vadd.f32 %v4828, %v4831
  %vm4833 = vweird.f32 %v4069
  %vm4834 = vweird.f32 %v4828
  %vm4835 = vmor %vm4833, %vm4834
  %v4836 = vsel %vm4835, %v4828, %v4832
  %v4837 = vand.u32 2147483647, %v4069
  %vm4838 = vcmp.eq.f32.partialorder %v4837, 8.507059e+37
  %v4839 = vand.u32 %v4069, 2147483648
  %v4840 = vor.u32 1.1754944e-38, %v4839
  %v4841 = vsel %vm4838, %v4840, %v4836
  %v4842 = vrcp.pop %v4071
  %v4843 = vmul.f32 %v4071, %v4842
  %v4844 = vsub.f32 1.0, %v4843
  %v4845 = vmul.f32 %v4842, %v4844
  %v4846 = vadd.f32 %v4842, %v4845
  %vm4847 = vweird.f32 %v4071
  %vm4848 = vweird.f32 %v4842
  %vm4849 = vmor %vm4847, %vm4848
  %v4850 = vsel %vm4849, %v4842, %v4846
  %v4851 = vand.u32 2147483647, %v4071
  %vm4852 = vcmp.eq.f32.partialorder %v4851, 8.507059e+37
  %v4853 = vand.u32 %v4071, 2147483648
  %v4854 = vor.u32 1.1754944e-38, %v4853
  %v4855 = vsel %vm4852, %v4854, %v4850
  %v4856 = vrcp.pop %v4073
  %v4857 = vmul.f32 %v4073, %v4856
  %v4858 = vsub.f32 1.0, %v4857
  %v4859 = vmul.f32 %v4856, %v4858
  %v4860 = vadd.f32 %v4856, %v4859
  %vm4861 = vweird.f32 %v4073
  %vm4862 = vweird.f32 %v4856
  %vm4863 = vmor %vm4861, %vm4862
  %v4864 = vsel %vm4863, %v4856, %v4860
  %v4865 = vand.u32 2147483647, %v4073
  %vm4866 = vcmp.eq.f32.partialorder %v4865, 8.507059e+37
  %v4867 = vand.u32 %v4073, 2147483648
  %v4868 = vor.u32 1.1754944e-38, %v4867
  %v4869 = vsel %vm4866, %v4868, %v4864
  %v4870 = vrcp.pop %v4075
  %v4871 = vmul.f32 %v4075, %v4870
  %v4872 = vsub.f32 1.0, %v4871
  %v4873 = vmul.f32 %v4870, %v4872
  %v4874 = vadd.f32 %v4870, %v4873
  %vm4875 = vweird.f32 %v4075
  %vm4876 = vweird.f32 %v4870
  %vm4877 = vmor %vm4875, %vm4876
  %v4878 = vsel %vm4877, %v4870, %v4874
  %v4879 = vand.u32 2147483647, %v4075
  %vm4880 = vcmp.eq.f32.partialorder %v4879, 8.507059e+37
  %v4881 = vand.u32 %v4075, 2147483648
  %v4882 = vor.u32 1.1754944e-38, %v4881
  %v4883 = vsel %vm4880, %v4882, %v4878
  %v4884 = vrcp.pop %v4077
  %v4885 = vmul.f32 %v4077, %v4884
  %v4886 = vsub.f32 1.0, %v4885
  %v4887 = vmul.f32 %v4884, %v4886
  %v4888 = vadd.f32 %v4884, %v4887
  %vm4889 = vweird.f32 %v4077
  %vm4890 = vweird.f32 %v4884
  %vm4891 = vmor %vm4889, %vm4890
  %v4892 = vsel %vm4891, %v4884, %v4888
  %v4893 = vand.u32 2147483647, %v4077
  %vm4894 = vcmp.eq.f32.partialorder %v4893, 8.507059e+37
  %v4895 = vand.u32 %v4077, 2147483648
  %v4896 = vor.u32 1.1754944e-38, %v4895
  %v4897 = vsel %vm4894, %v4896, %v4892
  %v4898 = vrcp.pop %v4079
  %v4899 = vmul.f32 %v4079, %v4898
  %v4900 = vsub.f32 1.0, %v4899
  %v4901 = vmul.f32 %v4898, %v4900
  %v4902 = vadd.f32 %v4898, %v4901
  %vm4903 = vweird.f32 %v4079
  %vm4904 = vweird.f32 %v4898
  %vm4905 = vmor %vm4903, %vm4904
  %v4906 = vsel %vm4905, %v4898, %v4902
  %v4907 = vand.u32 2147483647, %v4079
  %vm4908 = vcmp.eq.f32.partialorder %v4907, 8.507059e+37
  %v4909 = vand.u32 %v4079, 2147483648
  %v4910 = vor.u32 1.1754944e-38, %v4909
  %v4911 = vsel %vm4908, %v4910, %v4906
  %v4912 = vrcp.pop %v4081
  %v4913 = vmul.f32 %v4081, %v4912
  %v4914 = vsub.f32 1.0, %v4913
  %v4915 = vmul.f32 %v4912, %v4914
  %v4916 = vadd.f32 %v4912, %v4915
  %vm4917 = vweird.f32 %v4081
  %vm4918 = vweird.f32 %v4912
  %vm4919 = vmor %vm4917, %vm4918
  %v4920 = vsel %vm4919, %v4912, %v4916
  %v4921 = vand.u32 2147483647, %v4081
  %vm4922 = vcmp.eq.f32.partialorder %v4921, 8.507059e+37
  %v4923 = vand.u32 %v4081, 2147483648
  %v4924 = vor.u32 1.1754944e-38, %v4923
  %v4925 = vsel %vm4922, %v4924, %v4920
  %v4926 = vrcp.pop %v4083
  %v4927 = vmul.f32 %v4083, %v4926
  %v4928 = vsub.f32 1.0, %v4927
  %v4929 = vmul.f32 %v4926, %v4928
  %v4930 = vadd.f32 %v4926, %v4929
  %vm4931 = vweird.f32 %v4083
  %vm4932 = vweird.f32 %v4926
  %vm4933 = vmor %vm4931, %vm4932
  %v4934 = vsel %vm4933, %v4926, %v4930
  %v4935 = vand.u32 2147483647, %v4083
  %vm4936 = vcmp.eq.f32.partialorder %v4935, 8.507059e+37
  %v4937 = vand.u32 %v4083, 2147483648
  %v4938 = vor.u32 1.1754944e-38, %v4937
  %v4939 = vsel %vm4936, %v4938, %v4934
  %v4940 = vrcp.pop %v4085
  %v4941 = vmul.f32 %v4085, %v4940
  %v4942 = vsub.f32 1.0, %v4941
  %v4943 = vmul.f32 %v4940, %v4942
  %v4944 = vadd.f32 %v4940, %v4943
  %vm4945 = vweird.f32 %v4085
  %vm4946 = vweird.f32 %v4940
  %vm4947 = vmor %vm4945, %vm4946
  %v4948 = vsel %vm4947, %v4940, %v4944
  %v4949 = vand.u32 2147483647, %v4085
  %vm4950 = vcmp.eq.f32.partialorder %v4949, 8.507059e+37
  %v4951 = vand.u32 %v4085, 2147483648
  %v4952 = vor.u32 1.1754944e-38, %v4951
  %v4953 = vsel %vm4950, %v4952, %v4948
  %v4954 = vrcp.pop %v4087
  %v4955 = vmul.f32 %v4087, %v4954
  %v4956 = vsub.f32 1.0, %v4955
  %v4957 = vmul.f32 %v4954, %v4956
  %v4958 = vadd.f32 %v4954, %v4957
  %vm4959 = vweird.f32 %v4087
  %vm4960 = vweird.f32 %v4954
  %vm4961 = vmor %vm4959, %vm4960
  %v4962 = vsel %vm4961, %v4954, %v4958
  %v4963 = vand.u32 2147483647, %v4087
  %vm4964 = vcmp.eq.f32.partialorder %v4963, 8.507059e+37
  %v4965 = vand.u32 %v4087, 2147483648
  %v4966 = vor.u32 1.1754944e-38, %v4965
  %v4967 = vsel %vm4964, %v4966, %v4962
  %v4968 = vrcp.pop %v4089
  %v4969 = vmul.f32 %v4089, %v4968
  %v4970 = vsub.f32 1.0, %v4969
  %v4971 = vmul.f32 %v4968, %v4970
  %v4972 = vadd.f32 %v4968, %v4971
  %vm4973 = vweird.f32 %v4089
  %vm4974 = vweird.f32 %v4968
  %vm4975 = vmor %vm4973, %vm4974
  %v4976 = vsel %vm4975, %v4968, %v4972
  %v4977 = vand.u32 2147483647, %v4089
  %vm4978 = vcmp.eq.f32.partialorder %v4977, 8.507059e+37
  %v4979 = vand.u32 %v4089, 2147483648
  %v4980 = vor.u32 1.1754944e-38, %v4979
  %v4981 = vsel %vm4978, %v4980, %v4976
  %v4982 = vrcp.pop %v4091
  %v4983 = vmul.f32 %v4091, %v4982
  %v4984 = vsub.f32 1.0, %v4983
  %v4985 = vmul.f32 %v4982, %v4984
  %v4986 = vadd.f32 %v4982, %v4985
  %vm4987 = vweird.f32 %v4091
  %vm4988 = vweird.f32 %v4982
  %vm4989 = vmor %vm4987, %vm4988
  %v4990 = vsel %vm4989, %v4982, %v4986
  %v4991 = vand.u32 2147483647, %v4091
  %vm4992 = vcmp.eq.f32.partialorder %v4991, 8.507059e+37
  %v4993 = vand.u32 %v4091, 2147483648
  %v4994 = vor.u32 1.1754944e-38, %v4993
  %v4995 = vsel %vm4992, %v4994, %v4990
  %v4996 = vrcp.pop %v4093
  %v4997 = vmul.f32 %v4093, %v4996
  %v4998 = vsub.f32 1.0, %v4997
  %v4999 = vmul.f32 %v4996, %v4998
  %v5000 = vadd.f32 %v4996, %v4999
  %vm5001 = vweird.f32 %v4093
  %vm5002 = vweird.f32 %v4996
  %vm5003 = vmor %vm5001, %vm5002
  %v5004 = vsel %vm5003, %v4996, %v5000
  %v5005 = vand.u32 2147483647, %v4093
  %vm5006 = vcmp.eq.f32.partialorder %v5005, 8.507059e+37
  %v5007 = vand.u32 %v4093, 2147483648
  %v5008 = vor.u32 1.1754944e-38, %v5007
  %v5009 = vsel %vm5006, %v5008, %v5004
  %v5010 = vrcp.pop %v4095
  %v5011 = vmul.f32 %v4095, %v5010
  %v5012 = vsub.f32 1.0, %v5011
  %v5013 = vmul.f32 %v5010, %v5012
  %v5014 = vadd.f32 %v5010, %v5013
  %vm5015 = vweird.f32 %v4095
  %vm5016 = vweird.f32 %v5010
  %vm5017 = vmor %vm5015, %vm5016
  %v5018 = vsel %vm5017, %v5010, %v5014
  %v5019 = vand.u32 2147483647, %v4095
  %vm5020 = vcmp.eq.f32.partialorder %v5019, 8.507059e+37
  %v5021 = vand.u32 %v4095, 2147483648
  %v5022 = vor.u32 1.1754944e-38, %v5021
  %v5023 = vsel %vm5020, %v5022, %v5018
  %v5024 = vmul.f32 %v4589, %v588
  %v5025 = vmul.f32 %v4603, %v588
  %v5026 = vmul.f32 %v4617, %v588
  %v5027 = vmul.f32 %v4631, %v588
  %v5028 = vmul.f32 %v4645, %v588
  %v5029 = vmul.f32 %v4659, %v588
  %v5030 = vmul.f32 %v4673, %v588
  %v5031 = vmul.f32 %v4687, %v588
  %v5032 = vmul.f32 %v4701, %v588
  %v5033 = vmul.f32 %v4715, %v588
  %v5034 = vmul.f32 %v4729, %v588
  %v5035 = vmul.f32 %v4743, %v588
  %v5036 = vmul.f32 %v4757, %v588
  %v5037 = vmul.f32 %v4771, %v588
  %v5038 = vmul.f32 %v4785, %v588
  %v5039 = vmul.f32 %v4799, %v588
  %v5040 = vmul.f32 %v4813, %v588
  %v5041 = vmul.f32 %v4827, %v588
  %v5042 = vmul.f32 %v4841, %v588
  %v5043 = vmul.f32 %v4855, %v588
  %v5044 = vmul.f32 %v4869, %v588
  %v5045 = vmul.f32 %v4883, %v588
  %v5046 = vmul.f32 %v4897, %v588
  %v5047 = vmul.f32 %v4911, %v588
  %v5048 = vmul.f32 %v4925, %v588
  %v5049 = vmul.f32 %v4939, %v588
  %v5050 = vmul.f32 %v4953, %v588
  %v5051 = vmul.f32 %v4967, %v588
  %v5052 = vmul.f32 %v4981, %v588
  %v5053 = vmul.f32 %v4995, %v588
  %v5054 = vmul.f32 %v5009, %v588
  %v5055 = vmul.f32 %v5023, %v588
  %v5056 = vadd.f32 %v4544, %v5024
  %v5057 = vadd.f32 %v4545, %v5025
  %v5058 = vadd.f32 %v4546, %v5026
  %v5059 = vadd.f32 %v4547, %v5027
  %v5060 = vadd.f32 %v4548, %v5028
  %v5061 = vadd.f32 %v4549, %v5029
  %v5062 = vadd.f32 %v4550, %v5030
  %v5063 = vadd.f32 %v4551, %v5031
  %v5064 = vadd.f32 %v4552, %v5032
  %v5065 = vadd.f32 %v4553, %v5033
  %v5066 = vadd.f32 %v4554, %v5034
  %v5067 = vadd.f32 %v4555, %v5035
  %v5068 = vadd.f32 %v4556, %v5036
  %v5069 = vadd.f32 %v4557, %v5037
  %v5070 = vadd.f32 %v4558, %v5038
  %v5071 = vadd.f32 %v4559, %v5039
  %v5072 = vadd.f32 %v4560, %v5040
  %v5073 = vadd.f32 %v4561, %v5041
  %v5074 = vadd.f32 %v4562, %v5042
  %v5075 = vadd.f32 %v4563, %v5043
  %v5076 = vadd.f32 %v4564, %v5044
  %v5077 = vadd.f32 %v4565, %v5045
  %v5078 = vadd.f32 %v4566, %v5046
  %v5079 = vadd.f32 %v4567, %v5047
  %v5080 = vadd.f32 %v4568, %v5048
  %v5081 = vadd.f32 %v4569, %v5049
  %v5082 = vadd.f32 %v4570, %v5050
  %v5083 = vadd.f32 %v4571, %v5051
  %v5084 = vadd.f32 %v4572, %v5052
  %v5085 = vadd.f32 %v4573, %v5053
  %v5086 = vadd.f32 %v4574, %v5054
  %v5087 = vadd.f32 %v4575, %v5055
  %v5088 = vmul.f32 %v3841, %v5056
  %v5089 = vmul.f32 %v3843, %v5057
  %v5090 = vmul.f32 %v3845, %v5058
  %v5091 = vmul.f32 %v3847, %v5059
  %v5092 = vmul.f32 %v3849, %v5060
  %v5093 = vmul.f32 %v3851, %v5061
  %v5094 = vmul.f32 %v3853, %v5062
  %v5095 = vmul.f32 %v3855, %v5063
  %v5096 = vmul.f32 %v3857, %v5064
  %v5097 = vmul.f32 %v3859, %v5065
  %v5098 = vmul.f32 %v3861, %v5066
  %v5099 = vmul.f32 %v3863, %v5067
  %v5100 = vmul.f32 %v3865, %v5068
  %v5101 = vmul.f32 %v3867, %v5069
  %v5102 = vmul.f32 %v3869, %v5070
  %v5103 = vmul.f32 %v3871, %v5071
  %v5104 = vmul.f32 %v3873, %v5072
  %v5105 = vmul.f32 %v3875, %v5073
  %v5106 = vmul.f32 %v3877, %v5074
  %v5107 = vmul.f32 %v3879, %v5075
  %v5108 = vmul.f32 %v3881, %v5076
  %v5109 = vmul.f32 %v3883, %v5077
  %v5110 = vmul.f32 %v3885, %v5078
  %v5111 = vmul.f32 %v3887, %v5079
  %v5112 = vmul.f32 %v3889, %v5080
  %v5113 = vmul.f32 %v3891, %v5081
  %v5114 = vmul.f32 %v3893, %v5082
  %v5115 = vmul.f32 %v3895, %v5083
  %v5116 = vmul.f32 %v3897, %v5084
  %v5117 = vmul.f32 %v3899, %v5085
  %v5118 = vmul.f32 %v3901, %v5086
  %v5119 = vmul.f32 %v3903, %v5087
  %5120 = vmatpush.xpose.msra.mxu0 0.0
  %5121 = vmatpush.xpose.msra.mxu0 0.0
  %5122 = vmatpush.xpose.msra.mxu0 0.0
  %5123 = vmatpush.xpose.msra.mxu0 0.0
  %5124 = vmatpush.xpose.msra.mxu0 0.0
  %5125 = vmatpush.xpose.msra.mxu0 0.0
  %5126 = vmatpush.xpose.msra.mxu0 0.0
  %5127 = vmatpush.xpose.msra.mxu0 0.0
  %5128 = vmatpush.xpose.msra.mxu0 %v5095
  %5129 = vmatpush.xpose.msra.mxu0 %v5094
  %5130 = vmatpush.xpose.msra.mxu0 %v5093
  %5131 = vmatpush.xpose.msra.mxu0 %v5092
  %5132 = vmatpush.xpose.msra.mxu0 %v5091
  %5133 = vmatpush.xpose.msra.mxu0 %v5090
  %5134 = vmatpush.xpose.msra.mxu0 %v5089
  %5135 = vmatpush.xpose.msra.mxu0 %v5088
  %5136 = vmatmul.f32.gmra.mxu0 %v594
  %v5137 = vpop.f32.mrf.mxu0
  %v5138 = vadd.f32 0.0, %v5137
  %5139 = vmatmul.f32.gmra.mxu0 %v598
  %v5140 = vpop.f32.mrf.mxu0
  %v5141 = vadd.f32 0.0, %v5140
  %5142 = vdwg.mxu0
  %5143 = vmatpush.xpose.msra.mxu0 0.0
  %5144 = vmatpush.xpose.msra.mxu0 0.0
  %5145 = vmatpush.xpose.msra.mxu0 0.0
  %5146 = vmatpush.xpose.msra.mxu0 0.0
  %5147 = vmatpush.xpose.msra.mxu0 0.0
  %5148 = vmatpush.xpose.msra.mxu0 0.0
  %5149 = vmatpush.xpose.msra.mxu0 0.0
  %5150 = vmatpush.xpose.msra.mxu0 0.0
  %5151 = vmatpush.xpose.msra.mxu0 %v5103
  %5152 = vmatpush.xpose.msra.mxu0 %v5102
  %5153 = vmatpush.xpose.msra.mxu0 %v5101
  %5154 = vmatpush.xpose.msra.mxu0 %v5100
  %5155 = vmatpush.xpose.msra.mxu0 %v5099
  %5156 = vmatpush.xpose.msra.mxu0 %v5098
  %5157 = vmatpush.xpose.msra.mxu0 %v5097
  %5158 = vmatpush.xpose.msra.mxu0 %v5096
  %5159 = vmatmul.f32.gmra.mxu0 %v595
  %v5160 = vpop.f32.mrf.mxu0
  %v5161 = vadd.f32 0.0, %v5160
  %5162 = vmatmul.f32.gmra.mxu0 %v599
  %v5163 = vpop.f32.mrf.mxu0
  %v5164 = vadd.f32 0.0, %v5163
  %5165 = vdwg.mxu0
  %5166 = vmatpush.xpose.msra.mxu0 0.0
  %5167 = vmatpush.xpose.msra.mxu0 0.0
  %5168 = vmatpush.xpose.msra.mxu0 0.0
  %5169 = vmatpush.xpose.msra.mxu0 0.0
  %5170 = vmatpush.xpose.msra.mxu0 0.0
  %5171 = vmatpush.xpose.msra.mxu0 0.0
  %5172 = vmatpush.xpose.msra.mxu0 0.0
  %5173 = vmatpush.xpose.msra.mxu0 0.0
  %5174 = vmatpush.xpose.msra.mxu0 %v5111
  %5175 = vmatpush.xpose.msra.mxu0 %v5110
  %5176 = vmatpush.xpose.msra.mxu0 %v5109
  %5177 = vmatpush.xpose.msra.mxu0 %v5108
  %5178 = vmatpush.xpose.msra.mxu0 %v5107
  %5179 = vmatpush.xpose.msra.mxu0 %v5106
  %5180 = vmatpush.xpose.msra.mxu0 %v5105
  %5181 = vmatpush.xpose.msra.mxu0 %v5104
  %5182 = vmatmul.f32.gmra.mxu0 %v596
  %v5183 = vpop.f32.mrf.mxu0
  %v5184 = vadd.f32 0.0, %v5183
  %5185 = vmatmul.f32.gmra.mxu0 %v600
  %v5186 = vpop.f32.mrf.mxu0
  %v5187 = vadd.f32 0.0, %v5186
  %5188 = vdwg.mxu0
  %5189 = vmatpush.xpose.msra.mxu0 0.0
  %5190 = vmatpush.xpose.msra.mxu0 0.0
  %5191 = vmatpush.xpose.msra.mxu0 0.0
  %5192 = vmatpush.xpose.msra.mxu0 0.0
  %5193 = vmatpush.xpose.msra.mxu0 0.0
  %5194 = vmatpush.xpose.msra.mxu0 0.0
  %5195 = vmatpush.xpose.msra.mxu0 0.0
  %5196 = vmatpush.xpose.msra.mxu0 0.0
  %5197 = vmatpush.xpose.msra.mxu0 %v5119
  %5198 = vmatpush.xpose.msra.mxu0 %v5118
  %5199 = vmatpush.xpose.msra.mxu0 %v5117
  %5200 = vmatpush.xpose.msra.mxu0 %v5116
  %5201 = vmatpush.xpose.msra.mxu0 %v5115
  %5202 = vmatpush.xpose.msra.mxu0 %v5114
  %5203 = vmatpush.xpose.msra.mxu0 %v5113
  %5204 = vmatpush.xpose.msra.mxu0 %v5112
  %5205 = vmatmul.f32.gmra.mxu0 %v597
  %v5206 = vpop.f32.mrf.mxu0
  %v5207 = vadd.f32 0.0, %v5206
  %5208 = vmatmul.f32.gmra.mxu0 %v601
  %v5209 = vpop.f32.mrf.mxu0
  %v5210 = vadd.f32 0.0, %v5209
  %5211 = vdwg.mxu0
  %v5212 = vld [vmem:[%s15] sm:$0xff]
  %v5213 = vld [vmem:[%s15 + $0x8] sm:$0xff]
  %v5214 = vld [vmem:[%s15 + $0x10] sm:$0xff]
  %v5215 = vld [vmem:[%s15 + $0x18] sm:$0xff]
  %v5216 = vld [vmem:[%s15 + $0x20] sm:$0xff]
  %v5217 = vld [vmem:[%s15 + $0x28] sm:$0xff]
  %v5218 = vld [vmem:[%s15 + $0x30] sm:$0xff]
  %v5219 = vld [vmem:[%s15 + $0x38] sm:$0xff]
  %v5220 = vld [vmem:[%s16] sm:$0xff]
  %v5221 = vld [vmem:[%s16 + $0x8] sm:$0xff]
  %v5222 = vld [vmem:[%s16 + $0x10] sm:$0xff]
  %v5223 = vld [vmem:[%s16 + $0x18] sm:$0xff]
  %v5224 = vld [vmem:[%s16 + $0x20] sm:$0xff]
  %v5225 = vld [vmem:[%s16 + $0x28] sm:$0xff]
  %v5226 = vld [vmem:[%s16 + $0x30] sm:$0xff]
  %v5227 = vld [vmem:[%s16 + $0x38] sm:$0xff]
  %5229 = vset.pattern.permute.xlu0 0
  %5230 = vperm.xlu0 %5229, %v5220
  %v5231 = vpop.permute.xlu0 %5230
  %5234 = vset.pattern.permute.xlu0 0
  %5235 = vperm.xlu0 %5234, %v5221
  %v5236 = vpop.permute.xlu0 %5235
  %5239 = vset.pattern.permute.xlu0 0
  %5240 = vperm.xlu0 %5239, %v5222
  %v5241 = vpop.permute.xlu0 %5240
  %5244 = vset.pattern.permute.xlu0 0
  %5245 = vperm.xlu0 %5244, %v5223
  %v5246 = vpop.permute.xlu0 %5245
  %5249 = vset.pattern.permute.xlu0 0
  %5250 = vperm.xlu0 %5249, %v5224
  %v5251 = vpop.permute.xlu0 %5250
  %5254 = vset.pattern.permute.xlu0 0
  %5255 = vperm.xlu0 %5254, %v5225
  %v5256 = vpop.permute.xlu0 %5255
  %5259 = vset.pattern.permute.xlu0 0
  %5260 = vperm.xlu0 %5259, %v5226
  %v5261 = vpop.permute.xlu0 %5260
  %5264 = vset.pattern.permute.xlu0 0
  %5265 = vperm.xlu0 %5264, %v5227
  %v5266 = vpop.permute.xlu0 %5265
  %vm5268 = vcmask 523264
  %v5270 = vsel %vm5268, %v5212, 0
  %v5273 = vsel %vm5268, %v5213, 0
  %v5276 = vsel %vm5268, %v5214, 0
  %v5279 = vsel %vm5268, %v5215, 0
  %v5282 = vsel %vm5268, %v5216, 0
  %v5285 = vsel %vm5268, %v5217, 0
  %v5288 = vsel %vm5268, %v5218, 0
  %v5291 = vsel %vm5268, %v5219, 0
  %5293 = vmatpush.msra.mxu0 0.0
  %5294 = vmatpush.msra.mxu0 0.0
  %5295 = vmatpush.msra.mxu0 0.0
  %5296 = vmatpush.msra.mxu0 0.0
  %5297 = vmatpush.msra.mxu0 0.0
  %5298 = vmatpush.msra.mxu0 0.0
  %5299 = vmatpush.msra.mxu0 0.0
  %5300 = vmatpush.msra.mxu0 0.0
  %5301 = vmatpush.msra.mxu0 %v5210
  %5302 = vmatpush.msra.mxu0 %v5207
  %5303 = vmatpush.msra.mxu0 %v5187
  %5304 = vmatpush.msra.mxu0 %v5184
  %5305 = vmatpush.msra.mxu0 %v5164
  %5306 = vmatpush.msra.mxu0 %v5161
  %5307 = vmatpush.msra.mxu0 %v5141
  %5308 = vmatpush.msra.mxu0 %v5138
  %5309 = vmatmul.f32.gmra.mxu0 %v5270
  %v5310 = vpop.f32.mrf.mxu0
  %v5311 = vadd.f32 %v5231, %v5310
  %5312 = vmatmul.f32.gmra.mxu0 %v5273
  %v5313 = vpop.f32.mrf.mxu0
  %v5314 = vadd.f32 %v5236, %v5313
  %5315 = vmatmul.f32.gmra.mxu0 %v5276
  %v5316 = vpop.f32.mrf.mxu0
  %v5317 = vadd.f32 %v5241, %v5316
  %5318 = vmatmul.f32.gmra.mxu0 %v5279
  %v5319 = vpop.f32.mrf.mxu0
  %v5320 = vadd.f32 %v5246, %v5319
  %5321 = vmatmul.f32.gmra.mxu0 %v5282
  %v5322 = vpop.f32.mrf.mxu0
  %v5323 = vadd.f32 %v5251, %v5322
  %5324 = vmatmul.f32.gmra.mxu0 %v5285
  %v5325 = vpop.f32.mrf.mxu0
  %v5326 = vadd.f32 %v5256, %v5325
  %5327 = vmatmul.f32.gmra.mxu0 %v5288
  %v5328 = vpop.f32.mrf.mxu0
  %v5329 = vadd.f32 %v5261, %v5328
  %5330 = vmatmul.f32.gmra.mxu0 %v5291
  %v5331 = vpop.f32.mrf.mxu0
  %v5332 = vadd.f32 %v5266, %v5331
  %5333 = vdwg.mxu0
  %5334 = vst.msk [vmem:[%s17] sm:$0xff] %vm5268, %v5311
  %5335 = vst.msk [vmem:[%s17 + $0x8] sm:$0xff] %vm5268, %v5314
  %5336 = vst.msk [vmem:[%s17 + $0x10] sm:$0xff] %vm5268, %v5317
  %5337 = vst.msk [vmem:[%s17 + $0x18] sm:$0xff] %vm5268, %v5320
  %5338 = vst.msk [vmem:[%s17 + $0x20] sm:$0xff] %vm5268, %v5323
  %5339 = vst.msk [vmem:[%s17 + $0x28] sm:$0xff] %vm5268, %v5326
  %5340 = vst.msk [vmem:[%s17 + $0x30] sm:$0xff] %vm5268, %v5329
  %5341 = vst.msk [vmem:[%s17 + $0x38] sm:$0xff] %vm5268, %v5332
  // Predicated region
  $region70: #{tsa_forward.1} parent=0 // pred_check
    _
  $region71: #{tsa_forward.1} parent=0 // pred_check_branch
    %5343 = sbr.rel (0) target = $region73
  $region72: #{tsa_forward.1} parent=0 // pred_region
    _
  $region73: #{tsa_forward.1} parent=0 // pred_fallthru
    _
  // Predicated region
  $region74: #{tsa_forward.1} parent=0 // pred_check
    _
  $region75: #{tsa_forward.1} parent=0 // pred_check_branch
    %5345 = sbr.rel (0) target = $region77
  $region76: #{tsa_forward.1} parent=0 // pred_region
    _
  $region77: #{tsa_forward.1} parent=0 // pred_fallthru
    _

</llo_original>
